<compile_context>
chip_gen: v7x
topology: tpu7x:2x2x1
jax: 0.10.0
libtpu: 0.0.40
codegen_flags: <defaults>
</compile_context>

<pallas_src>
import functools
import numpy as np
import jax
import jax.numpy as jnp
from jax.experimental import pallas as pl
from jax.experimental.pallas import tpu as pltpu

# ----------------------------- config -----------------------------
CFG = dict(
    modality="image",
    visual_encoder="mlp",
    image_res=16,
    img_mode="L",                    # 1 channel
    image_reconstruct_factor=0.0,    # decoder branch disabled
    predict_all=True,
    target_weight=2.0,
    topk=[1, 3],
    mlm_probability=-1.0,
)
CHANNELS = len(CFG["img_mode"])
PIX = CFG["image_res"] * CFG["image_res"] * CHANNELS   # 256

HIDDEN = 768
NUM_HEADS = 12
HEAD_DIM = HIDDEN // NUM_HEADS
INTERMEDIATE = 1024                  # small synthetic BertConfig intermediate size
NUM_LAYERS = 1
VOCAB = 128
MAX_POS = 64
TYPE_VOCAB = 2
LN_EPS = 1e-12
ATT_SCALE = 1.0 / float(np.sqrt(HEAD_DIM))

# Untiled whole-array-in-VMEM spec (no grid => no pipelining => no double-buffering).
VSPEC = pl.BlockSpec(memory_space=pltpu.MemorySpace.VMEM)


# ----------------------------- in-kernel helpers -----------------------------
def _mm(x_f32, w_ref, b_ref):
    """bf16 MXU inputs, f32 accumulate, f32 bias add."""
    return jnp.dot(x_f32.astype(jnp.bfloat16), w_ref[...],
                   preferred_element_type=jnp.float32) + b_ref[...]


def _ln(x, g, b, eps):
    mu = jnp.mean(x, axis=-1, keepdims=True)
    xc = x - mu
    var = jnp.mean(xc * xc, axis=-1, keepdims=True)
    return xc * jax.lax.rsqrt(var + eps) * g + b


def _gelu(x):
    # tanh-approx GELU (HF BERT uses exact erf GELU; difference ~1e-3 relative)
    return 0.5 * x * (1.0 + jnp.tanh(0.7978845608028654 * (x + 0.044715 * x * x * x)))


# ----------------------------- Pallas kernels -----------------------------
def _encode_embed_kernel(img_ref, w0_ref, b0_ref, w1_ref, b1_ref, w2_ref, b2_ref,
                         pos_ref, typ_ref, g_ref, beta_ref, o_ref, *, eps):
    """Visual MLP (3x Linear+ReLU) + pos/type embedding add + embedding LayerNorm."""
    x = img_ref[...]                                           # (M, PIX) f32
    x = jnp.maximum(_mm(x, w0_ref, b0_ref), 0.0)
    x = jnp.maximum(_mm(x, w1_ref, b1_ref), 0.0)
    x = jnp.maximum(_mm(x, w2_ref, b2_ref), 0.0)
    x = x + pos_ref[...] + typ_ref[...]
    o_ref[...] = _ln(x, g_ref[...], beta_ref[...], eps)


def encode_and_embed(params, images2d, pos_e, type_e):
    M = images2d.shape[0]
    return pl.pallas_call(
        functools.partial(_encode_embed_kernel, eps=LN_EPS),
        out_shape=jax.ShapeDtypeStruct((M, HIDDEN), jnp.float32),
        in_specs=[VSPEC] * 11,
        out_specs=VSPEC,
    )(images2d, params["v0_w"], params["v0_b"], params["v1_w"], params["v1_b"],
      params["v2_w"], params["v2_b"], pos_e, type_e,
      params["emb_ln_g"], params["emb_ln_b"])


def _bert_layer_kernel(h_ref, mask_ref, wqkv_ref, bqkv_ref, wo_ref, bo_ref,
                       ln1g_ref, ln1b_ref, wf1_ref, bf1_ref, wf2_ref, bf2_ref,
                       ln2g_ref, ln2b_ref, o_ref, *, heads, head_dim, scale, eps):
    """One fused BERT layer: QKV proj -> per-head attention -> out proj -> LN1 -> FFN -> LN2."""
    h = h_ref[...]                                             # (M, HIDDEN) f32
    H = heads * head_dim
    qkv = _mm(h, wqkv_ref, bqkv_ref)                           # (M, 3*HIDDEN) f32
    add_mask = mask_ref[...]                                   # (M, M) additive f32 (block-diag)

    # accumulate per-head context directly through the sliced output projection:
    # attn_out = sum_h ctx_h @ Wo[h*d:(h+1)*d, :]  (== concat(ctx) @ Wo), kept lane-dense.
    acc = jnp.zeros_like(h)
    for hd in range(heads):
        lo = hd * head_dim
        hi = lo + head_dim
        q = qkv[:, lo:hi] * scale                              # (M, d)
        k = qkv[:, H + lo:H + hi]
        v = qkv[:, 2 * H + lo:2 * H + hi]
        s = jax.lax.dot_general(q.astype(jnp.bfloat16), k.astype(jnp.bfloat16),
                                (((1,), (1,)), ((), ())),
                                preferred_element_type=jnp.float32)   # (M, M)
        s = s + add_mask
        s = s - jnp.max(s, axis=-1, keepdims=True)
        p = jnp.exp(s)
        p = p / jnp.sum(p, axis=-1, keepdims=True)
        ctx = jnp.dot(p.astype(jnp.bfloat16), v.astype(jnp.bfloat16),
                      preferred_element_type=jnp.float32)      # (M, d)
        acc = acc + jnp.dot(ctx.astype(jnp.bfloat16), wo_ref[lo:hi, :],
                            preferred_element_type=jnp.float32)

    h1 = _ln(h + acc + bo_ref[...], ln1g_ref[...], ln1b_ref[...], eps)
    ff = _gelu(_mm(h1, wf1_ref, bf1_ref))
    ff2 = _mm(ff, wf2_ref, bf2_ref)
    o_ref[...] = _ln(h1 + ff2, ln2g_ref[...], ln2b_ref[...], eps)


def bert_layer(lp, h, add_mask2d):
    M = h.shape[0]
    return pl.pallas_call(
        functools.partial(_bert_layer_kernel, heads=NUM_HEADS, head_dim=HEAD_DIM,
                          scale=ATT_SCALE, eps=LN_EPS),
        out_shape=jax.ShapeDtypeStruct((M, HIDDEN), jnp.float32),
        in_specs=[VSPEC] * 14,
        out_specs=VSPEC,
    )(h, add_mask2d, lp["qkv_w"], lp["qkv_b"], lp["o_w"], lp["o_b"],
      lp["ln1_g"], lp["ln1_b"], lp["f1_w"], lp["f1_b"], lp["f2_w"], lp["f2_b"],
      lp["ln2_g"], lp["ln2_b"])


def _mlm_head_kernel(h_ref, w_ref, b_ref, g_ref, beta_ref, dw_ref, db_ref, o_ref, *, eps):
    """MLM head: transform Linear + GELU + LayerNorm + decoder Linear (vocab)."""
    t = _gelu(_mm(h_ref[...], w_ref, b_ref))
    t = _ln(t, g_ref[...], beta_ref[...], eps)
    o_ref[...] = _mm(t, dw_ref, db_ref)


def mlm_head(params, h):
    M = h.shape[0]
    return pl.pallas_call(
        functools.partial(_mlm_head_kernel, eps=LN_EPS),
        out_shape=jax.ShapeDtypeStruct((M, VOCAB), jnp.float32),
        in_specs=[VSPEC] * 7,
        out_specs=VSPEC,
    )(h, params["mh_w"], params["mh_b"], params["mh_ln_g"], params["mh_ln_b"],
      params["dec_w"], params["dec_b"])


def _dual_ce_kernel(logits_ref, lab_ref, plab_ref, nll_ref, pnll_ref):
    """Per-row NLL for two label sets sharing one max/logsumexp over the same logits."""
    logits = logits_ref[...]                                   # (N, V) f32
    m = jnp.max(logits, axis=-1, keepdims=True)
    lse = jnp.log(jnp.sum(jnp.exp(logits - m), axis=-1, keepdims=True)) + m
    col = jax.lax.broadcasted_iota(jnp.int32, logits.shape, 1)
    oh1 = (col == lab_ref[...]).astype(jnp.float32)            # all-zero for ignore rows
    oh2 = (col == plab_ref[...]).astype(jnp.float32)
    nll_ref[...] = lse - jnp.sum(logits * oh1, axis=-1, keepdims=True)
    pnll_ref[...] = lse - jnp.sum(logits * oh2, axis=-1, keepdims=True)


def dual_cross_entropy(logits, labels, plain_labels, ignore_index=-100):
    """Mirrors two nn.CrossEntropyLoss(ignore_index=-100, reduction='mean') over one logits."""
    N, V = logits.shape
    lab2 = labels.reshape(N, 1).astype(jnp.int32)
    plab2 = plain_labels.reshape(N, 1).astype(jnp.int32)
    nll, pnll = pl.pallas_call(
        _dual_ce_kernel,
        out_shape=(jax.ShapeDtypeStruct((N, 1), jnp.float32),
                   jax.ShapeDtypeStruct((N, 1), jnp.float32)),
        in_specs=[VSPEC] * 3,
        out_specs=(VSPEC, VSPEC),
    )(logits, lab2, plab2)

    def _masked_mean(per_row, lab):
        valid = (lab.reshape(N) != ignore_index).astype(jnp.float32)
        total = jnp.sum(per_row.reshape(N) * valid)
        return total / jnp.maximum(jnp.sum(valid), 1.0)

    return _masked_mean(nll, labels), _masked_mean(pnll, plain_labels)


# ----------------------------- parameters -----------------------------
def init_params(key):
    keys = iter(jax.random.split(key, 64))

    def lin(fi, fo):
        # bf16 weights (native MXU input), f32 biases kept (1, fo) for lane-dense broadcast
        w = (jax.random.normal(next(keys), (fi, fo), jnp.float32) * 0.02).astype(jnp.bfloat16)
        return w, jnp.zeros((1, fo), jnp.float32)

    p = {}
    # visual_encoder = Sequential(Linear(PIX,512), ReLU, Linear(512,1024), ReLU, Linear(1024,768), ReLU)
    p["v0_w"], p["v0_b"] = lin(PIX, 512)
    p["v1_w"], p["v1_b"] = lin(512, 1024)
    p["v2_w"], p["v2_b"] = lin(1024, HIDDEN)
    # BERT embeddings (word embeddings unused in image modality)
    p["pos_emb"] = jax.random.normal(next(keys), (MAX_POS, HIDDEN), jnp.float32) * 0.02
    p["type_emb"] = jax.random.normal(next(keys), (TYPE_VOCAB, HIDDEN), jnp.float32) * 0.02
    p["emb_ln_g"] = jnp.ones((1, HIDDEN), jnp.float32)
    p["emb_ln_b"] = jnp.zeros((1, HIDDEN), jnp.float32)
    layers = []
    for _ in range(NUM_LAYERS):
        lp = {}
        lp["qkv_w"], lp["qkv_b"] = lin(HIDDEN, 3 * HIDDEN)   # fused [Q | K | V] projection
        lp["o_w"], lp["o_b"] = lin(HIDDEN, HIDDEN)
        lp["ln1_g"] = jnp.ones((1, HIDDEN), jnp.float32)
        lp["ln1_b"] = jnp.zeros((1, HIDDEN), jnp.float32)
        lp["f1_w"], lp["f1_b"] = lin(HIDDEN, INTERMEDIATE)
        lp["f2_w"], lp["f2_b"] = lin(INTERMEDIATE, HIDDEN)
        lp["ln2_g"] = jnp.ones((1, HIDDEN), jnp.float32)
        lp["ln2_b"] = jnp.zeros((1, HIDDEN), jnp.float32)
        layers.append(lp)
    p["layers"] = layers
    # MLM head: transform Linear+GELU+LayerNorm, then decoder Linear(768, vocab)
    p["mh_w"], p["mh_b"] = lin(HIDDEN, HIDDEN)
    p["mh_ln_g"] = jnp.ones((1, HIDDEN), jnp.float32)
    p["mh_ln_b"] = jnp.zeros((1, HIDDEN), jnp.float32)
    p["dec_w"], p["dec_b"] = lin(HIDDEN, VOCAB)
    return p


# ----------------------------- model forward -----------------------------
def single_mlm_forward(params, images, mask_ori_images, input_ids, attn_masks, labels,
                       plain_labels, pos_ids, type_ids, lengths, mask_ids, mask_img_ids,
                       mask_chs, mode):
    assert mode in ["train", "valid", "test"]
    # modality == 'image' : SingleMlm.forward_encoder 'mlp' branch fused with BERT embeddings
    B, S, P = images.shape
    M = B * S
    images2d = images.reshape(M, P)
    pos_e = jnp.take(params["pos_emb"], pos_ids.reshape(-1), axis=0)      # (M, H)
    type_e = jnp.take(params["type_emb"], type_ids.reshape(-1), axis=0)   # (M, H)

    # Block-diagonal 2-D additive mask: fuses the batch structure and the key-padding mask,
    # so the attention kernel stays fully 2-D / lane-dense (no (B*H, S) repeat, no transposes).
    batch_idx = jnp.repeat(jnp.arange(B, dtype=jnp.int32), S)             # (M,)
    key_valid = attn_masks.reshape(M) > 0
    allow = (batch_idx[:, None] == batch_idx[None, :]) & key_valid[None, :]
    add_mask2d = jnp.where(allow, 0.0, -1e9).astype(jnp.float32)          # (M, M)

    h = encode_and_embed(params, images2d, pos_e, type_e)                 # (M, H)
    for lp in params["layers"]:
        h = bert_layer(lp, h, add_mask2d)
    logits2d = mlm_head(params, h)                                        # (M, V)
    logits = logits2d.reshape(B, S, VOCAB)

    loss_mlm, loss_plain_all = dual_cross_entropy(
        logits2d, labels.reshape(-1), plain_labels.reshape(-1))
    loss_rec = jnp.float32(0.0)       # image_reconstruct_factor <= 0 branch
    loss_tra_mlm = jnp.float32(0.0)   # tradition_mlm disabled
    loss_plain = loss_plain_all if CFG["predict_all"] else jnp.float32(0.0)

    # --- metrics (torch.no_grad block) ---
    predict_result_ids = jnp.argmax(logits, axis=2)
    label_mask = labels != -100
    predict_result = jnp.logical_and(label_mask, predict_result_ids == labels)
    instance_num = jnp.sum(label_mask)
    correct_num = jnp.sum(predict_result)
    probs = jax.nn.softmax(logits[jnp.arange(B), mask_ids, :], axis=1)
    topk_scores, topk_ids = jax.lax.top_k(probs, max(CFG["topk"]))

    total_loss = loss_mlm + loss_rec * CFG["image_reconstruct_factor"]
    if CFG["predict_all"]:
        total_loss = total_loss + loss_plain / (CFG["target_weight"] - 1.0)

    return dict(total_loss=total_loss, loss_mlm=loss_mlm, loss_rec=loss_rec,
                loss_plain=loss_plain, loss_tra_mlm=loss_tra_mlm,
                correct_num=correct_num, instance_num=instance_num,
                predict_result=predict_result, predict_result_ids=predict_result_ids,
                topk_scores=topk_scores, topk_ids=topk_ids)


def host_metrics(out, input_ids, labels, mask_chs):
    """Host-side python-list bookkeeping from the no_grad block (glue, not kernel work)."""
    labels_np = np.asarray(labels)
    predict_result = np.asarray(out["predict_result"])
    predict_result_ids = np.asarray(out["predict_result_ids"])
    correct_ids = [tuple(idx) for idx in np.argwhere(predict_result).tolist()]
    correct_chars = []
    for idx in correct_ids:
        ori_idx = (idx[0], idx[1] + 1)   # image modality offset
        correct_chars.append((int(labels_np[idx]), ori_idx))
    ori_input_ids = np.asarray(input_ids).copy()
    instance_idx = [tuple(idx) for idx in np.argwhere(labels_np + 100).tolist()]
    wrong_chars = []
    correct_set = set(correct_ids)
    for idx in instance_idx:
        ori_idx = (idx[0], idx[1] + 1)
        ori_input_ids[ori_idx] = labels_np[idx]
        if idx not in correct_set:
            wrong_chars.append((int(labels_np[idx]), int(predict_result_ids[idx]), ori_idx))
    topk_ids = np.asarray(out["topk_ids"]).tolist()
    topk_scores = np.asarray(out["topk_scores"]).tolist()
    rank_correct_num, rank_instance_num, hit_correct = {}, {}, {}
    batch_sz = len(mask_chs)
    for k in CFG["topk"]:
        local_rank_correct, local_correct = 0, 0
        for lab, topk_id in zip(mask_chs, topk_ids):
            local_top = topk_id[:k]
            if lab not in local_top:
                continue
            local_correct += 1
            local_rank_correct += k - local_top.index(lab)
        rank_correct_num[k] = local_rank_correct
        rank_instance_num[k] = batch_sz * k
        hit_correct[k] = local_correct
    return (ori_input_ids.tolist(), correct_chars, wrong_chars,
            rank_correct_num, rank_instance_num, hit_correct, topk_ids, topk_scores)


# ----------------------------- main -----------------------------
if __name__ == "__main__":
    B, S = 2, 8                       # batch, image sequence length
    root = jax.random.PRNGKey(0)
    k_par, k_img, k_lab, k_ids, k_mori = jax.random.split(root, 5)

    params = init_params(k_par)

    images = jax.random.normal(k_img, (B, S, PIX), jnp.float32)
    mask_ori_images = jax.random.normal(k_mori, (B, PIX), jnp.float32)   # unused (factor=0)
    plain_labels = jax.random.randint(k_lab, (B, S), 0, VOCAB, jnp.int32)
    input_ids = jax.random.randint(k_ids, (B, S + 2), 0, VOCAB, jnp.int32)

    mask_ids = jnp.array([2, 5], dtype=jnp.int32)
    mask_img_ids = jnp.array([0, 1], dtype=jnp.int32)                    # unused (factor=0)
    labels = jnp.full((B, S), -100, jnp.int32)
    labels = labels.at[jnp.arange(B), mask_ids].set(plain_labels[jnp.arange(B), mask_ids])
    mask_chs = [int(plain_labels[b, int(mask_ids[b])]) for b in range(B)]

    attn_masks = jnp.ones((B, S), jnp.int32)
    pos_ids = jnp.tile(jnp.arange(S, dtype=jnp.int32)[None, :], (B, 1))
    type_ids = jnp.zeros((B, S), jnp.int32)
    lengths = [(S, 0)] * B

    out = single_mlm_forward(params, images, mask_ori_images, input_ids, attn_masks,
                             labels, plain_labels, pos_ids, type_ids, lengths,
                             mask_ids, mask_img_ids, mask_chs, mode="train")
    jax.block_until_ready(out["total_loss"])

    (ori_input_ids, correct_chars, wrong_chars, rank_correct_num,
     rank_instance_num, hit_correct, topk_ids, topk_scores) = host_metrics(
        out, input_ids, labels, mask_chs)

    result = (out["total_loss"], out["loss_mlm"], out["loss_rec"], out["loss_plain"],
              out["loss_tra_mlm"], out["correct_num"], out["instance_num"],
              ori_input_ids, correct_chars, wrong_chars, rank_correct_num,
              rank_instance_num, hit_correct, topk_ids, topk_scores)
    jax.block_until_ready(result[0])

    assert np.isfinite(float(result[0]))
    print("KERNEL_OK")
</pallas_src>

<mosaic_0001>
module attributes {stable_mosaic.version = 11 : i64} {
  func.func @_encode_embed_kernel(%arg0: memref<16x256xf32, #tpu.memory_space<vmem>>, %arg1: memref<256x512xbf16, #tpu.memory_space<vmem>>, %arg2: memref<1x512xf32, #tpu.memory_space<vmem>>, %arg3: memref<512x1024xbf16, #tpu.memory_space<vmem>>, %arg4: memref<1x1024xf32, #tpu.memory_space<vmem>>, %arg5: memref<1024x768xbf16, #tpu.memory_space<vmem>>, %arg6: memref<1x768xf32, #tpu.memory_space<vmem>>, %arg7: memref<16x768xf32, #tpu.memory_space<vmem>>, %arg8: memref<16x768xf32, #tpu.memory_space<vmem>>, %arg9: memref<1x768xf32, #tpu.memory_space<vmem>>, %arg10: memref<1x768xf32, #tpu.memory_space<vmem>>, %arg11: memref<16x768xf32, #tpu.memory_space<vmem>>) attributes {dimension_semantics = [], scalar_prefetch = 0 : i64, scratch_operands = 0 : i64, tpu.core_type = #tpu.core_type<tc>} {
    %c0 = arith.constant 0 : index
    %c0_0 = arith.constant 0 : index
    %0 = vector.load %arg0[%c0, %c0_0] : memref<16x256xf32, #tpu.memory_space<vmem>>, vector<16x256xf32>
    %1 = arith.truncf %0 : vector<16x256xf32> to vector<16x256xbf16>
    %c0_1 = arith.constant 0 : index
    %c0_2 = arith.constant 0 : index
    %2 = vector.load %arg1[%c0_1, %c0_2] : memref<256x512xbf16, #tpu.memory_space<vmem>>, vector<256x512xbf16>
    %cst = arith.constant dense<0.000000e+00> : vector<16x512xf32>
    %3 = tpu.matmul %1, %2, %cst {dimension_numbers = #tpu.dot_dimension_numbers<[1], [0], [0], [1], [0, 0, 1, 1], [], []>} : vector<16x256xbf16>, vector<256x512xbf16>, vector<16x512xf32> -> vector<16x512xf32>
    %c0_3 = arith.constant 0 : index
    %c0_4 = arith.constant 0 : index
    %4 = vector.load %arg2[%c0_3, %c0_4] : memref<1x512xf32, #tpu.memory_space<vmem>>, vector<1x512xf32>
    %5 = vector.broadcast %4 : vector<1x512xf32> to vector<16x512xf32>
    %6 = arith.addf %3, %5 : vector<16x512xf32>
    %cst_5 = arith.constant 0.000000e+00 : f32
    %7 = vector.broadcast %cst_5 : f32 to vector<16x512xf32>
    %8 = arith.maximumf %6, %7 : vector<16x512xf32>
    %9 = arith.truncf %8 : vector<16x512xf32> to vector<16x512xbf16>
    %c0_6 = arith.constant 0 : index
    %c0_7 = arith.constant 0 : index
    %10 = vector.load %arg3[%c0_6, %c0_7] : memref<512x1024xbf16, #tpu.memory_space<vmem>>, vector<512x1024xbf16>
    %cst_8 = arith.constant dense<0.000000e+00> : vector<16x1024xf32>
    %11 = tpu.matmul %9, %10, %cst_8 {dimension_numbers = #tpu.dot_dimension_numbers<[1], [0], [0], [1], [0, 0, 1, 1], [], []>} : vector<16x512xbf16>, vector<512x1024xbf16>, vector<16x1024xf32> -> vector<16x1024xf32>
    %c0_9 = arith.constant 0 : index
    %c0_10 = arith.constant 0 : index
    %12 = vector.load %arg4[%c0_9, %c0_10] : memref<1x1024xf32, #tpu.memory_space<vmem>>, vector<1x1024xf32>
    %13 = vector.broadcast %12 : vector<1x1024xf32> to vector<16x1024xf32>
    %14 = arith.addf %11, %13 : vector<16x1024xf32>
    %cst_11 = arith.constant 0.000000e+00 : f32
    %15 = vector.broadcast %cst_11 : f32 to vector<16x1024xf32>
    %16 = arith.maximumf %14, %15 : vector<16x1024xf32>
    %17 = arith.truncf %16 : vector<16x1024xf32> to vector<16x1024xbf16>
    %c0_12 = arith.constant 0 : index
    %c0_13 = arith.constant 0 : index
    %18 = vector.load %arg5[%c0_12, %c0_13] : memref<1024x768xbf16, #tpu.memory_space<vmem>>, vector<1024x768xbf16>
    %cst_14 = arith.constant dense<0.000000e+00> : vector<16x768xf32>
    %19 = tpu.matmul %17, %18, %cst_14 {dimension_numbers = #tpu.dot_dimension_numbers<[1], [0], [0], [1], [0, 0, 1, 1], [], []>} : vector<16x1024xbf16>, vector<1024x768xbf16>, vector<16x768xf32> -> vector<16x768xf32>
    %c0_15 = arith.constant 0 : index
    %c0_16 = arith.constant 0 : index
    %20 = vector.load %arg6[%c0_15, %c0_16] : memref<1x768xf32, #tpu.memory_space<vmem>>, vector<1x768xf32>
    %21 = vector.broadcast %20 : vector<1x768xf32> to vector<16x768xf32>
    %22 = arith.addf %19, %21 : vector<16x768xf32>
    %cst_17 = arith.constant 0.000000e+00 : f32
    %23 = vector.broadcast %cst_17 : f32 to vector<16x768xf32>
    %24 = arith.maximumf %22, %23 : vector<16x768xf32>
    %c0_18 = arith.constant 0 : index
    %c0_19 = arith.constant 0 : index
    %25 = vector.load %arg7[%c0_18, %c0_19] : memref<16x768xf32, #tpu.memory_space<vmem>>, vector<16x768xf32>
    %26 = arith.addf %24, %25 : vector<16x768xf32>
    %c0_20 = arith.constant 0 : index
    %c0_21 = arith.constant 0 : index
    %27 = vector.load %arg8[%c0_20, %c0_21] : memref<16x768xf32, #tpu.memory_space<vmem>>, vector<16x768xf32>
    %28 = arith.addf %26, %27 : vector<16x768xf32>
    %c0_22 = arith.constant 0 : index
    %c0_23 = arith.constant 0 : index
    %29 = vector.load %arg9[%c0_22, %c0_23] : memref<1x768xf32, #tpu.memory_space<vmem>>, vector<1x768xf32>
    %c0_24 = arith.constant 0 : index
    %c0_25 = arith.constant 0 : index
    %30 = vector.load %arg10[%c0_24, %c0_25] : memref<1x768xf32, #tpu.memory_space<vmem>>, vector<1x768xf32>
    %cst_26 = arith.constant dense<0.000000e+00> : vector<16xf32>
    %31 = vector.multi_reduction <add>, %28, %cst_26 [1] : vector<16x768xf32> to vector<16xf32>
    %32 = vector.shape_cast %31 : vector<16xf32> to vector<16x1xf32>
    %cst_27 = arith.constant 7.680000e+02 : f32
    %33 = vector.broadcast %cst_27 : f32 to vector<16x1xf32>
    %34 = arith.divf %32, %33 : vector<16x1xf32>
    %35 = vector.broadcast %34 : vector<16x1xf32> to vector<16x768xf32>
    %36 = arith.subf %28, %35 : vector<16x768xf32>
    %37 = arith.mulf %36, %36 : vector<16x768xf32>
    %cst_28 = arith.constant dense<0.000000e+00> : vector<16xf32>
    %38 = vector.multi_reduction <add>, %37, %cst_28 [1] : vector<16x768xf32> to vector<16xf32>
    %39 = vector.shape_cast %38 : vector<16xf32> to vector<16x1xf32>
    %cst_29 = arith.constant 7.680000e+02 : f32
    %40 = vector.broadcast %cst_29 : f32 to vector<16x1xf32>
    %41 = arith.divf %39, %40 : vector<16x1xf32>
    %cst_30 = arith.constant 9.99999996E-13 : f32
    %42 = vector.broadcast %cst_30 : f32 to vector<16x1xf32>
    %43 = arith.addf %41, %42 : vector<16x1xf32>
    %44 = math.rsqrt %43 : vector<16x1xf32>
    %45 = vector.broadcast %44 : vector<16x1xf32> to vector<16x768xf32>
    %46 = arith.mulf %36, %45 : vector<16x768xf32>
    %47 = vector.broadcast %29 : vector<1x768xf32> to vector<16x768xf32>
    %48 = arith.mulf %46, %47 : vector<16x768xf32>
    %49 = vector.broadcast %30 : vector<1x768xf32> to vector<16x768xf32>
    %50 = arith.addf %48, %49 : vector<16x768xf32>
    %c0_31 = arith.constant 0 : index
    %c0_32 = arith.constant 0 : index
    %51 = vector.load %arg11[%c0_31, %c0_32] : memref<16x768xf32, #tpu.memory_space<vmem>>, vector<16x768xf32>
    tpu.vector_store %arg11[%c0_31, %c0_32], %50 {strides = array<i32>} : memref<16x768xf32, #tpu.memory_space<vmem>>, vector<16x768xf32>,
    return
  }
}

</mosaic_0001>

<llo_original>
// kernel: tpu_custom_call.1
$region0: #{tpu_custom_call.1}
  #allocation0 [shape = 'u32[]', space=smem, size = 0x4, offset = 0x4, fixed_abs, tag = 'smem constant byte address 0x4 - core index']
  #allocation1 [shape = 'u32[144,128]{1,0:T(1,128)}', space=vmem, size = 0x12000, scoped, tag = 'internal scratch']
  %s0 = inlined_call_operand.hbm [shape: f32[16,256], index: 0, kind: input, shape index: {}]
  %s1 = inlined_call_operand.hbm [shape: bf16[256,512], index: 1, kind: input, shape index: {}]
  %s2 = inlined_call_operand.hbm [shape: f32[1,512], index: 2, kind: input, shape index: {}]
  %s3 = inlined_call_operand.hbm [shape: bf16[512,1024], index: 3, kind: input, shape index: {}]
  %s4 = inlined_call_operand.hbm [shape: f32[1,1024], index: 4, kind: input, shape index: {}]
  %s5 = inlined_call_operand.hbm [shape: bf16[1024,768], index: 5, kind: input, shape index: {}]
  %s6 = inlined_call_operand.hbm [shape: f32[1,768], index: 6, kind: input, shape index: {}]
  %s7 = inlined_call_operand.hbm [shape: f32[16,768], index: 7, kind: input, shape index: {}]
  %s8 = inlined_call_operand.hbm [shape: f32[16,768], index: 8, kind: input, shape index: {}]
  %s9 = inlined_call_operand.hbm [shape: f32[1,768], index: 9, kind: input, shape index: {}]
  %s10 = inlined_call_operand.hbm [shape: f32[1,768], index: 10, kind: input, shape index: {}]
  %s11 = inlined_call_operand.hbm [shape: f32[16,768], index: 11, kind: output, shape index: {}]
  %s12 = sld [smem:[#allocation0]]
  $region98: #{tpu_custom_call.1} parent=0
    _
  %s14 = ssub.s32 1, %s12
  %s15 = scalar_select 0, %s14, %s12
  $region1: #{tpu_custom_call.1} parent=0
    #allocation2 [shape = 'u8[16384]{0}', space=vmem, size = 0x4000, scoped, tag = 'input window, operand 0, single buffered']
    #allocation3 [shape = 's32[1]{0}', space=sflag, size = 0x4, scoped, tag = 'scoped memory for tpu_custom_call.1']
    #allocation4 [shape = 's32[1]{0}', space=sflag, size = 0x4, scoped, tag = 'scoped memory for tpu_custom_call.1']
    #allocation5 [shape = 'u8[262144]{0}', space=vmem, size = 0x40000, scoped, tag = 'input window, operand 1, single buffered']
    #allocation6 [shape = 's32[1]{0}', space=sflag, size = 0x4, scoped, tag = 'scoped memory for tpu_custom_call.1']
    #allocation7 [shape = 'u8[2048]{0}', space=vmem, size = 0x800, scoped, tag = 'input window, operand 2, single buffered']
    #allocation8 [shape = 'u8[1048576]{0}', space=vmem, size = 0x100000, scoped, tag = 'input window, operand 3, single buffered']
    #allocation9 [shape = 's32[1]{0}', space=sflag, size = 0x4, scoped, tag = 'scoped memory for tpu_custom_call.1']
    #allocation10 [shape = 'u8[4096]{0}', space=vmem, size = 0x1000, scoped, tag = 'input window, operand 4, single buffered']
    #allocation11 [shape = 'u8[1572864]{0}', space=vmem, size = 0x180000, scoped, tag = 'input window, operand 5, single buffered']
    #allocation12 [shape = 's32[1]{0}', space=sflag, size = 0x4, scoped, tag = 'scoped memory for tpu_custom_call.1']
    #allocation13 [shape = 'u8[3072]{0}', space=vmem, size = 0xc00, scoped, tag = 'input window, operand 6, single buffered']
    #allocation14 [shape = 'u8[49152]{0}', space=vmem, size = 0xc000, scoped, tag = 'input window, operand 7, single buffered']
    #allocation15 [shape = 's32[1]{0}', space=sflag, size = 0x4, scoped, tag = 'scoped memory for tpu_custom_call.1']
    #allocation16 [shape = 'u8[49152]{0}', space=vmem, size = 0xc000, scoped, tag = 'input window, operand 8, single buffered']
    #allocation17 [shape = 'u8[3072]{0}', space=vmem, size = 0xc00, scoped, tag = 'input window, operand 9, single buffered']
    #allocation18 [shape = 's32[1]{0}', space=sflag, size = 0x4, scoped, tag = 'scoped memory for tpu_custom_call.1']
    #allocation19 [shape = 'u8[3072]{0}', space=vmem, size = 0xc00, scoped, tag = 'input window, operand 10, single buffered']
    #allocation20 [shape = 'u8[49152]{0}', space=vmem, size = 0xc000, scoped, tag = 'output window, operand 0, single buffered']
    %16 = vsyncpa [#allocation3], 0
    %17 = vsyncpa [#allocation6], 0
    %18 = vsyncpa [#allocation9], 0
    %19 = vsyncpa [#allocation12], 0
    %20 = vsyncpa [#allocation15], 0
    %21 = vsyncpa [#allocation18], 0
    %22 = vsyncpa [#allocation4], 0
    // Predicated region
    $region2: #{tpu_custom_call.1} parent=1 // pred_check
      _
    $region3: #{tpu_custom_call.1} parent=1 // pred_check_branch
      %24 = sbr.rel (0) target = $region5
    $region4: #{tpu_custom_call.1} parent=1 // pred_region
      %s26 = ssub.s32 512, 512
      %27 = vsyncadd [#allocation3], %s26
      %s28 = sshll.u32 [#allocation2], 4
      %s29 = int_to_ptr.vmem [resolvable:$true] %s28
      %34 = dma.hbm_to_vmem [thread:$0]  %s0, 512, %s29, [#allocation3], 256, 256, 16
    $region5: #{tpu_custom_call.1} parent=1 // pred_fallthru
      _
    // Predicated region
    $region6: #{tpu_custom_call.1} parent=1 // pred_check
      _
    $region7: #{tpu_custom_call.1} parent=1 // pred_check_branch
      %36 = sbr.rel (0) target = $region9
    $region8: #{tpu_custom_call.1} parent=1 // pred_region
      %s38 = ssub.s32 8192, 8192
      %39 = vsyncadd [#allocation6], %s38
      %s40 = sshll.u32 [#allocation5], 4
      %s41 = int_to_ptr.vmem [resolvable:$true] %s40
      %46 = dma.hbm_to_vmem [thread:$0]  %s1, 8192, %s41, [#allocation6], 256, 256, 16
    $region9: #{tpu_custom_call.1} parent=1 // pred_fallthru
      _
    // Predicated region
    $region10: #{tpu_custom_call.1} parent=1 // pred_check
      _
    $region11: #{tpu_custom_call.1} parent=1 // pred_check_branch
      %48 = sbr.rel (0) target = $region13
    $region12: #{tpu_custom_call.1} parent=1 // pred_region
      %s50 = ssub.s32 64, 64
      %51 = vsyncadd [#allocation6], %s50
      %s53 = sshll.u32 [#allocation7], 4
      %s54 = int_to_ptr.vmem [resolvable:$true] %s53
      %56 = dma.hbm_to_vmem [thread:$0]  %s2, 64, %s54, [#allocation6]
    $region13: #{tpu_custom_call.1} parent=1 // pred_fallthru
      _
    // Predicated region
    $region14: #{tpu_custom_call.1} parent=1 // pred_check
      _
    $region15: #{tpu_custom_call.1} parent=1 // pred_check_branch
      %58 = sbr.rel (0) target = $region17
    $region16: #{tpu_custom_call.1} parent=1 // pred_region
      %s60 = ssub.s32 32768, 32768
      %61 = vsyncadd [#allocation9], %s60
      %s62 = sshll.u32 [#allocation8], 4
      %s63 = int_to_ptr.vmem [resolvable:$true] %s62
      %68 = dma.hbm_to_vmem [thread:$0]  %s3, 32768, %s63, [#allocation9], 512, 512, 32
    $region17: #{tpu_custom_call.1} parent=1 // pred_fallthru
      _
    // Predicated region
    $region18: #{tpu_custom_call.1} parent=1 // pred_check
      _
    $region19: #{tpu_custom_call.1} parent=1 // pred_check_branch
      %70 = sbr.rel (0) target = $region21
    $region20: #{tpu_custom_call.1} parent=1 // pred_region
      %s72 = ssub.s32 128, 128
      %73 = vsyncadd [#allocation9], %s72
      %s75 = sshll.u32 [#allocation10], 4
      %s76 = int_to_ptr.vmem [resolvable:$true] %s75
      %78 = dma.hbm_to_vmem [thread:$0]  %s4, 128, %s76, [#allocation9]
    $region21: #{tpu_custom_call.1} parent=1 // pred_fallthru
      _
    // Predicated region
    $region22: #{tpu_custom_call.1} parent=1 // pred_check
      _
    $region23: #{tpu_custom_call.1} parent=1 // pred_check_branch
      %80 = sbr.rel (0) target = $region25
    $region24: #{tpu_custom_call.1} parent=1 // pred_region
      %s82 = ssub.s32 49152, 49152
      %83 = vsyncadd [#allocation12], %s82
      %s84 = sshll.u32 [#allocation11], 4
      %s85 = int_to_ptr.vmem [resolvable:$true] %s84
      %90 = dma.hbm_to_vmem [thread:$0]  %s5, 49152, %s85, [#allocation12], 384, 384, 24
    $region25: #{tpu_custom_call.1} parent=1 // pred_fallthru
      _
    // Predicated region
    $region26: #{tpu_custom_call.1} parent=1 // pred_check
      _
    $region27: #{tpu_custom_call.1} parent=1 // pred_check_branch
      %92 = sbr.rel (0) target = $region29
    $region28: #{tpu_custom_call.1} parent=1 // pred_region
      %s94 = ssub.s32 96, 96
      %95 = vsyncadd [#allocation12], %s94
      %s97 = sshll.u32 [#allocation13], 4
      %s98 = int_to_ptr.vmem [resolvable:$true] %s97
      %100 = dma.hbm_to_vmem [thread:$0]  %s6, 96, %s98, [#allocation12]
    $region29: #{tpu_custom_call.1} parent=1 // pred_fallthru
      _
    // Predicated region
    $region30: #{tpu_custom_call.1} parent=1 // pred_check
      _
    $region31: #{tpu_custom_call.1} parent=1 // pred_check_branch
      %102 = sbr.rel (0) target = $region33
    $region32: #{tpu_custom_call.1} parent=1 // pred_region
      %s104 = ssub.s32 1536, 1536
      %105 = vsyncadd [#allocation15], %s104
      %s106 = sshll.u32 [#allocation14], 4
      %s107 = int_to_ptr.vmem [resolvable:$true] %s106
      %112 = dma.hbm_to_vmem [thread:$0]  %s7, 1536, %s107, [#allocation15], 768, 768, 48
    $region33: #{tpu_custom_call.1} parent=1 // pred_fallthru
      _
    // Predicated region
    $region34: #{tpu_custom_call.1} parent=1 // pred_check
      _
    $region35: #{tpu_custom_call.1} parent=1 // pred_check_branch
      %114 = sbr.rel (0) target = $region37
    $region36: #{tpu_custom_call.1} parent=1 // pred_region
      %s116 = ssub.s32 1536, 1536
      %117 = vsyncadd [#allocation15], %s116
      %s118 = sshll.u32 [#allocation16], 4
      %s119 = int_to_ptr.vmem [resolvable:$true] %s118
      %124 = dma.hbm_to_vmem [thread:$0]  %s8, 1536, %s119, [#allocation15], 768, 768, 48
    $region37: #{tpu_custom_call.1} parent=1 // pred_fallthru
      _
    // Predicated region
    $region38: #{tpu_custom_call.1} parent=1 // pred_check
      _
    $region39: #{tpu_custom_call.1} parent=1 // pred_check_branch
      %126 = sbr.rel (0) target = $region41
    $region40: #{tpu_custom_call.1} parent=1 // pred_region
      %s128 = ssub.s32 96, 96
      %129 = vsyncadd [#allocation18], %s128
      %s131 = sshll.u32 [#allocation17], 4
      %s132 = int_to_ptr.vmem [resolvable:$true] %s131
      %134 = dma.hbm_to_vmem [thread:$0]  %s9, 96, %s132, [#allocation18]
    $region41: #{tpu_custom_call.1} parent=1 // pred_fallthru
      _
    // Predicated region
    $region42: #{tpu_custom_call.1} parent=1 // pred_check
      _
    $region43: #{tpu_custom_call.1} parent=1 // pred_check_branch
      %136 = sbr.rel (0) target = $region45
    $region44: #{tpu_custom_call.1} parent=1 // pred_region
      %s138 = ssub.s32 96, 96
      %139 = vsyncadd [#allocation18], %s138
      %s141 = sshll.u32 [#allocation19], 4
      %s142 = int_to_ptr.vmem [resolvable:$true] %s141
      %144 = dma.hbm_to_vmem [thread:$0]  %s10, 96, %s142, [#allocation18]
    $region45: #{tpu_custom_call.1} parent=1 // pred_fallthru
      _
    // Predicated region
    $region46: #{tpu_custom_call.1} parent=1 // pred_check
      _
    $region47: #{tpu_custom_call.1} parent=1 // pred_check_branch
      %146 = sbr.rel (0) target = $region49
    $region48: #{tpu_custom_call.1} parent=1 // pred_region
      %147 = dma.done [#allocation3], 512
    $region49: #{tpu_custom_call.1} parent=1 // pred_fallthru
      _
    // Predicated region
    $region50: #{tpu_custom_call.1} parent=1 // pred_check
      _
    $region51: #{tpu_custom_call.1} parent=1 // pred_check_branch
      %149 = sbr.rel (0) target = $region53
    $region52: #{tpu_custom_call.1} parent=1 // pred_region
      %150 = dma.done [#allocation6], 8192
    $region53: #{tpu_custom_call.1} parent=1 // pred_fallthru
      _
    // Predicated region
    $region54: #{tpu_custom_call.1} parent=1 // pred_check
      _
    $region55: #{tpu_custom_call.1} parent=1 // pred_check_branch
      %152 = sbr.rel (0) target = $region57
    $region56: #{tpu_custom_call.1} parent=1 // pred_region
      %153 = dma.done [#allocation6], 64
    $region57: #{tpu_custom_call.1} parent=1 // pred_fallthru
      _
    // Predicated region
    $region58: #{tpu_custom_call.1} parent=1 // pred_check
      _
    $region59: #{tpu_custom_call.1} parent=1 // pred_check_branch
      %155 = sbr.rel (0) target = $region61
    $region60: #{tpu_custom_call.1} parent=1 // pred_region
      %156 = dma.done [#allocation9], 32768
    $region61: #{tpu_custom_call.1} parent=1 // pred_fallthru
      _
    // Predicated region
    $region62: #{tpu_custom_call.1} parent=1 // pred_check
      _
    $region63: #{tpu_custom_call.1} parent=1 // pred_check_branch
      %158 = sbr.rel (0) target = $region65
    $region64: #{tpu_custom_call.1} parent=1 // pred_region
      %159 = dma.done [#allocation9], 128
    $region65: #{tpu_custom_call.1} parent=1 // pred_fallthru
      _
    // Predicated region
    $region66: #{tpu_custom_call.1} parent=1 // pred_check
      _
    $region67: #{tpu_custom_call.1} parent=1 // pred_check_branch
      %161 = sbr.rel (0) target = $region69
    $region68: #{tpu_custom_call.1} parent=1 // pred_region
      %162 = dma.done [#allocation12], 49152
    $region69: #{tpu_custom_call.1} parent=1 // pred_fallthru
      _
    // Predicated region
    $region70: #{tpu_custom_call.1} parent=1 // pred_check
      _
    $region71: #{tpu_custom_call.1} parent=1 // pred_check_branch
      %164 = sbr.rel (0) target = $region73
    $region72: #{tpu_custom_call.1} parent=1 // pred_region
      %165 = dma.done [#allocation12], 96
    $region73: #{tpu_custom_call.1} parent=1 // pred_fallthru
      _
    // Predicated region
    $region74: #{tpu_custom_call.1} parent=1 // pred_check
      _
    $region75: #{tpu_custom_call.1} parent=1 // pred_check_branch
      %167 = sbr.rel (0) target = $region77
    $region76: #{tpu_custom_call.1} parent=1 // pred_region
      %168 = dma.done [#allocation15], 1536
    $region77: #{tpu_custom_call.1} parent=1 // pred_fallthru
      _
    // Predicated region
    $region78: #{tpu_custom_call.1} parent=1 // pred_check
      _
    $region79: #{tpu_custom_call.1} parent=1 // pred_check_branch
      %170 = sbr.rel (0) target = $region81
    $region80: #{tpu_custom_call.1} parent=1 // pred_region
      %171 = dma.done [#allocation15], 1536
    $region81: #{tpu_custom_call.1} parent=1 // pred_fallthru
      _
    // Predicated region
    $region82: #{tpu_custom_call.1} parent=1 // pred_check
      _
    $region83: #{tpu_custom_call.1} parent=1 // pred_check_branch
      %173 = sbr.rel (0) target = $region85
    $region84: #{tpu_custom_call.1} parent=1 // pred_region
      %174 = dma.done [#allocation18], 96
    $region85: #{tpu_custom_call.1} parent=1 // pred_fallthru
      _
    // Predicated region
    $region86: #{tpu_custom_call.1} parent=1 // pred_check
      _
    $region87: #{tpu_custom_call.1} parent=1 // pred_check_branch
      %176 = sbr.rel (0) target = $region89
    $region88: #{tpu_custom_call.1} parent=1 // pred_region
      %177 = dma.done [#allocation18], 96
    $region89: #{tpu_custom_call.1} parent=1 // pred_fallthru
      _
    %v178 = vld [vmem:[#allocation2] sm:$0xff]
    %v179 = vld [vmem:[#allocation2 + $0x8] sm:$0xff]
    %v180 = vld [vmem:[#allocation2 + $0x10] sm:$0xff]
    %v181 = vld [vmem:[#allocation2 + $0x18] sm:$0xff]
    %v182 = vpack.c.bf16 %v180, %v178
    %v183 = vpack.c.bf16 %v181, %v179
    %v184 = vld [vmem:[#allocation5] sm:$0xff]
    %v185 = vld [vmem:[#allocation5 + $0x8] sm:$0xff]
    %v186 = vld [vmem:[#allocation5 + $0x10] sm:$0xff]
    %v187 = vld [vmem:[#allocation5 + $0x18] sm:$0xff]
    %v188 = vld [vmem:[#allocation5 + $0x20] sm:$0xff]
    %v189 = vld [vmem:[#allocation5 + $0x28] sm:$0xff]
    %v190 = vld [vmem:[#allocation5 + $0x30] sm:$0xff]
    %v191 = vld [vmem:[#allocation5 + $0x38] sm:$0xff]
    %v192 = vld [vmem:[#allocation5 + $0x40] sm:$0xff]
    %v193 = vld [vmem:[#allocation5 + $0x48] sm:$0xff]
    %v194 = vld [vmem:[#allocation5 + $0x50] sm:$0xff]
    %v195 = vld [vmem:[#allocation5 + $0x58] sm:$0xff]
    %v196 = vld [vmem:[#allocation5 + $0x60] sm:$0xff]
    %v197 = vld [vmem:[#allocation5 + $0x68] sm:$0xff]
    %v198 = vld [vmem:[#allocation5 + $0x70] sm:$0xff]
    %v199 = vld [vmem:[#allocation5 + $0x78] sm:$0xff]
    %v200 = vld [vmem:[#allocation5 + $0x80] sm:$0xff]
    %v201 = vld [vmem:[#allocation5 + $0x88] sm:$0xff]
    %v202 = vld [vmem:[#allocation5 + $0x90] sm:$0xff]
    %v203 = vld [vmem:[#allocation5 + $0x98] sm:$0xff]
    %v204 = vld [vmem:[#allocation5 + $0xa0] sm:$0xff]
    %v205 = vld [vmem:[#allocation5 + $0xa8] sm:$0xff]
    %v206 = vld [vmem:[#allocation5 + $0xb0] sm:$0xff]
    %v207 = vld [vmem:[#allocation5 + $0xb8] sm:$0xff]
    %v208 = vld [vmem:[#allocation5 + $0xc0] sm:$0xff]
    %v209 = vld [vmem:[#allocation5 + $0xc8] sm:$0xff]
    %v210 = vld [vmem:[#allocation5 + $0xd0] sm:$0xff]
    %v211 = vld [vmem:[#allocation5 + $0xd8] sm:$0xff]
    %v212 = vld [vmem:[#allocation5 + $0xe0] sm:$0xff]
    %v213 = vld [vmem:[#allocation5 + $0xe8] sm:$0xff]
    %v214 = vld [vmem:[#allocation5 + $0xf0] sm:$0xff]
    %v215 = vld [vmem:[#allocation5 + $0xf8] sm:$0xff]
    %v216 = vld [vmem:[#allocation5 + $0x100] sm:$0xff]
    %v217 = vld [vmem:[#allocation5 + $0x108] sm:$0xff]
    %v218 = vld [vmem:[#allocation5 + $0x110] sm:$0xff]
    %v219 = vld [vmem:[#allocation5 + $0x118] sm:$0xff]
    %v220 = vld [vmem:[#allocation5 + $0x120] sm:$0xff]
    %v221 = vld [vmem:[#allocation5 + $0x128] sm:$0xff]
    %v222 = vld [vmem:[#allocation5 + $0x130] sm:$0xff]
    %v223 = vld [vmem:[#allocation5 + $0x138] sm:$0xff]
    %v224 = vld [vmem:[#allocation5 + $0x140] sm:$0xff]
    %v225 = vld [vmem:[#allocation5 + $0x148] sm:$0xff]
    %v226 = vld [vmem:[#allocation5 + $0x150] sm:$0xff]
    %v227 = vld [vmem:[#allocation5 + $0x158] sm:$0xff]
    %v228 = vld [vmem:[#allocation5 + $0x160] sm:$0xff]
    %v229 = vld [vmem:[#allocation5 + $0x168] sm:$0xff]
    %v230 = vld [vmem:[#allocation5 + $0x170] sm:$0xff]
    %v231 = vld [vmem:[#allocation5 + $0x178] sm:$0xff]
    %v232 = vld [vmem:[#allocation5 + $0x180] sm:$0xff]
    %v233 = vld [vmem:[#allocation5 + $0x188] sm:$0xff]
    %v234 = vld [vmem:[#allocation5 + $0x190] sm:$0xff]
    %v235 = vld [vmem:[#allocation5 + $0x198] sm:$0xff]
    %v236 = vld [vmem:[#allocation5 + $0x1a0] sm:$0xff]
    %v237 = vld [vmem:[#allocation5 + $0x1a8] sm:$0xff]
    %v238 = vld [vmem:[#allocation5 + $0x1b0] sm:$0xff]
    %v239 = vld [vmem:[#allocation5 + $0x1b8] sm:$0xff]
    %v240 = vld [vmem:[#allocation5 + $0x1c0] sm:$0xff]
    %v241 = vld [vmem:[#allocation5 + $0x1c8] sm:$0xff]
    %v242 = vld [vmem:[#allocation5 + $0x1d0] sm:$0xff]
    %v243 = vld [vmem:[#allocation5 + $0x1d8] sm:$0xff]
    %v244 = vld [vmem:[#allocation5 + $0x1e0] sm:$0xff]
    %v245 = vld [vmem:[#allocation5 + $0x1e8] sm:$0xff]
    %v246 = vld [vmem:[#allocation5 + $0x1f0] sm:$0xff]
    %v247 = vld [vmem:[#allocation5 + $0x1f8] sm:$0xff]
    %v248 = vld [vmem:[#allocation7] sm:$0xf]
    %v250 = vlaneseq
    %v251 = vshrl.u32 %v250, 7
    %v252 = vsub.s32 0, %v251
    %v253 = vrot.slane %v248, %v252
    %v254 = vlaneseq
    %v255 = vshrl.u32 %v254, 7
    %v256 = vsub.s32 1, %v255
    %v257 = vrot.slane %v248, %v256
    %v258 = vlaneseq
    %v259 = vshrl.u32 %v258, 7
    %v260 = vsub.s32 2, %v259
    %v261 = vrot.slane %v248, %v260
    %v262 = vlaneseq
    %v263 = vshrl.u32 %v262, 7
    %v264 = vsub.s32 3, %v263
    %v265 = vrot.slane %v248, %v264
    %v334 = vunpack.c.l.b16 %v184
    %v335 = vunpack.c.h.b16 %v184
    %v336 = vunpack.c.l.b16 %v185
    %v337 = vunpack.c.h.b16 %v185
    %v338 = vunpack.c.l.b16 %v186
    %v339 = vunpack.c.h.b16 %v186
    %v340 = vunpack.c.l.b16 %v187
    %v341 = vunpack.c.h.b16 %v187
    %v342 = vunpack.c.l.b16 %v188
    %v343 = vunpack.c.h.b16 %v188
    %v344 = vunpack.c.l.b16 %v189
    %v345 = vunpack.c.h.b16 %v189
    %v346 = vunpack.c.l.b16 %v190
    %v347 = vunpack.c.h.b16 %v190
    %v348 = vunpack.c.l.b16 %v191
    %v349 = vunpack.c.h.b16 %v191
    %v350 = vunpack.c.l.b16 %v192
    %v351 = vunpack.c.h.b16 %v192
    %v352 = vunpack.c.l.b16 %v193
    %v353 = vunpack.c.h.b16 %v193
    %v354 = vunpack.c.l.b16 %v194
    %v355 = vunpack.c.h.b16 %v194
    %v356 = vunpack.c.l.b16 %v195
    %v357 = vunpack.c.h.b16 %v195
    %v358 = vunpack.c.l.b16 %v196
    %v359 = vunpack.c.h.b16 %v196
    %v360 = vunpack.c.l.b16 %v197
    %v361 = vunpack.c.h.b16 %v197
    %v362 = vunpack.c.l.b16 %v198
    %v363 = vunpack.c.h.b16 %v198
    %v364 = vunpack.c.l.b16 %v199
    %v365 = vunpack.c.h.b16 %v199
    %v366 = vunpack.c.l.b16 %v200
    %v367 = vunpack.c.h.b16 %v200
    %v368 = vunpack.c.l.b16 %v201
    %v369 = vunpack.c.h.b16 %v201
    %v370 = vunpack.c.l.b16 %v202
    %v371 = vunpack.c.h.b16 %v202
    %v372 = vunpack.c.l.b16 %v203
    %v373 = vunpack.c.h.b16 %v203
    %v374 = vunpack.c.l.b16 %v204
    %v375 = vunpack.c.h.b16 %v204
    %v376 = vunpack.c.l.b16 %v205
    %v377 = vunpack.c.h.b16 %v205
    %v378 = vunpack.c.l.b16 %v206
    %v379 = vunpack.c.h.b16 %v206
    %v380 = vunpack.c.l.b16 %v207
    %v381 = vunpack.c.h.b16 %v207
    %v382 = vunpack.c.l.b16 %v208
    %v383 = vunpack.c.h.b16 %v208
    %v384 = vunpack.c.l.b16 %v209
    %v385 = vunpack.c.h.b16 %v209
    %v386 = vunpack.c.l.b16 %v210
    %v387 = vunpack.c.h.b16 %v210
    %v388 = vunpack.c.l.b16 %v211
    %v389 = vunpack.c.h.b16 %v211
    %v390 = vunpack.c.l.b16 %v212
    %v391 = vunpack.c.h.b16 %v212
    %v392 = vunpack.c.l.b16 %v213
    %v393 = vunpack.c.h.b16 %v213
    %v394 = vunpack.c.l.b16 %v214
    %v395 = vunpack.c.h.b16 %v214
    %v396 = vunpack.c.l.b16 %v215
    %v397 = vunpack.c.h.b16 %v215
    %v398 = vunpack.c.l.b16 %v216
    %v399 = vunpack.c.h.b16 %v216
    %v400 = vunpack.c.l.b16 %v217
    %v401 = vunpack.c.h.b16 %v217
    %v402 = vunpack.c.l.b16 %v218
    %v403 = vunpack.c.h.b16 %v218
    %v404 = vunpack.c.l.b16 %v219
    %v405 = vunpack.c.h.b16 %v219
    %v406 = vunpack.c.l.b16 %v220
    %v407 = vunpack.c.h.b16 %v220
    %v408 = vunpack.c.l.b16 %v221
    %v409 = vunpack.c.h.b16 %v221
    %v410 = vunpack.c.l.b16 %v222
    %v411 = vunpack.c.h.b16 %v222
    %v412 = vunpack.c.l.b16 %v223
    %v413 = vunpack.c.h.b16 %v223
    %v414 = vunpack.c.l.b16 %v224
    %v415 = vunpack.c.h.b16 %v224
    %v416 = vunpack.c.l.b16 %v225
    %v417 = vunpack.c.h.b16 %v225
    %v418 = vunpack.c.l.b16 %v226
    %v419 = vunpack.c.h.b16 %v226
    %v420 = vunpack.c.l.b16 %v227
    %v421 = vunpack.c.h.b16 %v227
    %v422 = vunpack.c.l.b16 %v228
    %v423 = vunpack.c.h.b16 %v228
    %v424 = vunpack.c.l.b16 %v229
    %v425 = vunpack.c.h.b16 %v229
    %v426 = vunpack.c.l.b16 %v230
    %v427 = vunpack.c.h.b16 %v230
    %v428 = vunpack.c.l.b16 %v231
    %v429 = vunpack.c.h.b16 %v231
    %v430 = vunpack.c.l.b16 %v232
    %v431 = vunpack.c.h.b16 %v232
    %v432 = vunpack.c.l.b16 %v233
    %v433 = vunpack.c.h.b16 %v233
    %v434 = vunpack.c.l.b16 %v234
    %v435 = vunpack.c.h.b16 %v234
    %v436 = vunpack.c.l.b16 %v235
    %v437 = vunpack.c.h.b16 %v235
    %v438 = vunpack.c.l.b16 %v236
    %v439 = vunpack.c.h.b16 %v236
    %v440 = vunpack.c.l.b16 %v237
    %v441 = vunpack.c.h.b16 %v237
    %v442 = vunpack.c.l.b16 %v238
    %v443 = vunpack.c.h.b16 %v238
    %v444 = vunpack.c.l.b16 %v239
    %v445 = vunpack.c.h.b16 %v239
    %v446 = vunpack.c.l.b16 %v240
    %v447 = vunpack.c.h.b16 %v240
    %v448 = vunpack.c.l.b16 %v241
    %v449 = vunpack.c.h.b16 %v241
    %v450 = vunpack.c.l.b16 %v242
    %v451 = vunpack.c.h.b16 %v242
    %v452 = vunpack.c.l.b16 %v243
    %v453 = vunpack.c.h.b16 %v243
    %v454 = vunpack.c.l.b16 %v244
    %v455 = vunpack.c.h.b16 %v244
    %v456 = vunpack.c.l.b16 %v245
    %v457 = vunpack.c.h.b16 %v245
    %v458 = vunpack.c.l.b16 %v246
    %v459 = vunpack.c.h.b16 %v246
    %v460 = vunpack.c.l.b16 %v247
    %v461 = vunpack.c.h.b16 %v247
    %v462 = vpack.c.b16 %v338, %v334
    %v463 = vpack.c.b16 %v339, %v335
    %v464 = vpack.c.b16 %v340, %v336
    %v465 = vpack.c.b16 %v341, %v337
    %v466 = vpack.c.b16 %v346, %v342
    %v467 = vpack.c.b16 %v347, %v343
    %v468 = vpack.c.b16 %v348, %v344
    %v469 = vpack.c.b16 %v349, %v345
    %v470 = vpack.c.b16 %v354, %v350
    %v471 = vpack.c.b16 %v355, %v351
    %v472 = vpack.c.b16 %v356, %v352
    %v473 = vpack.c.b16 %v357, %v353
    %v474 = vpack.c.b16 %v362, %v358
    %v475 = vpack.c.b16 %v363, %v359
    %v476 = vpack.c.b16 %v364, %v360
    %v477 = vpack.c.b16 %v365, %v361
    %v478 = vpack.c.b16 %v370, %v366
    %v479 = vpack.c.b16 %v371, %v367
    %v480 = vpack.c.b16 %v372, %v368
    %v481 = vpack.c.b16 %v373, %v369
    %v482 = vpack.c.b16 %v378, %v374
    %v483 = vpack.c.b16 %v379, %v375
    %v484 = vpack.c.b16 %v380, %v376
    %v485 = vpack.c.b16 %v381, %v377
    %v486 = vpack.c.b16 %v386, %v382
    %v487 = vpack.c.b16 %v387, %v383
    %v488 = vpack.c.b16 %v388, %v384
    %v489 = vpack.c.b16 %v389, %v385
    %v490 = vpack.c.b16 %v394, %v390
    %v491 = vpack.c.b16 %v395, %v391
    %v492 = vpack.c.b16 %v396, %v392
    %v493 = vpack.c.b16 %v397, %v393
    %v494 = vpack.c.b16 %v402, %v398
    %v495 = vpack.c.b16 %v403, %v399
    %v496 = vpack.c.b16 %v404, %v400
    %v497 = vpack.c.b16 %v405, %v401
    %v498 = vpack.c.b16 %v410, %v406
    %v499 = vpack.c.b16 %v411, %v407
    %v500 = vpack.c.b16 %v412, %v408
    %v501 = vpack.c.b16 %v413, %v409
    %v502 = vpack.c.b16 %v418, %v414
    %v503 = vpack.c.b16 %v419, %v415
    %v504 = vpack.c.b16 %v420, %v416
    %v505 = vpack.c.b16 %v421, %v417
    %v506 = vpack.c.b16 %v426, %v422
    %v507 = vpack.c.b16 %v427, %v423
    %v508 = vpack.c.b16 %v428, %v424
    %v509 = vpack.c.b16 %v429, %v425
    %v510 = vpack.c.b16 %v434, %v430
    %v511 = vpack.c.b16 %v435, %v431
    %v512 = vpack.c.b16 %v436, %v432
    %v513 = vpack.c.b16 %v437, %v433
    %v514 = vpack.c.b16 %v442, %v438
    %v515 = vpack.c.b16 %v443, %v439
    %v516 = vpack.c.b16 %v444, %v440
    %v517 = vpack.c.b16 %v445, %v441
    %v518 = vpack.c.b16 %v450, %v446
    %v519 = vpack.c.b16 %v451, %v447
    %v520 = vpack.c.b16 %v452, %v448
    %v521 = vpack.c.b16 %v453, %v449
    %v522 = vpack.c.b16 %v458, %v454
    %v523 = vpack.c.b16 %v459, %v455
    %v524 = vpack.c.b16 %v460, %v456
    %v525 = vpack.c.b16 %v461, %v457
    %590 = vmatprep.subr.bf16.mxu0 %v463
    %591 = vmatpush1.bf16.msra.mxu0 %v462
    %592 = vmatprep.subr.bf16.mxu0 %v467
    %593 = vmatpush1.bf16.msra.mxu0 %v466
    %594 = vmatprep.subr.bf16.mxu0 %v471
    %595 = vmatpush1.bf16.msra.mxu0 %v470
    %596 = vmatprep.subr.bf16.mxu0 %v475
    %597 = vmatpush1.bf16.msra.mxu0 %v474
    %598 = vmatprep.subr.bf16.mxu0 %v479
    %599 = vmatpush1.bf16.msra.mxu0 %v478
    %600 = vmatprep.subr.bf16.mxu0 %v483
    %601 = vmatpush1.bf16.msra.mxu0 %v482
    %602 = vmatprep.subr.bf16.mxu0 %v487
    %603 = vmatpush1.bf16.msra.mxu0 %v486
    %604 = vmatprep.subr.bf16.mxu0 %v491
    %605 = vmatpush1.bf16.msra.mxu0 %v490
    %606 = vmatprep.subr.bf16.mxu0 %v495
    %607 = vmatpush1.bf16.msra.mxu0 %v494
    %608 = vmatprep.subr.bf16.mxu0 %v499
    %609 = vmatpush1.bf16.msra.mxu0 %v498
    %610 = vmatprep.subr.bf16.mxu0 %v503
    %611 = vmatpush1.bf16.msra.mxu0 %v502
    %612 = vmatprep.subr.bf16.mxu0 %v507
    %613 = vmatpush1.bf16.msra.mxu0 %v506
    %614 = vmatprep.subr.bf16.mxu0 %v511
    %615 = vmatpush1.bf16.msra.mxu0 %v510
    %616 = vmatprep.subr.bf16.mxu0 %v515
    %617 = vmatpush1.bf16.msra.mxu0 %v514
    %618 = vmatprep.subr.bf16.mxu0 %v519
    %619 = vmatpush1.bf16.msra.mxu0 %v518
    %620 = vmatprep.subr.bf16.mxu0 %v523
    %621 = vmatpush1.bf16.msra.mxu0 %v522
    %622 = vmatprep.mubr.bf16.mxu0 %v183
    %623 = vmatmul.mubr.bf16.gmra.mrb[0].mxu0 %v182
    %v624 = vpop.f32.mrb[0].mxu0
    %v625 = vadd.f32 %v253, %v624
    %v626 = vpop.f32.mrb[0].mxu0
    %v627 = vadd.f32 %v257, %v626
    %v628 = vpop.f32.mrb[0].mxu0
    %v629 = vadd.f32 %v253, %v628
    %v630 = vpop.f32.mrb[0].mxu0
    %v631 = vadd.f32 %v257, %v630
    %632 = vdwg.mxu0
    %633 = vmatprep.subr.bf16.mxu0 %v465
    %634 = vmatpush1.bf16.msra.mxu0 %v464
    %635 = vmatprep.subr.bf16.mxu0 %v469
    %636 = vmatpush1.bf16.msra.mxu0 %v468
    %637 = vmatprep.subr.bf16.mxu0 %v473
    %638 = vmatpush1.bf16.msra.mxu0 %v472
    %639 = vmatprep.subr.bf16.mxu0 %v477
    %640 = vmatpush1.bf16.msra.mxu0 %v476
    %641 = vmatprep.subr.bf16.mxu0 %v481
    %642 = vmatpush1.bf16.msra.mxu0 %v480
    %643 = vmatprep.subr.bf16.mxu0 %v485
    %644 = vmatpush1.bf16.msra.mxu0 %v484
    %645 = vmatprep.subr.bf16.mxu0 %v489
    %646 = vmatpush1.bf16.msra.mxu0 %v488
    %647 = vmatprep.subr.bf16.mxu0 %v493
    %648 = vmatpush1.bf16.msra.mxu0 %v492
    %649 = vmatprep.subr.bf16.mxu0 %v497
    %650 = vmatpush1.bf16.msra.mxu0 %v496
    %651 = vmatprep.subr.bf16.mxu0 %v501
    %652 = vmatpush1.bf16.msra.mxu0 %v500
    %653 = vmatprep.subr.bf16.mxu0 %v505
    %654 = vmatpush1.bf16.msra.mxu0 %v504
    %655 = vmatprep.subr.bf16.mxu0 %v509
    %656 = vmatpush1.bf16.msra.mxu0 %v508
    %657 = vmatprep.subr.bf16.mxu0 %v513
    %658 = vmatpush1.bf16.msra.mxu0 %v512
    %659 = vmatprep.subr.bf16.mxu0 %v517
    %660 = vmatpush1.bf16.msra.mxu0 %v516
    %661 = vmatprep.subr.bf16.mxu0 %v521
    %662 = vmatpush1.bf16.msra.mxu0 %v520
    %663 = vmatprep.subr.bf16.mxu0 %v525
    %664 = vmatpush1.bf16.msra.mxu0 %v524
    %665 = vmatprep.mubr.bf16.mxu0 %v183
    %666 = vmatmul.mubr.bf16.gmra.mrb[0].mxu0 %v182
    %v667 = vpop.f32.mrb[0].mxu0
    %v668 = vadd.f32 %v261, %v667
    %v669 = vpop.f32.mrb[0].mxu0
    %v670 = vadd.f32 %v265, %v669
    %v671 = vpop.f32.mrb[0].mxu0
    %v672 = vadd.f32 %v261, %v671
    %v673 = vpop.f32.mrb[0].mxu0
    %v674 = vadd.f32 %v265, %v673
    %675 = vdwg.mxu0
    %v676 = vmax.f32 %v625, 0.0
    %v677 = vmax.f32 %v627, 0.0
    %v678 = vmax.f32 %v668, 0.0
    %v679 = vmax.f32 %v670, 0.0
    %v680 = vmax.f32 %v629, 0.0
    %v681 = vmax.f32 %v631, 0.0
    %v682 = vmax.f32 %v672, 0.0
    %v683 = vmax.f32 %v674, 0.0
    %v684 = vpack.c.bf16 %v680, %v676
    %v685 = vpack.c.bf16 %v681, %v677
    %v686 = vpack.c.bf16 %v682, %v678
    %v687 = vpack.c.bf16 %v683, %v679
    %v688 = vld [vmem:[#allocation8] sm:$0xff]
    %v689 = vld [vmem:[#allocation8 + $0x8] sm:$0xff]
    %v690 = vld [vmem:[#allocation8 + $0x10] sm:$0xff]
    %v691 = vld [vmem:[#allocation8 + $0x18] sm:$0xff]
    %v692 = vld [vmem:[#allocation8 + $0x20] sm:$0xff]
    %v693 = vld [vmem:[#allocation8 + $0x28] sm:$0xff]
    %v694 = vld [vmem:[#allocation8 + $0x30] sm:$0xff]
    %v695 = vld [vmem:[#allocation8 + $0x38] sm:$0xff]
    %v696 = vld [vmem:[#allocation8 + $0x40] sm:$0xff]
    %v697 = vld [vmem:[#allocation8 + $0x48] sm:$0xff]
    %v698 = vld [vmem:[#allocation8 + $0x50] sm:$0xff]
    %v699 = vld [vmem:[#allocation8 + $0x58] sm:$0xff]
    %v700 = vld [vmem:[#allocation8 + $0x60] sm:$0xff]
    %v701 = vld [vmem:[#allocation8 + $0x68] sm:$0xff]
    %v702 = vld [vmem:[#allocation8 + $0x70] sm:$0xff]
    %v703 = vld [vmem:[#allocation8 + $0x78] sm:$0xff]
    %v704 = vld [vmem:[#allocation8 + $0x80] sm:$0xff]
    %v705 = vld [vmem:[#allocation8 + $0x88] sm:$0xff]
    %v706 = vld [vmem:[#allocation8 + $0x90] sm:$0xff]
    %v707 = vld [vmem:[#allocation8 + $0x98] sm:$0xff]
    %v708 = vld [vmem:[#allocation8 + $0xa0] sm:$0xff]
    %v709 = vld [vmem:[#allocation8 + $0xa8] sm:$0xff]
    %v710 = vld [vmem:[#allocation8 + $0xb0] sm:$0xff]
    %v711 = vld [vmem:[#allocation8 + $0xb8] sm:$0xff]
    %v712 = vld [vmem:[#allocation8 + $0xc0] sm:$0xff]
    %v713 = vld [vmem:[#allocation8 + $0xc8] sm:$0xff]
    %v714 = vld [vmem:[#allocation8 + $0xd0] sm:$0xff]
    %v715 = vld [vmem:[#allocation8 + $0xd8] sm:$0xff]
    %v716 = vld [vmem:[#allocation8 + $0xe0] sm:$0xff]
    %v717 = vld [vmem:[#allocation8 + $0xe8] sm:$0xff]
    %v718 = vld [vmem:[#allocation8 + $0xf0] sm:$0xff]
    %v719 = vld [vmem:[#allocation8 + $0xf8] sm:$0xff]
    %v720 = vld [vmem:[#allocation8 + $0x100] sm:$0xff]
    %v721 = vld [vmem:[#allocation8 + $0x108] sm:$0xff]
    %v722 = vld [vmem:[#allocation8 + $0x110] sm:$0xff]
    %v723 = vld [vmem:[#allocation8 + $0x118] sm:$0xff]
    %v724 = vld [vmem:[#allocation8 + $0x120] sm:$0xff]
    %v725 = vld [vmem:[#allocation8 + $0x128] sm:$0xff]
    %v726 = vld [vmem:[#allocation8 + $0x130] sm:$0xff]
    %v727 = vld [vmem:[#allocation8 + $0x138] sm:$0xff]
    %v728 = vld [vmem:[#allocation8 + $0x140] sm:$0xff]
    %v729 = vld [vmem:[#allocation8 + $0x148] sm:$0xff]
    %v730 = vld [vmem:[#allocation8 + $0x150] sm:$0xff]
    %v731 = vld [vmem:[#allocation8 + $0x158] sm:$0xff]
    %v732 = vld [vmem:[#allocation8 + $0x160] sm:$0xff]
    %v733 = vld [vmem:[#allocation8 + $0x168] sm:$0xff]
    %v734 = vld [vmem:[#allocation8 + $0x170] sm:$0xff]
    %v735 = vld [vmem:[#allocation8 + $0x178] sm:$0xff]
    %v736 = vld [vmem:[#allocation8 + $0x180] sm:$0xff]
    %v737 = vld [vmem:[#allocation8 + $0x188] sm:$0xff]
    %v738 = vld [vmem:[#allocation8 + $0x190] sm:$0xff]
    %v739 = vld [vmem:[#allocation8 + $0x198] sm:$0xff]
    %v740 = vld [vmem:[#allocation8 + $0x1a0] sm:$0xff]
    %v741 = vld [vmem:[#allocation8 + $0x1a8] sm:$0xff]
    %v742 = vld [vmem:[#allocation8 + $0x1b0] sm:$0xff]
    %v743 = vld [vmem:[#allocation8 + $0x1b8] sm:$0xff]
    %v744 = vld [vmem:[#allocation8 + $0x1c0] sm:$0xff]
    %v745 = vld [vmem:[#allocation8 + $0x1c8] sm:$0xff]
    %v746 = vld [vmem:[#allocation8 + $0x1d0] sm:$0xff]
    %v747 = vld [vmem:[#allocation8 + $0x1d8] sm:$0xff]
    %v748 = vld [vmem:[#allocation8 + $0x1e0] sm:$0xff]
    %v749 = vld [vmem:[#allocation8 + $0x1e8] sm:$0xff]
    %v750 = vld [vmem:[#allocation8 + $0x1f0] sm:$0xff]
    %v751 = vld [vmem:[#allocation8 + $0x1f8] sm:$0xff]
    %v752 = vld [vmem:[#allocation8 + $0x200] sm:$0xff]
    %v753 = vld [vmem:[#allocation8 + $0x208] sm:$0xff]
    %v754 = vld [vmem:[#allocation8 + $0x210] sm:$0xff]
    %v755 = vld [vmem:[#allocation8 + $0x218] sm:$0xff]
    %v756 = vld [vmem:[#allocation8 + $0x220] sm:$0xff]
    %v757 = vld [vmem:[#allocation8 + $0x228] sm:$0xff]
    %v758 = vld [vmem:[#allocation8 + $0x230] sm:$0xff]
    %v759 = vld [vmem:[#allocation8 + $0x238] sm:$0xff]
    %v760 = vld [vmem:[#allocation8 + $0x240] sm:$0xff]
    %v761 = vld [vmem:[#allocation8 + $0x248] sm:$0xff]
    %v762 = vld [vmem:[#allocation8 + $0x250] sm:$0xff]
    %v763 = vld [vmem:[#allocation8 + $0x258] sm:$0xff]
    %v764 = vld [vmem:[#allocation8 + $0x260] sm:$0xff]
    %v765 = vld [vmem:[#allocation8 + $0x268] sm:$0xff]
    %v766 = vld [vmem:[#allocation8 + $0x270] sm:$0xff]
    %v767 = vld [vmem:[#allocation8 + $0x278] sm:$0xff]
    %v768 = vld [vmem:[#allocation8 + $0x280] sm:$0xff]
    %v769 = vld [vmem:[#allocation8 + $0x288] sm:$0xff]
    %v770 = vld [vmem:[#allocation8 + $0x290] sm:$0xff]
    %v771 = vld [vmem:[#allocation8 + $0x298] sm:$0xff]
    %v772 = vld [vmem:[#allocation8 + $0x2a0] sm:$0xff]
    %v773 = vld [vmem:[#allocation8 + $0x2a8] sm:$0xff]
    %v774 = vld [vmem:[#allocation8 + $0x2b0] sm:$0xff]
    %v775 = vld [vmem:[#allocation8 + $0x2b8] sm:$0xff]
    %v776 = vld [vmem:[#allocation8 + $0x2c0] sm:$0xff]
    %v777 = vld [vmem:[#allocation8 + $0x2c8] sm:$0xff]
    %v778 = vld [vmem:[#allocation8 + $0x2d0] sm:$0xff]
    %v779 = vld [vmem:[#allocation8 + $0x2d8] sm:$0xff]
    %v780 = vld [vmem:[#allocation8 + $0x2e0] sm:$0xff]
    %v781 = vld [vmem:[#allocation8 + $0x2e8] sm:$0xff]
    %v782 = vld [vmem:[#allocation8 + $0x2f0] sm:$0xff]
    %v783 = vld [vmem:[#allocation8 + $0x2f8] sm:$0xff]
    %v784 = vld [vmem:[#allocation8 + $0x300] sm:$0xff]
    %v785 = vld [vmem:[#allocation8 + $0x308] sm:$0xff]
    %v786 = vld [vmem:[#allocation8 + $0x310] sm:$0xff]
    %v787 = vld [vmem:[#allocation8 + $0x318] sm:$0xff]
    %v788 = vld [vmem:[#allocation8 + $0x320] sm:$0xff]
    %v789 = vld [vmem:[#allocation8 + $0x328] sm:$0xff]
    %v790 = vld [vmem:[#allocation8 + $0x330] sm:$0xff]
    %v791 = vld [vmem:[#allocation8 + $0x338] sm:$0xff]
    %v792 = vld [vmem:[#allocation8 + $0x340] sm:$0xff]
    %v793 = vld [vmem:[#allocation8 + $0x348] sm:$0xff]
    %v794 = vld [vmem:[#allocation8 + $0x350] sm:$0xff]
    %v795 = vld [vmem:[#allocation8 + $0x358] sm:$0xff]
    %v796 = vld [vmem:[#allocation8 + $0x360] sm:$0xff]
    %v797 = vld [vmem:[#allocation8 + $0x368] sm:$0xff]
    %v798 = vld [vmem:[#allocation8 + $0x370] sm:$0xff]
    %v799 = vld [vmem:[#allocation8 + $0x378] sm:$0xff]
    %v800 = vld [vmem:[#allocation8 + $0x380] sm:$0xff]
    %v801 = vld [vmem:[#allocation8 + $0x388] sm:$0xff]
    %v802 = vld [vmem:[#allocation8 + $0x390] sm:$0xff]
    %v803 = vld [vmem:[#allocation8 + $0x398] sm:$0xff]
    %v804 = vld [vmem:[#allocation8 + $0x3a0] sm:$0xff]
    %v805 = vld [vmem:[#allocation8 + $0x3a8] sm:$0xff]
    %v806 = vld [vmem:[#allocation8 + $0x3b0] sm:$0xff]
    %v807 = vld [vmem:[#allocation8 + $0x3b8] sm:$0xff]
    %v808 = vld [vmem:[#allocation8 + $0x3c0] sm:$0xff]
    %v809 = vld [vmem:[#allocation8 + $0x3c8] sm:$0xff]
    %v810 = vld [vmem:[#allocation8 + $0x3d0] sm:$0xff]
    %v811 = vld [vmem:[#allocation8 + $0x3d8] sm:$0xff]
    %v812 = vld [vmem:[#allocation8 + $0x3e0] sm:$0xff]
    %v813 = vld [vmem:[#allocation8 + $0x3e8] sm:$0xff]
    %v814 = vld [vmem:[#allocation8 + $0x3f0] sm:$0xff]
    %v815 = vld [vmem:[#allocation8 + $0x3f8] sm:$0xff]
    %v816 = vld [vmem:[#allocation8 + $0x400] sm:$0xff]
    %v817 = vld [vmem:[#allocation8 + $0x408] sm:$0xff]
    %v818 = vld [vmem:[#allocation8 + $0x410] sm:$0xff]
    %v819 = vld [vmem:[#allocation8 + $0x418] sm:$0xff]
    %v820 = vld [vmem:[#allocation8 + $0x420] sm:$0xff]
    %v821 = vld [vmem:[#allocation8 + $0x428] sm:$0xff]
    %v822 = vld [vmem:[#allocation8 + $0x430] sm:$0xff]
    %v823 = vld [vmem:[#allocation8 + $0x438] sm:$0xff]
    %v824 = vld [vmem:[#allocation8 + $0x440] sm:$0xff]
    %v825 = vld [vmem:[#allocation8 + $0x448] sm:$0xff]
    %v826 = vld [vmem:[#allocation8 + $0x450] sm:$0xff]
    %v827 = vld [vmem:[#allocation8 + $0x458] sm:$0xff]
    %v828 = vld [vmem:[#allocation8 + $0x460] sm:$0xff]
    %v829 = vld [vmem:[#allocation8 + $0x468] sm:$0xff]
    %v830 = vld [vmem:[#allocation8 + $0x470] sm:$0xff]
    %v831 = vld [vmem:[#allocation8 + $0x478] sm:$0xff]
    %v832 = vld [vmem:[#allocation8 + $0x480] sm:$0xff]
    %v833 = vld [vmem:[#allocation8 + $0x488] sm:$0xff]
    %v834 = vld [vmem:[#allocation8 + $0x490] sm:$0xff]
    %v835 = vld [vmem:[#allocation8 + $0x498] sm:$0xff]
    %v836 = vld [vmem:[#allocation8 + $0x4a0] sm:$0xff]
    %v837 = vld [vmem:[#allocation8 + $0x4a8] sm:$0xff]
    %v838 = vld [vmem:[#allocation8 + $0x4b0] sm:$0xff]
    %v839 = vld [vmem:[#allocation8 + $0x4b8] sm:$0xff]
    %v840 = vld [vmem:[#allocation8 + $0x4c0] sm:$0xff]
    %v841 = vld [vmem:[#allocation8 + $0x4c8] sm:$0xff]
    %v842 = vld [vmem:[#allocation8 + $0x4d0] sm:$0xff]
    %v843 = vld [vmem:[#allocation8 + $0x4d8] sm:$0xff]
    %v844 = vld [vmem:[#allocation8 + $0x4e0] sm:$0xff]
    %v845 = vld [vmem:[#allocation8 + $0x4e8] sm:$0xff]
    %v846 = vld [vmem:[#allocation8 + $0x4f0] sm:$0xff]
    %v847 = vld [vmem:[#allocation8 + $0x4f8] sm:$0xff]
    %v848 = vld [vmem:[#allocation8 + $0x500] sm:$0xff]
    %v849 = vld [vmem:[#allocation8 + $0x508] sm:$0xff]
    %v850 = vld [vmem:[#allocation8 + $0x510] sm:$0xff]
    %v851 = vld [vmem:[#allocation8 + $0x518] sm:$0xff]
    %v852 = vld [vmem:[#allocation8 + $0x520] sm:$0xff]
    %v853 = vld [vmem:[#allocation8 + $0x528] sm:$0xff]
    %v854 = vld [vmem:[#allocation8 + $0x530] sm:$0xff]
    %v855 = vld [vmem:[#allocation8 + $0x538] sm:$0xff]
    %v856 = vld [vmem:[#allocation8 + $0x540] sm:$0xff]
    %v857 = vld [vmem:[#allocation8 + $0x548] sm:$0xff]
    %v858 = vld [vmem:[#allocation8 + $0x550] sm:$0xff]
    %v859 = vld [vmem:[#allocation8 + $0x558] sm:$0xff]
    %v860 = vld [vmem:[#allocation8 + $0x560] sm:$0xff]
    %v861 = vld [vmem:[#allocation8 + $0x568] sm:$0xff]
    %v862 = vld [vmem:[#allocation8 + $0x570] sm:$0xff]
    %v863 = vld [vmem:[#allocation8 + $0x578] sm:$0xff]
    %v864 = vld [vmem:[#allocation8 + $0x580] sm:$0xff]
    %v865 = vld [vmem:[#allocation8 + $0x588] sm:$0xff]
    %v866 = vld [vmem:[#allocation8 + $0x590] sm:$0xff]
    %v867 = vld [vmem:[#allocation8 + $0x598] sm:$0xff]
    %v868 = vld [vmem:[#allocation8 + $0x5a0] sm:$0xff]
    %v869 = vld [vmem:[#allocation8 + $0x5a8] sm:$0xff]
    %v870 = vld [vmem:[#allocation8 + $0x5b0] sm:$0xff]
    %v871 = vld [vmem:[#allocation8 + $0x5b8] sm:$0xff]
    %v872 = vld [vmem:[#allocation8 + $0x5c0] sm:$0xff]
    %v873 = vld [vmem:[#allocation8 + $0x5c8] sm:$0xff]
    %v874 = vld [vmem:[#allocation8 + $0x5d0] sm:$0xff]
    %v875 = vld [vmem:[#allocation8 + $0x5d8] sm:$0xff]
    %v876 = vld [vmem:[#allocation8 + $0x5e0] sm:$0xff]
    %v877 = vld [vmem:[#allocation8 + $0x5e8] sm:$0xff]
    %v878 = vld [vmem:[#allocation8 + $0x5f0] sm:$0xff]
    %v879 = vld [vmem:[#allocation8 + $0x5f8] sm:$0xff]
    %v880 = vld [vmem:[#allocation8 + $0x600] sm:$0xff]
    %v881 = vld [vmem:[#allocation8 + $0x608] sm:$0xff]
    %v882 = vld [vmem:[#allocation8 + $0x610] sm:$0xff]
    %v883 = vld [vmem:[#allocation8 + $0x618] sm:$0xff]
    %v884 = vld [vmem:[#allocation8 + $0x620] sm:$0xff]
    %v885 = vld [vmem:[#allocation8 + $0x628] sm:$0xff]
    %v886 = vld [vmem:[#allocation8 + $0x630] sm:$0xff]
    %v887 = vld [vmem:[#allocation8 + $0x638] sm:$0xff]
    %v888 = vld [vmem:[#allocation8 + $0x640] sm:$0xff]
    %v889 = vld [vmem:[#allocation8 + $0x648] sm:$0xff]
    %v890 = vld [vmem:[#allocation8 + $0x650] sm:$0xff]
    %v891 = vld [vmem:[#allocation8 + $0x658] sm:$0xff]
    %v892 = vld [vmem:[#allocation8 + $0x660] sm:$0xff]
    %v893 = vld [vmem:[#allocation8 + $0x668] sm:$0xff]
    %v894 = vld [vmem:[#allocation8 + $0x670] sm:$0xff]
    %v895 = vld [vmem:[#allocation8 + $0x678] sm:$0xff]
    %v896 = vld [vmem:[#allocation8 + $0x680] sm:$0xff]
    %v897 = vld [vmem:[#allocation8 + $0x688] sm:$0xff]
    %v898 = vld [vmem:[#allocation8 + $0x690] sm:$0xff]
    %v899 = vld [vmem:[#allocation8 + $0x698] sm:$0xff]
    %v900 = vld [vmem:[#allocation8 + $0x6a0] sm:$0xff]
    %v901 = vld [vmem:[#allocation8 + $0x6a8] sm:$0xff]
    %v902 = vld [vmem:[#allocation8 + $0x6b0] sm:$0xff]
    %v903 = vld [vmem:[#allocation8 + $0x6b8] sm:$0xff]
    %v904 = vld [vmem:[#allocation8 + $0x6c0] sm:$0xff]
    %v905 = vld [vmem:[#allocation8 + $0x6c8] sm:$0xff]
    %v906 = vld [vmem:[#allocation8 + $0x6d0] sm:$0xff]
    %v907 = vld [vmem:[#allocation8 + $0x6d8] sm:$0xff]
    %v908 = vld [vmem:[#allocation8 + $0x6e0] sm:$0xff]
    %v909 = vld [vmem:[#allocation8 + $0x6e8] sm:$0xff]
    %v910 = vld [vmem:[#allocation8 + $0x6f0] sm:$0xff]
    %v911 = vld [vmem:[#allocation8 + $0x6f8] sm:$0xff]
    %v912 = vld [vmem:[#allocation8 + $0x700] sm:$0xff]
    %v913 = vld [vmem:[#allocation8 + $0x708] sm:$0xff]
    %v914 = vld [vmem:[#allocation8 + $0x710] sm:$0xff]
    %v915 = vld [vmem:[#allocation8 + $0x718] sm:$0xff]
    %v916 = vld [vmem:[#allocation8 + $0x720] sm:$0xff]
    %v917 = vld [vmem:[#allocation8 + $0x728] sm:$0xff]
    %v918 = vld [vmem:[#allocation8 + $0x730] sm:$0xff]
    %v919 = vld [vmem:[#allocation8 + $0x738] sm:$0xff]
    %v920 = vld [vmem:[#allocation8 + $0x740] sm:$0xff]
    %v921 = vld [vmem:[#allocation8 + $0x748] sm:$0xff]
    %v922 = vld [vmem:[#allocation8 + $0x750] sm:$0xff]
    %v923 = vld [vmem:[#allocation8 + $0x758] sm:$0xff]
    %v924 = vld [vmem:[#allocation8 + $0x760] sm:$0xff]
    %v925 = vld [vmem:[#allocation8 + $0x768] sm:$0xff]
    %v926 = vld [vmem:[#allocation8 + $0x770] sm:$0xff]
    %v927 = vld [vmem:[#allocation8 + $0x778] sm:$0xff]
    %v928 = vld [vmem:[#allocation8 + $0x780] sm:$0xff]
    %v929 = vld [vmem:[#allocation8 + $0x788] sm:$0xff]
    %v930 = vld [vmem:[#allocation8 + $0x790] sm:$0xff]
    %v931 = vld [vmem:[#allocation8 + $0x798] sm:$0xff]
    %v932 = vld [vmem:[#allocation8 + $0x7a0] sm:$0xff]
    %v933 = vld [vmem:[#allocation8 + $0x7a8] sm:$0xff]
    %v934 = vld [vmem:[#allocation8 + $0x7b0] sm:$0xff]
    %v935 = vld [vmem:[#allocation8 + $0x7b8] sm:$0xff]
    %v936 = vld [vmem:[#allocation8 + $0x7c0] sm:$0xff]
    %v937 = vld [vmem:[#allocation8 + $0x7c8] sm:$0xff]
    %v938 = vld [vmem:[#allocation8 + $0x7d0] sm:$0xff]
    %v939 = vld [vmem:[#allocation8 + $0x7d8] sm:$0xff]
    %v940 = vld [vmem:[#allocation8 + $0x7e0] sm:$0xff]
    %v941 = vld [vmem:[#allocation8 + $0x7e8] sm:$0xff]
    %v942 = vld [vmem:[#allocation8 + $0x7f0] sm:$0xff]
    %v943 = vld [vmem:[#allocation8 + $0x7f8] sm:$0xff]
    %v944 = vld [vmem:[#allocation10] sm:$0xff]
    %v946 = vlaneseq
    %v947 = vshrl.u32 %v946, 7
    %v948 = vsub.s32 0, %v947
    %v949 = vrot.slane %v944, %v948
    %v950 = vlaneseq
    %v951 = vshrl.u32 %v950, 7
    %v952 = vsub.s32 1, %v951
    %v953 = vrot.slane %v944, %v952
    %v954 = vlaneseq
    %v955 = vshrl.u32 %v954, 7
    %v956 = vsub.s32 2, %v955
    %v957 = vrot.slane %v944, %v956
    %v958 = vlaneseq
    %v959 = vshrl.u32 %v958, 7
    %v960 = vsub.s32 3, %v959
    %v961 = vrot.slane %v944, %v960
    %v962 = vlaneseq
    %v963 = vshrl.u32 %v962, 7
    %v964 = vsub.s32 4, %v963
    %v965 = vrot.slane %v944, %v964
    %v966 = vlaneseq
    %v967 = vshrl.u32 %v966, 7
    %v968 = vsub.s32 5, %v967
    %v969 = vrot.slane %v944, %v968
    %v970 = vlaneseq
    %v971 = vshrl.u32 %v970, 7
    %v972 = vsub.s32 6, %v971
    %v973 = vrot.slane %v944, %v972
    %v974 = vlaneseq
    %v975 = vshrl.u32 %v974, 7
    %v976 = vsub.s32 7, %v975
    %v977 = vrot.slane %v944, %v976
    %v1242 = vunpack.c.l.b16 %v688
    %v1243 = vunpack.c.h.b16 %v688
    %v1244 = vunpack.c.l.b16 %v689
    %v1245 = vunpack.c.h.b16 %v689
    %v1246 = vunpack.c.l.b16 %v690
    %v1247 = vunpack.c.h.b16 %v690
    %v1248 = vunpack.c.l.b16 %v691
    %v1249 = vunpack.c.h.b16 %v691
    %v1250 = vunpack.c.l.b16 %v692
    %v1251 = vunpack.c.h.b16 %v692
    %v1252 = vunpack.c.l.b16 %v693
    %v1253 = vunpack.c.h.b16 %v693
    %v1254 = vunpack.c.l.b16 %v694
    %v1255 = vunpack.c.h.b16 %v694
    %v1256 = vunpack.c.l.b16 %v695
    %v1257 = vunpack.c.h.b16 %v695
    %v1258 = vunpack.c.l.b16 %v696
    %v1259 = vunpack.c.h.b16 %v696
    %v1260 = vunpack.c.l.b16 %v697
    %v1261 = vunpack.c.h.b16 %v697
    %v1262 = vunpack.c.l.b16 %v698
    %v1263 = vunpack.c.h.b16 %v698
    %v1264 = vunpack.c.l.b16 %v699
    %v1265 = vunpack.c.h.b16 %v699
    %v1266 = vunpack.c.l.b16 %v700
    %v1267 = vunpack.c.h.b16 %v700
    %v1268 = vunpack.c.l.b16 %v701
    %v1269 = vunpack.c.h.b16 %v701
    %v1270 = vunpack.c.l.b16 %v702
    %v1271 = vunpack.c.h.b16 %v702
    %v1272 = vunpack.c.l.b16 %v703
    %v1273 = vunpack.c.h.b16 %v703
    %v1274 = vunpack.c.l.b16 %v704
    %v1275 = vunpack.c.h.b16 %v704
    %v1276 = vunpack.c.l.b16 %v705
    %v1277 = vunpack.c.h.b16 %v705
    %v1278 = vunpack.c.l.b16 %v706
    %v1279 = vunpack.c.h.b16 %v706
    %v1280 = vunpack.c.l.b16 %v707
    %v1281 = vunpack.c.h.b16 %v707
    %v1282 = vunpack.c.l.b16 %v708
    %v1283 = vunpack.c.h.b16 %v708
    %v1284 = vunpack.c.l.b16 %v709
    %v1285 = vunpack.c.h.b16 %v709
    %v1286 = vunpack.c.l.b16 %v710
    %v1287 = vunpack.c.h.b16 %v710
    %v1288 = vunpack.c.l.b16 %v711
    %v1289 = vunpack.c.h.b16 %v711
    %v1290 = vunpack.c.l.b16 %v712
    %v1291 = vunpack.c.h.b16 %v712
    %v1292 = vunpack.c.l.b16 %v713
    %v1293 = vunpack.c.h.b16 %v713
    %v1294 = vunpack.c.l.b16 %v714
    %v1295 = vunpack.c.h.b16 %v714
    %v1296 = vunpack.c.l.b16 %v715
    %v1297 = vunpack.c.h.b16 %v715
    %v1298 = vunpack.c.l.b16 %v716
    %v1299 = vunpack.c.h.b16 %v716
    %v1300 = vunpack.c.l.b16 %v717
    %v1301 = vunpack.c.h.b16 %v717
    %v1302 = vunpack.c.l.b16 %v718
    %v1303 = vunpack.c.h.b16 %v718
    %v1304 = vunpack.c.l.b16 %v719
    %v1305 = vunpack.c.h.b16 %v719
    %v1306 = vunpack.c.l.b16 %v720
    %v1307 = vunpack.c.h.b16 %v720
    %v1308 = vunpack.c.l.b16 %v721
    %v1309 = vunpack.c.h.b16 %v721
    %v1310 = vunpack.c.l.b16 %v722
    %v1311 = vunpack.c.h.b16 %v722
    %v1312 = vunpack.c.l.b16 %v723
    %v1313 = vunpack.c.h.b16 %v723
    %v1314 = vunpack.c.l.b16 %v724
    %v1315 = vunpack.c.h.b16 %v724
    %v1316 = vunpack.c.l.b16 %v725
    %v1317 = vunpack.c.h.b16 %v725
    %v1318 = vunpack.c.l.b16 %v726
    %v1319 = vunpack.c.h.b16 %v726
    %v1320 = vunpack.c.l.b16 %v727
    %v1321 = vunpack.c.h.b16 %v727
    %v1322 = vunpack.c.l.b16 %v728
    %v1323 = vunpack.c.h.b16 %v728
    %v1324 = vunpack.c.l.b16 %v729
    %v1325 = vunpack.c.h.b16 %v729
    %v1326 = vunpack.c.l.b16 %v730
    %v1327 = vunpack.c.h.b16 %v730
    %v1328 = vunpack.c.l.b16 %v731
    %v1329 = vunpack.c.h.b16 %v731
    %v1330 = vunpack.c.l.b16 %v732
    %v1331 = vunpack.c.h.b16 %v732
    %v1332 = vunpack.c.l.b16 %v733
    %v1333 = vunpack.c.h.b16 %v733
    %v1334 = vunpack.c.l.b16 %v734
    %v1335 = vunpack.c.h.b16 %v734
    %v1336 = vunpack.c.l.b16 %v735
    %v1337 = vunpack.c.h.b16 %v735
    %v1338 = vunpack.c.l.b16 %v736
    %v1339 = vunpack.c.h.b16 %v736
    %v1340 = vunpack.c.l.b16 %v737
    %v1341 = vunpack.c.h.b16 %v737
    %v1342 = vunpack.c.l.b16 %v738
    %v1343 = vunpack.c.h.b16 %v738
    %v1344 = vunpack.c.l.b16 %v739
    %v1345 = vunpack.c.h.b16 %v739
    %v1346 = vunpack.c.l.b16 %v740
    %v1347 = vunpack.c.h.b16 %v740
    %v1348 = vunpack.c.l.b16 %v741
    %v1349 = vunpack.c.h.b16 %v741
    %v1350 = vunpack.c.l.b16 %v742
    %v1351 = vunpack.c.h.b16 %v742
    %v1352 = vunpack.c.l.b16 %v743
    %v1353 = vunpack.c.h.b16 %v743
    %v1354 = vunpack.c.l.b16 %v744
    %v1355 = vunpack.c.h.b16 %v744
    %v1356 = vunpack.c.l.b16 %v745
    %v1357 = vunpack.c.h.b16 %v745
    %v1358 = vunpack.c.l.b16 %v746
    %v1359 = vunpack.c.h.b16 %v746
    %v1360 = vunpack.c.l.b16 %v747
    %v1361 = vunpack.c.h.b16 %v747
    %v1362 = vunpack.c.l.b16 %v748
    %v1363 = vunpack.c.h.b16 %v748
    %v1364 = vunpack.c.l.b16 %v749
    %v1365 = vunpack.c.h.b16 %v749
    %v1366 = vunpack.c.l.b16 %v750
    %v1367 = vunpack.c.h.b16 %v750
    %v1368 = vunpack.c.l.b16 %v751
    %v1369 = vunpack.c.h.b16 %v751
    %v1370 = vunpack.c.l.b16 %v752
    %v1371 = vunpack.c.h.b16 %v752
    %v1372 = vunpack.c.l.b16 %v753
    %v1373 = vunpack.c.h.b16 %v753
    %v1374 = vunpack.c.l.b16 %v754
    %v1375 = vunpack.c.h.b16 %v754
    %v1376 = vunpack.c.l.b16 %v755
    %v1377 = vunpack.c.h.b16 %v755
    %v1378 = vunpack.c.l.b16 %v756
    %v1379 = vunpack.c.h.b16 %v756
    %v1380 = vunpack.c.l.b16 %v757
    %v1381 = vunpack.c.h.b16 %v757
    %v1382 = vunpack.c.l.b16 %v758
    %v1383 = vunpack.c.h.b16 %v758
    %v1384 = vunpack.c.l.b16 %v759
    %v1385 = vunpack.c.h.b16 %v759
    %v1386 = vunpack.c.l.b16 %v760
    %v1387 = vunpack.c.h.b16 %v760
    %v1388 = vunpack.c.l.b16 %v761
    %v1389 = vunpack.c.h.b16 %v761
    %v1390 = vunpack.c.l.b16 %v762
    %v1391 = vunpack.c.h.b16 %v762
    %v1392 = vunpack.c.l.b16 %v763
    %v1393 = vunpack.c.h.b16 %v763
    %v1394 = vunpack.c.l.b16 %v764
    %v1395 = vunpack.c.h.b16 %v764
    %v1396 = vunpack.c.l.b16 %v765
    %v1397 = vunpack.c.h.b16 %v765
    %v1398 = vunpack.c.l.b16 %v766
    %v1399 = vunpack.c.h.b16 %v766
    %v1400 = vunpack.c.l.b16 %v767
    %v1401 = vunpack.c.h.b16 %v767
    %v1402 = vunpack.c.l.b16 %v768
    %v1403 = vunpack.c.h.b16 %v768
    %v1404 = vunpack.c.l.b16 %v769
    %v1405 = vunpack.c.h.b16 %v769
    %v1406 = vunpack.c.l.b16 %v770
    %v1407 = vunpack.c.h.b16 %v770
    %v1408 = vunpack.c.l.b16 %v771
    %v1409 = vunpack.c.h.b16 %v771
    %v1410 = vunpack.c.l.b16 %v772
    %v1411 = vunpack.c.h.b16 %v772
    %v1412 = vunpack.c.l.b16 %v773
    %v1413 = vunpack.c.h.b16 %v773
    %v1414 = vunpack.c.l.b16 %v774
    %v1415 = vunpack.c.h.b16 %v774
    %v1416 = vunpack.c.l.b16 %v775
    %v1417 = vunpack.c.h.b16 %v775
    %v1418 = vunpack.c.l.b16 %v776
    %v1419 = vunpack.c.h.b16 %v776
    %v1420 = vunpack.c.l.b16 %v777
    %v1421 = vunpack.c.h.b16 %v777
    %v1422 = vunpack.c.l.b16 %v778
    %v1423 = vunpack.c.h.b16 %v778
    %v1424 = vunpack.c.l.b16 %v779
    %v1425 = vunpack.c.h.b16 %v779
    %v1426 = vunpack.c.l.b16 %v780
    %v1427 = vunpack.c.h.b16 %v780
    %v1428 = vunpack.c.l.b16 %v781
    %v1429 = vunpack.c.h.b16 %v781
    %v1430 = vunpack.c.l.b16 %v782
    %v1431 = vunpack.c.h.b16 %v782
    %v1432 = vunpack.c.l.b16 %v783
    %v1433 = vunpack.c.h.b16 %v783
    %v1434 = vunpack.c.l.b16 %v784
    %v1435 = vunpack.c.h.b16 %v784
    %v1436 = vunpack.c.l.b16 %v785
    %v1437 = vunpack.c.h.b16 %v785
    %v1438 = vunpack.c.l.b16 %v786
    %v1439 = vunpack.c.h.b16 %v786
    %v1440 = vunpack.c.l.b16 %v787
    %v1441 = vunpack.c.h.b16 %v787
    %v1442 = vunpack.c.l.b16 %v788
    %v1443 = vunpack.c.h.b16 %v788
    %v1444 = vunpack.c.l.b16 %v789
    %v1445 = vunpack.c.h.b16 %v789
    %v1446 = vunpack.c.l.b16 %v790
    %v1447 = vunpack.c.h.b16 %v790
    %v1448 = vunpack.c.l.b16 %v791
    %v1449 = vunpack.c.h.b16 %v791
    %v1450 = vunpack.c.l.b16 %v792
    %v1451 = vunpack.c.h.b16 %v792
    %v1452 = vunpack.c.l.b16 %v793
    %v1453 = vunpack.c.h.b16 %v793
    %v1454 = vunpack.c.l.b16 %v794
    %v1455 = vunpack.c.h.b16 %v794
    %v1456 = vunpack.c.l.b16 %v795
    %v1457 = vunpack.c.h.b16 %v795
    %v1458 = vunpack.c.l.b16 %v796
    %v1459 = vunpack.c.h.b16 %v796
    %v1460 = vunpack.c.l.b16 %v797
    %v1461 = vunpack.c.h.b16 %v797
    %v1462 = vunpack.c.l.b16 %v798
    %v1463 = vunpack.c.h.b16 %v798
    %v1464 = vunpack.c.l.b16 %v799
    %v1465 = vunpack.c.h.b16 %v799
    %v1466 = vunpack.c.l.b16 %v800
    %v1467 = vunpack.c.h.b16 %v800
    %v1468 = vunpack.c.l.b16 %v801
    %v1469 = vunpack.c.h.b16 %v801
    %v1470 = vunpack.c.l.b16 %v802
    %v1471 = vunpack.c.h.b16 %v802
    %v1472 = vunpack.c.l.b16 %v803
    %v1473 = vunpack.c.h.b16 %v803
    %v1474 = vunpack.c.l.b16 %v804
    %v1475 = vunpack.c.h.b16 %v804
    %v1476 = vunpack.c.l.b16 %v805
    %v1477 = vunpack.c.h.b16 %v805
    %v1478 = vunpack.c.l.b16 %v806
    %v1479 = vunpack.c.h.b16 %v806
    %v1480 = vunpack.c.l.b16 %v807
    %v1481 = vunpack.c.h.b16 %v807
    %v1482 = vunpack.c.l.b16 %v808
    %v1483 = vunpack.c.h.b16 %v808
    %v1484 = vunpack.c.l.b16 %v809
    %v1485 = vunpack.c.h.b16 %v809
    %v1486 = vunpack.c.l.b16 %v810
    %v1487 = vunpack.c.h.b16 %v810
    %v1488 = vunpack.c.l.b16 %v811
    %v1489 = vunpack.c.h.b16 %v811
    %v1490 = vunpack.c.l.b16 %v812
    %v1491 = vunpack.c.h.b16 %v812
    %v1492 = vunpack.c.l.b16 %v813
    %v1493 = vunpack.c.h.b16 %v813
    %v1494 = vunpack.c.l.b16 %v814
    %v1495 = vunpack.c.h.b16 %v814
    %v1496 = vunpack.c.l.b16 %v815
    %v1497 = vunpack.c.h.b16 %v815
    %v1498 = vunpack.c.l.b16 %v816
    %v1499 = vunpack.c.h.b16 %v816
    %v1500 = vunpack.c.l.b16 %v817
    %v1501 = vunpack.c.h.b16 %v817
    %v1502 = vunpack.c.l.b16 %v818
    %v1503 = vunpack.c.h.b16 %v818
    %v1504 = vunpack.c.l.b16 %v819
    %v1505 = vunpack.c.h.b16 %v819
    %v1506 = vunpack.c.l.b16 %v820
    %v1507 = vunpack.c.h.b16 %v820
    %v1508 = vunpack.c.l.b16 %v821
    %v1509 = vunpack.c.h.b16 %v821
    %v1510 = vunpack.c.l.b16 %v822
    %v1511 = vunpack.c.h.b16 %v822
    %v1512 = vunpack.c.l.b16 %v823
    %v1513 = vunpack.c.h.b16 %v823
    %v1514 = vunpack.c.l.b16 %v824
    %v1515 = vunpack.c.h.b16 %v824
    %v1516 = vunpack.c.l.b16 %v825
    %v1517 = vunpack.c.h.b16 %v825
    %v1518 = vunpack.c.l.b16 %v826
    %v1519 = vunpack.c.h.b16 %v826
    %v1520 = vunpack.c.l.b16 %v827
    %v1521 = vunpack.c.h.b16 %v827
    %v1522 = vunpack.c.l.b16 %v828
    %v1523 = vunpack.c.h.b16 %v828
    %v1524 = vunpack.c.l.b16 %v829
    %v1525 = vunpack.c.h.b16 %v829
    %v1526 = vunpack.c.l.b16 %v830
    %v1527 = vunpack.c.h.b16 %v830
    %v1528 = vunpack.c.l.b16 %v831
    %v1529 = vunpack.c.h.b16 %v831
    %v1530 = vunpack.c.l.b16 %v832
    %v1531 = vunpack.c.h.b16 %v832
    %v1532 = vunpack.c.l.b16 %v833
    %v1533 = vunpack.c.h.b16 %v833
    %v1534 = vunpack.c.l.b16 %v834
    %v1535 = vunpack.c.h.b16 %v834
    %v1536 = vunpack.c.l.b16 %v835
    %v1537 = vunpack.c.h.b16 %v835
    %v1538 = vunpack.c.l.b16 %v836
    %v1539 = vunpack.c.h.b16 %v836
    %v1540 = vunpack.c.l.b16 %v837
    %v1541 = vunpack.c.h.b16 %v837
    %v1542 = vunpack.c.l.b16 %v838
    %v1543 = vunpack.c.h.b16 %v838
    %v1544 = vunpack.c.l.b16 %v839
    %v1545 = vunpack.c.h.b16 %v839
    %v1546 = vunpack.c.l.b16 %v840
    %v1547 = vunpack.c.h.b16 %v840
    %v1548 = vunpack.c.l.b16 %v841
    %v1549 = vunpack.c.h.b16 %v841
    %v1550 = vunpack.c.l.b16 %v842
    %v1551 = vunpack.c.h.b16 %v842
    %v1552 = vunpack.c.l.b16 %v843
    %v1553 = vunpack.c.h.b16 %v843
    %v1554 = vunpack.c.l.b16 %v844
    %v1555 = vunpack.c.h.b16 %v844
    %v1556 = vunpack.c.l.b16 %v845
    %v1557 = vunpack.c.h.b16 %v845
    %v1558 = vunpack.c.l.b16 %v846
    %v1559 = vunpack.c.h.b16 %v846
    %v1560 = vunpack.c.l.b16 %v847
    %v1561 = vunpack.c.h.b16 %v847
    %v1562 = vunpack.c.l.b16 %v848
    %v1563 = vunpack.c.h.b16 %v848
    %v1564 = vunpack.c.l.b16 %v849
    %v1565 = vunpack.c.h.b16 %v849
    %v1566 = vunpack.c.l.b16 %v850
    %v1567 = vunpack.c.h.b16 %v850
    %v1568 = vunpack.c.l.b16 %v851
    %v1569 = vunpack.c.h.b16 %v851
    %v1570 = vunpack.c.l.b16 %v852
    %v1571 = vunpack.c.h.b16 %v852
    %v1572 = vunpack.c.l.b16 %v853
    %v1573 = vunpack.c.h.b16 %v853
    %v1574 = vunpack.c.l.b16 %v854
    %v1575 = vunpack.c.h.b16 %v854
    %v1576 = vunpack.c.l.b16 %v855
    %v1577 = vunpack.c.h.b16 %v855
    %v1578 = vunpack.c.l.b16 %v856
    %v1579 = vunpack.c.h.b16 %v856
    %v1580 = vunpack.c.l.b16 %v857
    %v1581 = vunpack.c.h.b16 %v857
    %v1582 = vunpack.c.l.b16 %v858
    %v1583 = vunpack.c.h.b16 %v858
    %v1584 = vunpack.c.l.b16 %v859
    %v1585 = vunpack.c.h.b16 %v859
    %v1586 = vunpack.c.l.b16 %v860
    %v1587 = vunpack.c.h.b16 %v860
    %v1588 = vunpack.c.l.b16 %v861
    %v1589 = vunpack.c.h.b16 %v861
    %v1590 = vunpack.c.l.b16 %v862
    %v1591 = vunpack.c.h.b16 %v862
    %v1592 = vunpack.c.l.b16 %v863
    %v1593 = vunpack.c.h.b16 %v863
    %v1594 = vunpack.c.l.b16 %v864
    %v1595 = vunpack.c.h.b16 %v864
    %v1596 = vunpack.c.l.b16 %v865
    %v1597 = vunpack.c.h.b16 %v865
    %v1598 = vunpack.c.l.b16 %v866
    %v1599 = vunpack.c.h.b16 %v866
    %v1600 = vunpack.c.l.b16 %v867
    %v1601 = vunpack.c.h.b16 %v867
    %v1602 = vunpack.c.l.b16 %v868
    %v1603 = vunpack.c.h.b16 %v868
    %v1604 = vunpack.c.l.b16 %v869
    %v1605 = vunpack.c.h.b16 %v869
    %v1606 = vunpack.c.l.b16 %v870
    %v1607 = vunpack.c.h.b16 %v870
    %v1608 = vunpack.c.l.b16 %v871
    %v1609 = vunpack.c.h.b16 %v871
    %v1610 = vunpack.c.l.b16 %v872
    %v1611 = vunpack.c.h.b16 %v872
    %v1612 = vunpack.c.l.b16 %v873
    %v1613 = vunpack.c.h.b16 %v873
    %v1614 = vunpack.c.l.b16 %v874
    %v1615 = vunpack.c.h.b16 %v874
    %v1616 = vunpack.c.l.b16 %v875
    %v1617 = vunpack.c.h.b16 %v875
    %v1618 = vunpack.c.l.b16 %v876
    %v1619 = vunpack.c.h.b16 %v876
    %v1620 = vunpack.c.l.b16 %v877
    %v1621 = vunpack.c.h.b16 %v877
    %v1622 = vunpack.c.l.b16 %v878
    %v1623 = vunpack.c.h.b16 %v878
    %v1624 = vunpack.c.l.b16 %v879
    %v1625 = vunpack.c.h.b16 %v879
    %v1626 = vunpack.c.l.b16 %v880
    %v1627 = vunpack.c.h.b16 %v880
    %v1628 = vunpack.c.l.b16 %v881
    %v1629 = vunpack.c.h.b16 %v881
    %v1630 = vunpack.c.l.b16 %v882
    %v1631 = vunpack.c.h.b16 %v882
    %v1632 = vunpack.c.l.b16 %v883
    %v1633 = vunpack.c.h.b16 %v883
    %v1634 = vunpack.c.l.b16 %v884
    %v1635 = vunpack.c.h.b16 %v884
    %v1636 = vunpack.c.l.b16 %v885
    %v1637 = vunpack.c.h.b16 %v885
    %v1638 = vunpack.c.l.b16 %v886
    %v1639 = vunpack.c.h.b16 %v886
    %v1640 = vunpack.c.l.b16 %v887
    %v1641 = vunpack.c.h.b16 %v887
    %v1642 = vunpack.c.l.b16 %v888
    %v1643 = vunpack.c.h.b16 %v888
    %v1644 = vunpack.c.l.b16 %v889
    %v1645 = vunpack.c.h.b16 %v889
    %v1646 = vunpack.c.l.b16 %v890
    %v1647 = vunpack.c.h.b16 %v890
    %v1648 = vunpack.c.l.b16 %v891
    %v1649 = vunpack.c.h.b16 %v891
    %v1650 = vunpack.c.l.b16 %v892
    %v1651 = vunpack.c.h.b16 %v892
    %v1652 = vunpack.c.l.b16 %v893
    %v1653 = vunpack.c.h.b16 %v893
    %v1654 = vunpack.c.l.b16 %v894
    %v1655 = vunpack.c.h.b16 %v894
    %v1656 = vunpack.c.l.b16 %v895
    %v1657 = vunpack.c.h.b16 %v895
    %v1658 = vunpack.c.l.b16 %v896
    %v1659 = vunpack.c.h.b16 %v896
    %v1660 = vunpack.c.l.b16 %v897
    %v1661 = vunpack.c.h.b16 %v897
    %v1662 = vunpack.c.l.b16 %v898
    %v1663 = vunpack.c.h.b16 %v898
    %v1664 = vunpack.c.l.b16 %v899
    %v1665 = vunpack.c.h.b16 %v899
    %v1666 = vunpack.c.l.b16 %v900
    %v1667 = vunpack.c.h.b16 %v900
    %v1668 = vunpack.c.l.b16 %v901
    %v1669 = vunpack.c.h.b16 %v901
    %v1670 = vunpack.c.l.b16 %v902
    %v1671 = vunpack.c.h.b16 %v902
    %v1672 = vunpack.c.l.b16 %v903
    %v1673 = vunpack.c.h.b16 %v903
    %v1674 = vunpack.c.l.b16 %v904
    %v1675 = vunpack.c.h.b16 %v904
    %v1676 = vunpack.c.l.b16 %v905
    %v1677 = vunpack.c.h.b16 %v905
    %v1678 = vunpack.c.l.b16 %v906
    %v1679 = vunpack.c.h.b16 %v906
    %v1680 = vunpack.c.l.b16 %v907
    %v1681 = vunpack.c.h.b16 %v907
    %v1682 = vunpack.c.l.b16 %v908
    %v1683 = vunpack.c.h.b16 %v908
    %v1684 = vunpack.c.l.b16 %v909
    %v1685 = vunpack.c.h.b16 %v909
    %v1686 = vunpack.c.l.b16 %v910
    %v1687 = vunpack.c.h.b16 %v910
    %v1688 = vunpack.c.l.b16 %v911
    %v1689 = vunpack.c.h.b16 %v911
    %v1690 = vunpack.c.l.b16 %v912
    %v1691 = vunpack.c.h.b16 %v912
    %v1692 = vunpack.c.l.b16 %v913
    %v1693 = vunpack.c.h.b16 %v913
    %v1694 = vunpack.c.l.b16 %v914
    %v1695 = vunpack.c.h.b16 %v914
    %v1696 = vunpack.c.l.b16 %v915
    %v1697 = vunpack.c.h.b16 %v915
    %v1698 = vunpack.c.l.b16 %v916
    %v1699 = vunpack.c.h.b16 %v916
    %v1700 = vunpack.c.l.b16 %v917
    %v1701 = vunpack.c.h.b16 %v917
    %v1702 = vunpack.c.l.b16 %v918
    %v1703 = vunpack.c.h.b16 %v918
    %v1704 = vunpack.c.l.b16 %v919
    %v1705 = vunpack.c.h.b16 %v919
    %v1706 = vunpack.c.l.b16 %v920
    %v1707 = vunpack.c.h.b16 %v920
    %v1708 = vunpack.c.l.b16 %v921
    %v1709 = vunpack.c.h.b16 %v921
    %v1710 = vunpack.c.l.b16 %v922
    %v1711 = vunpack.c.h.b16 %v922
    %v1712 = vunpack.c.l.b16 %v923
    %v1713 = vunpack.c.h.b16 %v923
    %v1714 = vunpack.c.l.b16 %v924
    %v1715 = vunpack.c.h.b16 %v924
    %v1716 = vunpack.c.l.b16 %v925
    %v1717 = vunpack.c.h.b16 %v925
    %v1718 = vunpack.c.l.b16 %v926
    %v1719 = vunpack.c.h.b16 %v926
    %v1720 = vunpack.c.l.b16 %v927
    %v1721 = vunpack.c.h.b16 %v927
    %v1722 = vunpack.c.l.b16 %v928
    %v1723 = vunpack.c.h.b16 %v928
    %v1724 = vunpack.c.l.b16 %v929
    %v1725 = vunpack.c.h.b16 %v929
    %v1726 = vunpack.c.l.b16 %v930
    %v1727 = vunpack.c.h.b16 %v930
    %v1728 = vunpack.c.l.b16 %v931
    %v1729 = vunpack.c.h.b16 %v931
    %v1730 = vunpack.c.l.b16 %v932
    %v1731 = vunpack.c.h.b16 %v932
    %v1732 = vunpack.c.l.b16 %v933
    %v1733 = vunpack.c.h.b16 %v933
    %v1734 = vunpack.c.l.b16 %v934
    %v1735 = vunpack.c.h.b16 %v934
    %v1736 = vunpack.c.l.b16 %v935
    %v1737 = vunpack.c.h.b16 %v935
    %v1738 = vunpack.c.l.b16 %v936
    %v1739 = vunpack.c.h.b16 %v936
    %v1740 = vunpack.c.l.b16 %v937
    %v1741 = vunpack.c.h.b16 %v937
    %v1742 = vunpack.c.l.b16 %v938
    %v1743 = vunpack.c.h.b16 %v938
    %v1744 = vunpack.c.l.b16 %v939
    %v1745 = vunpack.c.h.b16 %v939
    %v1746 = vunpack.c.l.b16 %v940
    %v1747 = vunpack.c.h.b16 %v940
    %v1748 = vunpack.c.l.b16 %v941
    %v1749 = vunpack.c.h.b16 %v941
    %v1750 = vunpack.c.l.b16 %v942
    %v1751 = vunpack.c.h.b16 %v942
    %v1752 = vunpack.c.l.b16 %v943
    %v1753 = vunpack.c.h.b16 %v943
    %v1754 = vpack.c.b16 %v1250, %v1242
    %v1755 = vpack.c.b16 %v1251, %v1243
    %v1756 = vpack.c.b16 %v1252, %v1244
    %v1757 = vpack.c.b16 %v1253, %v1245
    %v1758 = vpack.c.b16 %v1254, %v1246
    %v1759 = vpack.c.b16 %v1255, %v1247
    %v1760 = vpack.c.b16 %v1256, %v1248
    %v1761 = vpack.c.b16 %v1257, %v1249
    %v1762 = vpack.c.b16 %v1266, %v1258
    %v1763 = vpack.c.b16 %v1267, %v1259
    %v1764 = vpack.c.b16 %v1268, %v1260
    %v1765 = vpack.c.b16 %v1269, %v1261
    %v1766 = vpack.c.b16 %v1270, %v1262
    %v1767 = vpack.c.b16 %v1271, %v1263
    %v1768 = vpack.c.b16 %v1272, %v1264
    %v1769 = vpack.c.b16 %v1273, %v1265
    %v1770 = vpack.c.b16 %v1282, %v1274
    %v1771 = vpack.c.b16 %v1283, %v1275
    %v1772 = vpack.c.b16 %v1284, %v1276
    %v1773 = vpack.c.b16 %v1285, %v1277
    %v1774 = vpack.c.b16 %v1286, %v1278
    %v1775 = vpack.c.b16 %v1287, %v1279
    %v1776 = vpack.c.b16 %v1288, %v1280
    %v1777 = vpack.c.b16 %v1289, %v1281
    %v1778 = vpack.c.b16 %v1298, %v1290
    %v1779 = vpack.c.b16 %v1299, %v1291
    %v1780 = vpack.c.b16 %v1300, %v1292
    %v1781 = vpack.c.b16 %v1301, %v1293
    %v1782 = vpack.c.b16 %v1302, %v1294
    %v1783 = vpack.c.b16 %v1303, %v1295
    %v1784 = vpack.c.b16 %v1304, %v1296
    %v1785 = vpack.c.b16 %v1305, %v1297
    %v1786 = vpack.c.b16 %v1314, %v1306
    %v1787 = vpack.c.b16 %v1315, %v1307
    %v1788 = vpack.c.b16 %v1316, %v1308
    %v1789 = vpack.c.b16 %v1317, %v1309
    %v1790 = vpack.c.b16 %v1318, %v1310
    %v1791 = vpack.c.b16 %v1319, %v1311
    %v1792 = vpack.c.b16 %v1320, %v1312
    %v1793 = vpack.c.b16 %v1321, %v1313
    %v1794 = vpack.c.b16 %v1330, %v1322
    %v1795 = vpack.c.b16 %v1331, %v1323
    %v1796 = vpack.c.b16 %v1332, %v1324
    %v1797 = vpack.c.b16 %v1333, %v1325
    %v1798 = vpack.c.b16 %v1334, %v1326
    %v1799 = vpack.c.b16 %v1335, %v1327
    %v1800 = vpack.c.b16 %v1336, %v1328
    %v1801 = vpack.c.b16 %v1337, %v1329
    %v1802 = vpack.c.b16 %v1346, %v1338
    %v1803 = vpack.c.b16 %v1347, %v1339
    %v1804 = vpack.c.b16 %v1348, %v1340
    %v1805 = vpack.c.b16 %v1349, %v1341
    %v1806 = vpack.c.b16 %v1350, %v1342
    %v1807 = vpack.c.b16 %v1351, %v1343
    %v1808 = vpack.c.b16 %v1352, %v1344
    %v1809 = vpack.c.b16 %v1353, %v1345
    %v1810 = vpack.c.b16 %v1362, %v1354
    %v1811 = vpack.c.b16 %v1363, %v1355
    %v1812 = vpack.c.b16 %v1364, %v1356
    %v1813 = vpack.c.b16 %v1365, %v1357
    %v1814 = vpack.c.b16 %v1366, %v1358
    %v1815 = vpack.c.b16 %v1367, %v1359
    %v1816 = vpack.c.b16 %v1368, %v1360
    %v1817 = vpack.c.b16 %v1369, %v1361
    %v1818 = vpack.c.b16 %v1378, %v1370
    %v1819 = vpack.c.b16 %v1379, %v1371
    %v1820 = vpack.c.b16 %v1380, %v1372
    %v1821 = vpack.c.b16 %v1381, %v1373
    %v1822 = vpack.c.b16 %v1382, %v1374
    %v1823 = vpack.c.b16 %v1383, %v1375
    %v1824 = vpack.c.b16 %v1384, %v1376
    %v1825 = vpack.c.b16 %v1385, %v1377
    %v1826 = vpack.c.b16 %v1394, %v1386
    %v1827 = vpack.c.b16 %v1395, %v1387
    %v1828 = vpack.c.b16 %v1396, %v1388
    %v1829 = vpack.c.b16 %v1397, %v1389
    %v1830 = vpack.c.b16 %v1398, %v1390
    %v1831 = vpack.c.b16 %v1399, %v1391
    %v1832 = vpack.c.b16 %v1400, %v1392
    %v1833 = vpack.c.b16 %v1401, %v1393
    %v1834 = vpack.c.b16 %v1410, %v1402
    %v1835 = vpack.c.b16 %v1411, %v1403
    %v1836 = vpack.c.b16 %v1412, %v1404
    %v1837 = vpack.c.b16 %v1413, %v1405
    %v1838 = vpack.c.b16 %v1414, %v1406
    %v1839 = vpack.c.b16 %v1415, %v1407
    %v1840 = vpack.c.b16 %v1416, %v1408
    %v1841 = vpack.c.b16 %v1417, %v1409
    %v1842 = vpack.c.b16 %v1426, %v1418
    %v1843 = vpack.c.b16 %v1427, %v1419
    %v1844 = vpack.c.b16 %v1428, %v1420
    %v1845 = vpack.c.b16 %v1429, %v1421
    %v1846 = vpack.c.b16 %v1430, %v1422
    %v1847 = vpack.c.b16 %v1431, %v1423
    %v1848 = vpack.c.b16 %v1432, %v1424
    %v1849 = vpack.c.b16 %v1433, %v1425
    %v1850 = vpack.c.b16 %v1442, %v1434
    %v1851 = vpack.c.b16 %v1443, %v1435
    %v1852 = vpack.c.b16 %v1444, %v1436
    %v1853 = vpack.c.b16 %v1445, %v1437
    %v1854 = vpack.c.b16 %v1446, %v1438
    %v1855 = vpack.c.b16 %v1447, %v1439
    %v1856 = vpack.c.b16 %v1448, %v1440
    %v1857 = vpack.c.b16 %v1449, %v1441
    %v1858 = vpack.c.b16 %v1458, %v1450
    %v1859 = vpack.c.b16 %v1459, %v1451
    %v1860 = vpack.c.b16 %v1460, %v1452
    %v1861 = vpack.c.b16 %v1461, %v1453
    %v1862 = vpack.c.b16 %v1462, %v1454
    %v1863 = vpack.c.b16 %v1463, %v1455
    %v1864 = vpack.c.b16 %v1464, %v1456
    %v1865 = vpack.c.b16 %v1465, %v1457
    %v1866 = vpack.c.b16 %v1474, %v1466
    %v1867 = vpack.c.b16 %v1475, %v1467
    %v1868 = vpack.c.b16 %v1476, %v1468
    %v1869 = vpack.c.b16 %v1477, %v1469
    %v1870 = vpack.c.b16 %v1478, %v1470
    %v1871 = vpack.c.b16 %v1479, %v1471
    %v1872 = vpack.c.b16 %v1480, %v1472
    %v1873 = vpack.c.b16 %v1481, %v1473
    %v1874 = vpack.c.b16 %v1490, %v1482
    %v1875 = vpack.c.b16 %v1491, %v1483
    %v1876 = vpack.c.b16 %v1492, %v1484
    %v1877 = vpack.c.b16 %v1493, %v1485
    %v1878 = vpack.c.b16 %v1494, %v1486
    %v1879 = vpack.c.b16 %v1495, %v1487
    %v1880 = vpack.c.b16 %v1496, %v1488
    %v1881 = vpack.c.b16 %v1497, %v1489
    %v1882 = vpack.c.b16 %v1506, %v1498
    %v1883 = vpack.c.b16 %v1507, %v1499
    %v1884 = vpack.c.b16 %v1508, %v1500
    %v1885 = vpack.c.b16 %v1509, %v1501
    %v1886 = vpack.c.b16 %v1510, %v1502
    %v1887 = vpack.c.b16 %v1511, %v1503
    %v1888 = vpack.c.b16 %v1512, %v1504
    %v1889 = vpack.c.b16 %v1513, %v1505
    %v1890 = vpack.c.b16 %v1522, %v1514
    %v1891 = vpack.c.b16 %v1523, %v1515
    %v1892 = vpack.c.b16 %v1524, %v1516
    %v1893 = vpack.c.b16 %v1525, %v1517
    %v1894 = vpack.c.b16 %v1526, %v1518
    %v1895 = vpack.c.b16 %v1527, %v1519
    %v1896 = vpack.c.b16 %v1528, %v1520
    %v1897 = vpack.c.b16 %v1529, %v1521
    %v1898 = vpack.c.b16 %v1538, %v1530
    %v1899 = vpack.c.b16 %v1539, %v1531
    %v1900 = vpack.c.b16 %v1540, %v1532
    %v1901 = vpack.c.b16 %v1541, %v1533
    %v1902 = vpack.c.b16 %v1542, %v1534
    %v1903 = vpack.c.b16 %v1543, %v1535
    %v1904 = vpack.c.b16 %v1544, %v1536
    %v1905 = vpack.c.b16 %v1545, %v1537
    %v1906 = vpack.c.b16 %v1554, %v1546
    %v1907 = vpack.c.b16 %v1555, %v1547
    %v1908 = vpack.c.b16 %v1556, %v1548
    %v1909 = vpack.c.b16 %v1557, %v1549
    %v1910 = vpack.c.b16 %v1558, %v1550
    %v1911 = vpack.c.b16 %v1559, %v1551
    %v1912 = vpack.c.b16 %v1560, %v1552
    %v1913 = vpack.c.b16 %v1561, %v1553
    %v1914 = vpack.c.b16 %v1570, %v1562
    %v1915 = vpack.c.b16 %v1571, %v1563
    %v1916 = vpack.c.b16 %v1572, %v1564
    %v1917 = vpack.c.b16 %v1573, %v1565
    %v1918 = vpack.c.b16 %v1574, %v1566
    %v1919 = vpack.c.b16 %v1575, %v1567
    %v1920 = vpack.c.b16 %v1576, %v1568
    %v1921 = vpack.c.b16 %v1577, %v1569
    %v1922 = vpack.c.b16 %v1586, %v1578
    %v1923 = vpack.c.b16 %v1587, %v1579
    %v1924 = vpack.c.b16 %v1588, %v1580
    %v1925 = vpack.c.b16 %v1589, %v1581
    %v1926 = vpack.c.b16 %v1590, %v1582
    %v1927 = vpack.c.b16 %v1591, %v1583
    %v1928 = vpack.c.b16 %v1592, %v1584
    %v1929 = vpack.c.b16 %v1593, %v1585
    %v1930 = vpack.c.b16 %v1602, %v1594
    %v1931 = vpack.c.b16 %v1603, %v1595
    %v1932 = vpack.c.b16 %v1604, %v1596
    %v1933 = vpack.c.b16 %v1605, %v1597
    %v1934 = vpack.c.b16 %v1606, %v1598
    %v1935 = vpack.c.b16 %v1607, %v1599
    %v1936 = vpack.c.b16 %v1608, %v1600
    %v1937 = vpack.c.b16 %v1609, %v1601
    %v1938 = vpack.c.b16 %v1618, %v1610
    %v1939 = vpack.c.b16 %v1619, %v1611
    %v1940 = vpack.c.b16 %v1620, %v1612
    %v1941 = vpack.c.b16 %v1621, %v1613
    %v1942 = vpack.c.b16 %v1622, %v1614
    %v1943 = vpack.c.b16 %v1623, %v1615
    %v1944 = vpack.c.b16 %v1624, %v1616
    %v1945 = vpack.c.b16 %v1625, %v1617
    %v1946 = vpack.c.b16 %v1634, %v1626
    %v1947 = vpack.c.b16 %v1635, %v1627
    %v1948 = vpack.c.b16 %v1636, %v1628
    %v1949 = vpack.c.b16 %v1637, %v1629
    %v1950 = vpack.c.b16 %v1638, %v1630
    %v1951 = vpack.c.b16 %v1639, %v1631
    %v1952 = vpack.c.b16 %v1640, %v1632
    %v1953 = vpack.c.b16 %v1641, %v1633
    %v1954 = vpack.c.b16 %v1650, %v1642
    %v1955 = vpack.c.b16 %v1651, %v1643
    %v1956 = vpack.c.b16 %v1652, %v1644
    %v1957 = vpack.c.b16 %v1653, %v1645
    %v1958 = vpack.c.b16 %v1654, %v1646
    %v1959 = vpack.c.b16 %v1655, %v1647
    %v1960 = vpack.c.b16 %v1656, %v1648
    %v1961 = vpack.c.b16 %v1657, %v1649
    %v1962 = vpack.c.b16 %v1666, %v1658
    %v1963 = vpack.c.b16 %v1667, %v1659
    %v1964 = vpack.c.b16 %v1668, %v1660
    %v1965 = vpack.c.b16 %v1669, %v1661
    %v1966 = vpack.c.b16 %v1670, %v1662
    %v1967 = vpack.c.b16 %v1671, %v1663
    %v1968 = vpack.c.b16 %v1672, %v1664
    %v1969 = vpack.c.b16 %v1673, %v1665
    %v1970 = vpack.c.b16 %v1682, %v1674
    %v1971 = vpack.c.b16 %v1683, %v1675
    %v1972 = vpack.c.b16 %v1684, %v1676
    %v1973 = vpack.c.b16 %v1685, %v1677
    %v1974 = vpack.c.b16 %v1686, %v1678
    %v1975 = vpack.c.b16 %v1687, %v1679
    %v1976 = vpack.c.b16 %v1688, %v1680
    %v1977 = vpack.c.b16 %v1689, %v1681
    %v1978 = vpack.c.b16 %v1698, %v1690
    %v1979 = vpack.c.b16 %v1699, %v1691
    %v1980 = vpack.c.b16 %v1700, %v1692
    %v1981 = vpack.c.b16 %v1701, %v1693
    %v1982 = vpack.c.b16 %v1702, %v1694
    %v1983 = vpack.c.b16 %v1703, %v1695
    %v1984 = vpack.c.b16 %v1704, %v1696
    %v1985 = vpack.c.b16 %v1705, %v1697
    %v1986 = vpack.c.b16 %v1714, %v1706
    %v1987 = vpack.c.b16 %v1715, %v1707
    %v1988 = vpack.c.b16 %v1716, %v1708
    %v1989 = vpack.c.b16 %v1717, %v1709
    %v1990 = vpack.c.b16 %v1718, %v1710
    %v1991 = vpack.c.b16 %v1719, %v1711
    %v1992 = vpack.c.b16 %v1720, %v1712
    %v1993 = vpack.c.b16 %v1721, %v1713
    %v1994 = vpack.c.b16 %v1730, %v1722
    %v1995 = vpack.c.b16 %v1731, %v1723
    %v1996 = vpack.c.b16 %v1732, %v1724
    %v1997 = vpack.c.b16 %v1733, %v1725
    %v1998 = vpack.c.b16 %v1734, %v1726
    %v1999 = vpack.c.b16 %v1735, %v1727
    %v2000 = vpack.c.b16 %v1736, %v1728
    %v2001 = vpack.c.b16 %v1737, %v1729
    %v2002 = vpack.c.b16 %v1746, %v1738
    %v2003 = vpack.c.b16 %v1747, %v1739
    %v2004 = vpack.c.b16 %v1748, %v1740
    %v2005 = vpack.c.b16 %v1749, %v1741
    %v2006 = vpack.c.b16 %v1750, %v1742
    %v2007 = vpack.c.b16 %v1751, %v1743
    %v2008 = vpack.c.b16 %v1752, %v1744
    %v2009 = vpack.c.b16 %v1753, %v1745
    %2266 = vmatprep.subr.bf16.mxu0 %v1755
    %2267 = vmatpush1.bf16.msra.mxu0 %v1754
    %2268 = vmatprep.subr.bf16.mxu0 %v1763
    %2269 = vmatpush1.bf16.msra.mxu0 %v1762
    %2270 = vmatprep.subr.bf16.mxu0 %v1771
    %2271 = vmatpush1.bf16.msra.mxu0 %v1770
    %2272 = vmatprep.subr.bf16.mxu0 %v1779
    %2273 = vmatpush1.bf16.msra.mxu0 %v1778
    %2274 = vmatprep.subr.bf16.mxu0 %v1787
    %2275 = vmatpush1.bf16.msra.mxu0 %v1786
    %2276 = vmatprep.subr.bf16.mxu0 %v1795
    %2277 = vmatpush1.bf16.msra.mxu0 %v1794
    %2278 = vmatprep.subr.bf16.mxu0 %v1803
    %2279 = vmatpush1.bf16.msra.mxu0 %v1802
    %2280 = vmatprep.subr.bf16.mxu0 %v1811
    %2281 = vmatpush1.bf16.msra.mxu0 %v1810
    %2282 = vmatprep.subr.bf16.mxu0 %v1819
    %2283 = vmatpush1.bf16.msra.mxu0 %v1818
    %2284 = vmatprep.subr.bf16.mxu0 %v1827
    %2285 = vmatpush1.bf16.msra.mxu0 %v1826
    %2286 = vmatprep.subr.bf16.mxu0 %v1835
    %2287 = vmatpush1.bf16.msra.mxu0 %v1834
    %2288 = vmatprep.subr.bf16.mxu0 %v1843
    %2289 = vmatpush1.bf16.msra.mxu0 %v1842
    %2290 = vmatprep.subr.bf16.mxu0 %v1851
    %2291 = vmatpush1.bf16.msra.mxu0 %v1850
    %2292 = vmatprep.subr.bf16.mxu0 %v1859
    %2293 = vmatpush1.bf16.msra.mxu0 %v1858
    %2294 = vmatprep.subr.bf16.mxu0 %v1867
    %2295 = vmatpush1.bf16.msra.mxu0 %v1866
    %2296 = vmatprep.subr.bf16.mxu0 %v1875
    %2297 = vmatpush1.bf16.msra.mxu0 %v1874
    %2298 = vmatprep.mubr.bf16.mxu0 %v685
    %2299 = vmatmul.mubr.bf16.gmra.mrb[0].mxu0 %v684
    %v2300 = vpop.f32.mrb[0].mxu0
    %v2301 = vadd.f32 %v949, %v2300
    %v2302 = vpop.f32.mrb[0].mxu0
    %v2303 = vadd.f32 %v953, %v2302
    %v2304 = vpop.f32.mrb[0].mxu0
    %v2305 = vadd.f32 %v949, %v2304
    %v2306 = vpop.f32.mrb[0].mxu0
    %v2307 = vadd.f32 %v953, %v2306
    %2308 = vdwg.mxu0
    %2309 = vmatprep.subr.bf16.mxu0 %v1883
    %2310 = vmatpush1.bf16.msra.mxu0 %v1882
    %2311 = vmatprep.subr.bf16.mxu0 %v1891
    %2312 = vmatpush1.bf16.msra.mxu0 %v1890
    %2313 = vmatprep.subr.bf16.mxu0 %v1899
    %2314 = vmatpush1.bf16.msra.mxu0 %v1898
    %2315 = vmatprep.subr.bf16.mxu0 %v1907
    %2316 = vmatpush1.bf16.msra.mxu0 %v1906
    %2317 = vmatprep.subr.bf16.mxu0 %v1915
    %2318 = vmatpush1.bf16.msra.mxu0 %v1914
    %2319 = vmatprep.subr.bf16.mxu0 %v1923
    %2320 = vmatpush1.bf16.msra.mxu0 %v1922
    %2321 = vmatprep.subr.bf16.mxu0 %v1931
    %2322 = vmatpush1.bf16.msra.mxu0 %v1930
    %2323 = vmatprep.subr.bf16.mxu0 %v1939
    %2324 = vmatpush1.bf16.msra.mxu0 %v1938
    %2325 = vmatprep.subr.bf16.mxu0 %v1947
    %2326 = vmatpush1.bf16.msra.mxu0 %v1946
    %2327 = vmatprep.subr.bf16.mxu0 %v1955
    %2328 = vmatpush1.bf16.msra.mxu0 %v1954
    %2329 = vmatprep.subr.bf16.mxu0 %v1963
    %2330 = vmatpush1.bf16.msra.mxu0 %v1962
    %2331 = vmatprep.subr.bf16.mxu0 %v1971
    %2332 = vmatpush1.bf16.msra.mxu0 %v1970
    %2333 = vmatprep.subr.bf16.mxu0 %v1979
    %2334 = vmatpush1.bf16.msra.mxu0 %v1978
    %2335 = vmatprep.subr.bf16.mxu0 %v1987
    %2336 = vmatpush1.bf16.msra.mxu0 %v1986
    %2337 = vmatprep.subr.bf16.mxu0 %v1995
    %2338 = vmatpush1.bf16.msra.mxu0 %v1994
    %2339 = vmatprep.subr.bf16.mxu0 %v2003
    %2340 = vmatpush1.bf16.msra.mxu0 %v2002
    %2341 = vmatprep.mubr.bf16.mxu0 %v687
    %2342 = vmatmul.mubr.bf16.gmra.mrb[0].mxu0 %v686
    %v2343 = vpop.f32.mrb[0].mxu0
    %v2344 = vadd.f32 %v2301, %v2343
    %v2345 = vpop.f32.mrb[0].mxu0
    %v2346 = vadd.f32 %v2303, %v2345
    %v2347 = vpop.f32.mrb[0].mxu0
    %v2348 = vadd.f32 %v2305, %v2347
    %v2349 = vpop.f32.mrb[0].mxu0
    %v2350 = vadd.f32 %v2307, %v2349
    %2351 = vdwg.mxu0
    %2352 = vmatprep.subr.bf16.mxu0 %v1757
    %2353 = vmatpush1.bf16.msra.mxu0 %v1756
    %2354 = vmatprep.subr.bf16.mxu0 %v1765
    %2355 = vmatpush1.bf16.msra.mxu0 %v1764
    %2356 = vmatprep.subr.bf16.mxu0 %v1773
    %2357 = vmatpush1.bf16.msra.mxu0 %v1772
    %2358 = vmatprep.subr.bf16.mxu0 %v1781
    %2359 = vmatpush1.bf16.msra.mxu0 %v1780
    %2360 = vmatprep.subr.bf16.mxu0 %v1789
    %2361 = vmatpush1.bf16.msra.mxu0 %v1788
    %2362 = vmatprep.subr.bf16.mxu0 %v1797
    %2363 = vmatpush1.bf16.msra.mxu0 %v1796
    %2364 = vmatprep.subr.bf16.mxu0 %v1805
    %2365 = vmatpush1.bf16.msra.mxu0 %v1804
    %2366 = vmatprep.subr.bf16.mxu0 %v1813
    %2367 = vmatpush1.bf16.msra.mxu0 %v1812
    %2368 = vmatprep.subr.bf16.mxu0 %v1821
    %2369 = vmatpush1.bf16.msra.mxu0 %v1820
    %2370 = vmatprep.subr.bf16.mxu0 %v1829
    %2371 = vmatpush1.bf16.msra.mxu0 %v1828
    %2372 = vmatprep.subr.bf16.mxu0 %v1837
    %2373 = vmatpush1.bf16.msra.mxu0 %v1836
    %2374 = vmatprep.subr.bf16.mxu0 %v1845
    %2375 = vmatpush1.bf16.msra.mxu0 %v1844
    %2376 = vmatprep.subr.bf16.mxu0 %v1853
    %2377 = vmatpush1.bf16.msra.mxu0 %v1852
    %2378 = vmatprep.subr.bf16.mxu0 %v1861
    %2379 = vmatpush1.bf16.msra.mxu0 %v1860
    %2380 = vmatprep.subr.bf16.mxu0 %v1869
    %2381 = vmatpush1.bf16.msra.mxu0 %v1868
    %2382 = vmatprep.subr.bf16.mxu0 %v1877
    %2383 = vmatpush1.bf16.msra.mxu0 %v1876
    %2384 = vmatprep.mubr.bf16.mxu0 %v685
    %2385 = vmatmul.mubr.bf16.gmra.mrb[0].mxu0 %v684
    %v2386 = vpop.f32.mrb[0].mxu0
    %v2387 = vadd.f32 %v957, %v2386
    %v2388 = vpop.f32.mrb[0].mxu0
    %v2389 = vadd.f32 %v961, %v2388
    %v2390 = vpop.f32.mrb[0].mxu0
    %v2391 = vadd.f32 %v957, %v2390
    %v2392 = vpop.f32.mrb[0].mxu0
    %v2393 = vadd.f32 %v961, %v2392
    %2394 = vdwg.mxu0
    %2395 = vmatprep.subr.bf16.mxu0 %v1885
    %2396 = vmatpush1.bf16.msra.mxu0 %v1884
    %2397 = vmatprep.subr.bf16.mxu0 %v1893
    %2398 = vmatpush1.bf16.msra.mxu0 %v1892
    %2399 = vmatprep.subr.bf16.mxu0 %v1901
    %2400 = vmatpush1.bf16.msra.mxu0 %v1900
    %2401 = vmatprep.subr.bf16.mxu0 %v1909
    %2402 = vmatpush1.bf16.msra.mxu0 %v1908
    %2403 = vmatprep.subr.bf16.mxu0 %v1917
    %2404 = vmatpush1.bf16.msra.mxu0 %v1916
    %2405 = vmatprep.subr.bf16.mxu0 %v1925
    %2406 = vmatpush1.bf16.msra.mxu0 %v1924
    %2407 = vmatprep.subr.bf16.mxu0 %v1933
    %2408 = vmatpush1.bf16.msra.mxu0 %v1932
    %2409 = vmatprep.subr.bf16.mxu0 %v1941
    %2410 = vmatpush1.bf16.msra.mxu0 %v1940
    %2411 = vmatprep.subr.bf16.mxu0 %v1949
    %2412 = vmatpush1.bf16.msra.mxu0 %v1948
    %2413 = vmatprep.subr.bf16.mxu0 %v1957
    %2414 = vmatpush1.bf16.msra.mxu0 %v1956
    %2415 = vmatprep.subr.bf16.mxu0 %v1965
    %2416 = vmatpush1.bf16.msra.mxu0 %v1964
    %2417 = vmatprep.subr.bf16.mxu0 %v1973
    %2418 = vmatpush1.bf16.msra.mxu0 %v1972
    %2419 = vmatprep.subr.bf16.mxu0 %v1981
    %2420 = vmatpush1.bf16.msra.mxu0 %v1980
    %2421 = vmatprep.subr.bf16.mxu0 %v1989
    %2422 = vmatpush1.bf16.msra.mxu0 %v1988
    %2423 = vmatprep.subr.bf16.mxu0 %v1997
    %2424 = vmatpush1.bf16.msra.mxu0 %v1996
    %2425 = vmatprep.subr.bf16.mxu0 %v2005
    %2426 = vmatpush1.bf16.msra.mxu0 %v2004
    %2427 = vmatprep.mubr.bf16.mxu0 %v687
    %2428 = vmatmul.mubr.bf16.gmra.mrb[0].mxu0 %v686
    %v2429 = vpop.f32.mrb[0].mxu0
    %v2430 = vadd.f32 %v2387, %v2429
    %v2431 = vpop.f32.mrb[0].mxu0
    %v2432 = vadd.f32 %v2389, %v2431
    %v2433 = vpop.f32.mrb[0].mxu0
    %v2434 = vadd.f32 %v2391, %v2433
    %v2435 = vpop.f32.mrb[0].mxu0
    %v2436 = vadd.f32 %v2393, %v2435
    %2437 = vdwg.mxu0
    %2438 = vmatprep.subr.bf16.mxu0 %v1759
    %2439 = vmatpush1.bf16.msra.mxu0 %v1758
    %2440 = vmatprep.subr.bf16.mxu0 %v1767
    %2441 = vmatpush1.bf16.msra.mxu0 %v1766
    %2442 = vmatprep.subr.bf16.mxu0 %v1775
    %2443 = vmatpush1.bf16.msra.mxu0 %v1774
    %2444 = vmatprep.subr.bf16.mxu0 %v1783
    %2445 = vmatpush1.bf16.msra.mxu0 %v1782
    %2446 = vmatprep.subr.bf16.mxu0 %v1791
    %2447 = vmatpush1.bf16.msra.mxu0 %v1790
    %2448 = vmatprep.subr.bf16.mxu0 %v1799
    %2449 = vmatpush1.bf16.msra.mxu0 %v1798
    %2450 = vmatprep.subr.bf16.mxu0 %v1807
    %2451 = vmatpush1.bf16.msra.mxu0 %v1806
    %2452 = vmatprep.subr.bf16.mxu0 %v1815
    %2453 = vmatpush1.bf16.msra.mxu0 %v1814
    %2454 = vmatprep.subr.bf16.mxu0 %v1823
    %2455 = vmatpush1.bf16.msra.mxu0 %v1822
    %2456 = vmatprep.subr.bf16.mxu0 %v1831
    %2457 = vmatpush1.bf16.msra.mxu0 %v1830
    %2458 = vmatprep.subr.bf16.mxu0 %v1839
    %2459 = vmatpush1.bf16.msra.mxu0 %v1838
    %2460 = vmatprep.subr.bf16.mxu0 %v1847
    %2461 = vmatpush1.bf16.msra.mxu0 %v1846
    %2462 = vmatprep.subr.bf16.mxu0 %v1855
    %2463 = vmatpush1.bf16.msra.mxu0 %v1854
    %2464 = vmatprep.subr.bf16.mxu0 %v1863
    %2465 = vmatpush1.bf16.msra.mxu0 %v1862
    %2466 = vmatprep.subr.bf16.mxu0 %v1871
    %2467 = vmatpush1.bf16.msra.mxu0 %v1870
    %2468 = vmatprep.subr.bf16.mxu0 %v1879
    %2469 = vmatpush1.bf16.msra.mxu0 %v1878
    %2470 = vmatprep.mubr.bf16.mxu0 %v685
    %2471 = vmatmul.mubr.bf16.gmra.mrb[0].mxu0 %v684
    %v2472 = vpop.f32.mrb[0].mxu0
    %v2473 = vadd.f32 %v965, %v2472
    %v2474 = vpop.f32.mrb[0].mxu0
    %v2475 = vadd.f32 %v969, %v2474
    %v2476 = vpop.f32.mrb[0].mxu0
    %v2477 = vadd.f32 %v965, %v2476
    %v2478 = vpop.f32.mrb[0].mxu0
    %v2479 = vadd.f32 %v969, %v2478
    %2480 = vdwg.mxu0
    %2481 = vmatprep.subr.bf16.mxu0 %v1887
    %2482 = vmatpush1.bf16.msra.mxu0 %v1886
    %2483 = vmatprep.subr.bf16.mxu0 %v1895
    %2484 = vmatpush1.bf16.msra.mxu0 %v1894
    %2485 = vmatprep.subr.bf16.mxu0 %v1903
    %2486 = vmatpush1.bf16.msra.mxu0 %v1902
    %2487 = vmatprep.subr.bf16.mxu0 %v1911
    %2488 = vmatpush1.bf16.msra.mxu0 %v1910
    %2489 = vmatprep.subr.bf16.mxu0 %v1919
    %2490 = vmatpush1.bf16.msra.mxu0 %v1918
    %2491 = vmatprep.subr.bf16.mxu0 %v1927
    %2492 = vmatpush1.bf16.msra.mxu0 %v1926
    %2493 = vmatprep.subr.bf16.mxu0 %v1935
    %2494 = vmatpush1.bf16.msra.mxu0 %v1934
    %2495 = vmatprep.subr.bf16.mxu0 %v1943
    %2496 = vmatpush1.bf16.msra.mxu0 %v1942
    %2497 = vmatprep.subr.bf16.mxu0 %v1951
    %2498 = vmatpush1.bf16.msra.mxu0 %v1950
    %2499 = vmatprep.subr.bf16.mxu0 %v1959
    %2500 = vmatpush1.bf16.msra.mxu0 %v1958
    %2501 = vmatprep.subr.bf16.mxu0 %v1967
    %2502 = vmatpush1.bf16.msra.mxu0 %v1966
    %2503 = vmatprep.subr.bf16.mxu0 %v1975
    %2504 = vmatpush1.bf16.msra.mxu0 %v1974
    %2505 = vmatprep.subr.bf16.mxu0 %v1983
    %2506 = vmatpush1.bf16.msra.mxu0 %v1982
    %2507 = vmatprep.subr.bf16.mxu0 %v1991
    %2508 = vmatpush1.bf16.msra.mxu0 %v1990
    %2509 = vmatprep.subr.bf16.mxu0 %v1999
    %2510 = vmatpush1.bf16.msra.mxu0 %v1998
    %2511 = vmatprep.subr.bf16.mxu0 %v2007
    %2512 = vmatpush1.bf16.msra.mxu0 %v2006
    %2513 = vmatprep.mubr.bf16.mxu0 %v687
    %2514 = vmatmul.mubr.bf16.gmra.mrb[0].mxu0 %v686
    %v2515 = vpop.f32.mrb[0].mxu0
    %v2516 = vadd.f32 %v2473, %v2515
    %v2517 = vpop.f32.mrb[0].mxu0
    %v2518 = vadd.f32 %v2475, %v2517
    %v2519 = vpop.f32.mrb[0].mxu0
    %v2520 = vadd.f32 %v2477, %v2519
    %v2521 = vpop.f32.mrb[0].mxu0
    %v2522 = vadd.f32 %v2479, %v2521
    %2523 = vdwg.mxu0
    %2524 = vmatprep.subr.bf16.mxu0 %v1761
    %2525 = vmatpush1.bf16.msra.mxu0 %v1760
    %2526 = vmatprep.subr.bf16.mxu0 %v1769
    %2527 = vmatpush1.bf16.msra.mxu0 %v1768
    %2528 = vmatprep.subr.bf16.mxu0 %v1777
    %2529 = vmatpush1.bf16.msra.mxu0 %v1776
    %2530 = vmatprep.subr.bf16.mxu0 %v1785
    %2531 = vmatpush1.bf16.msra.mxu0 %v1784
    %2532 = vmatprep.subr.bf16.mxu0 %v1793
    %2533 = vmatpush1.bf16.msra.mxu0 %v1792
    %2534 = vmatprep.subr.bf16.mxu0 %v1801
    %2535 = vmatpush1.bf16.msra.mxu0 %v1800
    %2536 = vmatprep.subr.bf16.mxu0 %v1809
    %2537 = vmatpush1.bf16.msra.mxu0 %v1808
    %2538 = vmatprep.subr.bf16.mxu0 %v1817
    %2539 = vmatpush1.bf16.msra.mxu0 %v1816
    %2540 = vmatprep.subr.bf16.mxu0 %v1825
    %2541 = vmatpush1.bf16.msra.mxu0 %v1824
    %2542 = vmatprep.subr.bf16.mxu0 %v1833
    %2543 = vmatpush1.bf16.msra.mxu0 %v1832
    %2544 = vmatprep.subr.bf16.mxu0 %v1841
    %2545 = vmatpush1.bf16.msra.mxu0 %v1840
    %2546 = vmatprep.subr.bf16.mxu0 %v1849
    %2547 = vmatpush1.bf16.msra.mxu0 %v1848
    %2548 = vmatprep.subr.bf16.mxu0 %v1857
    %2549 = vmatpush1.bf16.msra.mxu0 %v1856
    %2550 = vmatprep.subr.bf16.mxu0 %v1865
    %2551 = vmatpush1.bf16.msra.mxu0 %v1864
    %2552 = vmatprep.subr.bf16.mxu0 %v1873
    %2553 = vmatpush1.bf16.msra.mxu0 %v1872
    %2554 = vmatprep.subr.bf16.mxu0 %v1881
    %2555 = vmatpush1.bf16.msra.mxu0 %v1880
    %2556 = vmatprep.mubr.bf16.mxu0 %v685
    %2557 = vmatmul.mubr.bf16.gmra.mrb[0].mxu0 %v684
    %v2558 = vpop.f32.mrb[0].mxu0
    %v2559 = vadd.f32 %v973, %v2558
    %v2560 = vpop.f32.mrb[0].mxu0
    %v2561 = vadd.f32 %v977, %v2560
    %v2562 = vpop.f32.mrb[0].mxu0
    %v2563 = vadd.f32 %v973, %v2562
    %v2564 = vpop.f32.mrb[0].mxu0
    %v2565 = vadd.f32 %v977, %v2564
    %2566 = vdwg.mxu0
    %2567 = vmatprep.subr.bf16.mxu0 %v1889
    %2568 = vmatpush1.bf16.msra.mxu0 %v1888
    %2569 = vmatprep.subr.bf16.mxu0 %v1897
    %2570 = vmatpush1.bf16.msra.mxu0 %v1896
    %2571 = vmatprep.subr.bf16.mxu0 %v1905
    %2572 = vmatpush1.bf16.msra.mxu0 %v1904
    %2573 = vmatprep.subr.bf16.mxu0 %v1913
    %2574 = vmatpush1.bf16.msra.mxu0 %v1912
    %2575 = vmatprep.subr.bf16.mxu0 %v1921
    %2576 = vmatpush1.bf16.msra.mxu0 %v1920
    %2577 = vmatprep.subr.bf16.mxu0 %v1929
    %2578 = vmatpush1.bf16.msra.mxu0 %v1928
    %2579 = vmatprep.subr.bf16.mxu0 %v1937
    %2580 = vmatpush1.bf16.msra.mxu0 %v1936
    %2581 = vmatprep.subr.bf16.mxu0 %v1945
    %2582 = vmatpush1.bf16.msra.mxu0 %v1944
    %2583 = vmatprep.subr.bf16.mxu0 %v1953
    %2584 = vmatpush1.bf16.msra.mxu0 %v1952
    %2585 = vmatprep.subr.bf16.mxu0 %v1961
    %2586 = vmatpush1.bf16.msra.mxu0 %v1960
    %2587 = vmatprep.subr.bf16.mxu0 %v1969
    %2588 = vmatpush1.bf16.msra.mxu0 %v1968
    %2589 = vmatprep.subr.bf16.mxu0 %v1977
    %2590 = vmatpush1.bf16.msra.mxu0 %v1976
    %2591 = vmatprep.subr.bf16.mxu0 %v1985
    %2592 = vmatpush1.bf16.msra.mxu0 %v1984
    %2593 = vmatprep.subr.bf16.mxu0 %v1993
    %2594 = vmatpush1.bf16.msra.mxu0 %v1992
    %2595 = vmatprep.subr.bf16.mxu0 %v2001
    %2596 = vmatpush1.bf16.msra.mxu0 %v2000
    %2597 = vmatprep.subr.bf16.mxu0 %v2009
    %2598 = vmatpush1.bf16.msra.mxu0 %v2008
    %2599 = vmatprep.mubr.bf16.mxu0 %v687
    %2600 = vmatmul.mubr.bf16.gmra.mrb[0].mxu0 %v686
    %v2601 = vpop.f32.mrb[0].mxu0
    %v2602 = vadd.f32 %v2559, %v2601
    %v2603 = vpop.f32.mrb[0].mxu0
    %v2604 = vadd.f32 %v2561, %v2603
    %v2605 = vpop.f32.mrb[0].mxu0
    %v2606 = vadd.f32 %v2563, %v2605
    %v2607 = vpop.f32.mrb[0].mxu0
    %v2608 = vadd.f32 %v2565, %v2607
    %2609 = vdwg.mxu0
    %v2610 = vmax.f32 %v2344, 0.0
    %v2611 = vmax.f32 %v2346, 0.0
    %v2612 = vmax.f32 %v2430, 0.0
    %v2613 = vmax.f32 %v2432, 0.0
    %v2614 = vmax.f32 %v2516, 0.0
    %v2615 = vmax.f32 %v2518, 0.0
    %v2616 = vmax.f32 %v2602, 0.0
    %v2617 = vmax.f32 %v2604, 0.0
    %v2618 = vmax.f32 %v2348, 0.0
    %v2619 = vmax.f32 %v2350, 0.0
    %v2620 = vmax.f32 %v2434, 0.0
    %v2621 = vmax.f32 %v2436, 0.0
    %v2622 = vmax.f32 %v2520, 0.0
    %v2623 = vmax.f32 %v2522, 0.0
    %v2624 = vmax.f32 %v2606, 0.0
    %v2625 = vmax.f32 %v2608, 0.0
    %v2626 = vpack.c.bf16 %v2618, %v2610
    %v2627 = vpack.c.bf16 %v2619, %v2611
    %v2628 = vpack.c.bf16 %v2620, %v2612
    %v2629 = vpack.c.bf16 %v2621, %v2613
    %v2630 = vpack.c.bf16 %v2622, %v2614
    %v2631 = vpack.c.bf16 %v2623, %v2615
    %v2632 = vpack.c.bf16 %v2624, %v2616
    %v2633 = vpack.c.bf16 %v2625, %v2617
    %v2634 = vld [vmem:[#allocation11] sm:$0xff]
    %v2635 = vld [vmem:[#allocation11 + $0x8] sm:$0xff]
    %v2636 = vld [vmem:[#allocation11 + $0x10] sm:$0xff]
    %v2637 = vld [vmem:[#allocation11 + $0x18] sm:$0xff]
    %v2638 = vld [vmem:[#allocation11 + $0x20] sm:$0xff]
    %v2639 = vld [vmem:[#allocation11 + $0x28] sm:$0xff]
    %v2640 = vld [vmem:[#allocation11 + $0x30] sm:$0xff]
    %v2641 = vld [vmem:[#allocation11 + $0x38] sm:$0xff]
    %v2642 = vld [vmem:[#allocation11 + $0x40] sm:$0xff]
    %v2643 = vld [vmem:[#allocation11 + $0x48] sm:$0xff]
    %v2644 = vld [vmem:[#allocation11 + $0x50] sm:$0xff]
    %v2645 = vld [vmem:[#allocation11 + $0x58] sm:$0xff]
    %v2646 = vld [vmem:[#allocation11 + $0x60] sm:$0xff]
    %v2647 = vld [vmem:[#allocation11 + $0x68] sm:$0xff]
    %v2648 = vld [vmem:[#allocation11 + $0x70] sm:$0xff]
    %v2649 = vld [vmem:[#allocation11 + $0x78] sm:$0xff]
    %v2650 = vld [vmem:[#allocation11 + $0x80] sm:$0xff]
    %v2651 = vld [vmem:[#allocation11 + $0x88] sm:$0xff]
    %v2652 = vld [vmem:[#allocation11 + $0x90] sm:$0xff]
    %v2653 = vld [vmem:[#allocation11 + $0x98] sm:$0xff]
    %v2654 = vld [vmem:[#allocation11 + $0xa0] sm:$0xff]
    %v2655 = vld [vmem:[#allocation11 + $0xa8] sm:$0xff]
    %v2656 = vld [vmem:[#allocation11 + $0xb0] sm:$0xff]
    %v2657 = vld [vmem:[#allocation11 + $0xb8] sm:$0xff]
    %v2658 = vld [vmem:[#allocation11 + $0xc0] sm:$0xff]
    %v2659 = vld [vmem:[#allocation11 + $0xc8] sm:$0xff]
    %v2660 = vld [vmem:[#allocation11 + $0xd0] sm:$0xff]
    %v2661 = vld [vmem:[#allocation11 + $0xd8] sm:$0xff]
    %v2662 = vld [vmem:[#allocation11 + $0xe0] sm:$0xff]
    %v2663 = vld [vmem:[#allocation11 + $0xe8] sm:$0xff]
    %v2664 = vld [vmem:[#allocation11 + $0xf0] sm:$0xff]
    %v2665 = vld [vmem:[#allocation11 + $0xf8] sm:$0xff]
    %v2666 = vld [vmem:[#allocation11 + $0x100] sm:$0xff]
    %v2667 = vld [vmem:[#allocation11 + $0x108] sm:$0xff]
    %v2668 = vld [vmem:[#allocation11 + $0x110] sm:$0xff]
    %v2669 = vld [vmem:[#allocation11 + $0x118] sm:$0xff]
    %v2670 = vld [vmem:[#allocation11 + $0x120] sm:$0xff]
    %v2671 = vld [vmem:[#allocation11 + $0x128] sm:$0xff]
    %v2672 = vld [vmem:[#allocation11 + $0x130] sm:$0xff]
    %v2673 = vld [vmem:[#allocation11 + $0x138] sm:$0xff]
    %v2674 = vld [vmem:[#allocation11 + $0x140] sm:$0xff]
    %v2675 = vld [vmem:[#allocation11 + $0x148] sm:$0xff]
    %v2676 = vld [vmem:[#allocation11 + $0x150] sm:$0xff]
    %v2677 = vld [vmem:[#allocation11 + $0x158] sm:$0xff]
    %v2678 = vld [vmem:[#allocation11 + $0x160] sm:$0xff]
    %v2679 = vld [vmem:[#allocation11 + $0x168] sm:$0xff]
    %v2680 = vld [vmem:[#allocation11 + $0x170] sm:$0xff]
    %v2681 = vld [vmem:[#allocation11 + $0x178] sm:$0xff]
    %v2682 = vld [vmem:[#allocation11 + $0x180] sm:$0xff]
    %v2683 = vld [vmem:[#allocation11 + $0x188] sm:$0xff]
    %v2684 = vld [vmem:[#allocation11 + $0x190] sm:$0xff]
    %v2685 = vld [vmem:[#allocation11 + $0x198] sm:$0xff]
    %v2686 = vld [vmem:[#allocation11 + $0x1a0] sm:$0xff]
    %v2687 = vld [vmem:[#allocation11 + $0x1a8] sm:$0xff]
    %v2688 = vld [vmem:[#allocation11 + $0x1b0] sm:$0xff]
    %v2689 = vld [vmem:[#allocation11 + $0x1b8] sm:$0xff]
    %v2690 = vld [vmem:[#allocation11 + $0x1c0] sm:$0xff]
    %v2691 = vld [vmem:[#allocation11 + $0x1c8] sm:$0xff]
    %v2692 = vld [vmem:[#allocation11 + $0x1d0] sm:$0xff]
    %v2693 = vld [vmem:[#allocation11 + $0x1d8] sm:$0xff]
    %v2694 = vld [vmem:[#allocation11 + $0x1e0] sm:$0xff]
    %v2695 = vld [vmem:[#allocation11 + $0x1e8] sm:$0xff]
    %v2696 = vld [vmem:[#allocation11 + $0x1f0] sm:$0xff]
    %v2697 = vld [vmem:[#allocation11 + $0x1f8] sm:$0xff]
    %v2698 = vld [vmem:[#allocation11 + $0x200] sm:$0xff]
    %v2699 = vld [vmem:[#allocation11 + $0x208] sm:$0xff]
    %v2700 = vld [vmem:[#allocation11 + $0x210] sm:$0xff]
    %v2701 = vld [vmem:[#allocation11 + $0x218] sm:$0xff]
    %v2702 = vld [vmem:[#allocation11 + $0x220] sm:$0xff]
    %v2703 = vld [vmem:[#allocation11 + $0x228] sm:$0xff]
    %v2704 = vld [vmem:[#allocation11 + $0x230] sm:$0xff]
    %v2705 = vld [vmem:[#allocation11 + $0x238] sm:$0xff]
    %v2706 = vld [vmem:[#allocation11 + $0x240] sm:$0xff]
    %v2707 = vld [vmem:[#allocation11 + $0x248] sm:$0xff]
    %v2708 = vld [vmem:[#allocation11 + $0x250] sm:$0xff]
    %v2709 = vld [vmem:[#allocation11 + $0x258] sm:$0xff]
    %v2710 = vld [vmem:[#allocation11 + $0x260] sm:$0xff]
    %v2711 = vld [vmem:[#allocation11 + $0x268] sm:$0xff]
    %v2712 = vld [vmem:[#allocation11 + $0x270] sm:$0xff]
    %v2713 = vld [vmem:[#allocation11 + $0x278] sm:$0xff]
    %v2714 = vld [vmem:[#allocation11 + $0x280] sm:$0xff]
    %v2715 = vld [vmem:[#allocation11 + $0x288] sm:$0xff]
    %v2716 = vld [vmem:[#allocation11 + $0x290] sm:$0xff]
    %v2717 = vld [vmem:[#allocation11 + $0x298] sm:$0xff]
    %v2718 = vld [vmem:[#allocation11 + $0x2a0] sm:$0xff]
    %v2719 = vld [vmem:[#allocation11 + $0x2a8] sm:$0xff]
    %v2720 = vld [vmem:[#allocation11 + $0x2b0] sm:$0xff]
    %v2721 = vld [vmem:[#allocation11 + $0x2b8] sm:$0xff]
    %v2722 = vld [vmem:[#allocation11 + $0x2c0] sm:$0xff]
    %v2723 = vld [vmem:[#allocation11 + $0x2c8] sm:$0xff]
    %v2724 = vld [vmem:[#allocation11 + $0x2d0] sm:$0xff]
    %v2725 = vld [vmem:[#allocation11 + $0x2d8] sm:$0xff]
    %v2726 = vld [vmem:[#allocation11 + $0x2e0] sm:$0xff]
    %v2727 = vld [vmem:[#allocation11 + $0x2e8] sm:$0xff]
    %v2728 = vld [vmem:[#allocation11 + $0x2f0] sm:$0xff]
    %v2729 = vld [vmem:[#allocation11 + $0x2f8] sm:$0xff]
    %v2730 = vld [vmem:[#allocation11 + $0x300] sm:$0xff]
    %v2731 = vld [vmem:[#allocation11 + $0x308] sm:$0xff]
    %v2732 = vld [vmem:[#allocation11 + $0x310] sm:$0xff]
    %v2733 = vld [vmem:[#allocation11 + $0x318] sm:$0xff]
    %v2734 = vld [vmem:[#allocation11 + $0x320] sm:$0xff]
    %v2735 = vld [vmem:[#allocation11 + $0x328] sm:$0xff]
    %v2736 = vld [vmem:[#allocation11 + $0x330] sm:$0xff]
    %v2737 = vld [vmem:[#allocation11 + $0x338] sm:$0xff]
    %v2738 = vld [vmem:[#allocation11 + $0x340] sm:$0xff]
    %v2739 = vld [vmem:[#allocation11 + $0x348] sm:$0xff]
    %v2740 = vld [vmem:[#allocation11 + $0x350] sm:$0xff]
    %v2741 = vld [vmem:[#allocation11 + $0x358] sm:$0xff]
    %v2742 = vld [vmem:[#allocation11 + $0x360] sm:$0xff]
    %v2743 = vld [vmem:[#allocation11 + $0x368] sm:$0xff]
    %v2744 = vld [vmem:[#allocation11 + $0x370] sm:$0xff]
    %v2745 = vld [vmem:[#allocation11 + $0x378] sm:$0xff]
    %v2746 = vld [vmem:[#allocation11 + $0x380] sm:$0xff]
    %v2747 = vld [vmem:[#allocation11 + $0x388] sm:$0xff]
    %v2748 = vld [vmem:[#allocation11 + $0x390] sm:$0xff]
    %v2749 = vld [vmem:[#allocation11 + $0x398] sm:$0xff]
    %v2750 = vld [vmem:[#allocation11 + $0x3a0] sm:$0xff]
    %v2751 = vld [vmem:[#allocation11 + $0x3a8] sm:$0xff]
    %v2752 = vld [vmem:[#allocation11 + $0x3b0] sm:$0xff]
    %v2753 = vld [vmem:[#allocation11 + $0x3b8] sm:$0xff]
    %v2754 = vld [vmem:[#allocation11 + $0x3c0] sm:$0xff]
    %v2755 = vld [vmem:[#allocation11 + $0x3c8] sm:$0xff]
    %v2756 = vld [vmem:[#allocation11 + $0x3d0] sm:$0xff]
    %v2757 = vld [vmem:[#allocation11 + $0x3d8] sm:$0xff]
    %v2758 = vld [vmem:[#allocation11 + $0x3e0] sm:$0xff]
    %v2759 = vld [vmem:[#allocation11 + $0x3e8] sm:$0xff]
    %v2760 = vld [vmem:[#allocation11 + $0x3f0] sm:$0xff]
    %v2761 = vld [vmem:[#allocation11 + $0x3f8] sm:$0xff]
    %v2762 = vld [vmem:[#allocation11 + $0x400] sm:$0xff]
    %v2763 = vld [vmem:[#allocation11 + $0x408] sm:$0xff]
    %v2764 = vld [vmem:[#allocation11 + $0x410] sm:$0xff]
    %v2765 = vld [vmem:[#allocation11 + $0x418] sm:$0xff]
    %v2766 = vld [vmem:[#allocation11 + $0x420] sm:$0xff]
    %v2767 = vld [vmem:[#allocation11 + $0x428] sm:$0xff]
    %v2768 = vld [vmem:[#allocation11 + $0x430] sm:$0xff]
    %v2769 = vld [vmem:[#allocation11 + $0x438] sm:$0xff]
    %v2770 = vld [vmem:[#allocation11 + $0x440] sm:$0xff]
    %v2771 = vld [vmem:[#allocation11 + $0x448] sm:$0xff]
    %v2772 = vld [vmem:[#allocation11 + $0x450] sm:$0xff]
    %v2773 = vld [vmem:[#allocation11 + $0x458] sm:$0xff]
    %v2774 = vld [vmem:[#allocation11 + $0x460] sm:$0xff]
    %v2775 = vld [vmem:[#allocation11 + $0x468] sm:$0xff]
    %v2776 = vld [vmem:[#allocation11 + $0x470] sm:$0xff]
    %v2777 = vld [vmem:[#allocation11 + $0x478] sm:$0xff]
    %v2778 = vld [vmem:[#allocation11 + $0x480] sm:$0xff]
    %v2779 = vld [vmem:[#allocation11 + $0x488] sm:$0xff]
    %v2780 = vld [vmem:[#allocation11 + $0x490] sm:$0xff]
    %v2781 = vld [vmem:[#allocation11 + $0x498] sm:$0xff]
    %v2782 = vld [vmem:[#allocation11 + $0x4a0] sm:$0xff]
    %v2783 = vld [vmem:[#allocation11 + $0x4a8] sm:$0xff]
    %v2784 = vld [vmem:[#allocation11 + $0x4b0] sm:$0xff]
    %v2785 = vld [vmem:[#allocation11 + $0x4b8] sm:$0xff]
    %v2786 = vld [vmem:[#allocation11 + $0x4c0] sm:$0xff]
    %v2787 = vld [vmem:[#allocation11 + $0x4c8] sm:$0xff]
    %v2788 = vld [vmem:[#allocation11 + $0x4d0] sm:$0xff]
    %v2789 = vld [vmem:[#allocation11 + $0x4d8] sm:$0xff]
    %v2790 = vld [vmem:[#allocation11 + $0x4e0] sm:$0xff]
    %v2791 = vld [vmem:[#allocation11 + $0x4e8] sm:$0xff]
    %v2792 = vld [vmem:[#allocation11 + $0x4f0] sm:$0xff]
    %v2793 = vld [vmem:[#allocation11 + $0x4f8] sm:$0xff]
    %v2794 = vld [vmem:[#allocation11 + $0x500] sm:$0xff]
    %v2795 = vld [vmem:[#allocation11 + $0x508] sm:$0xff]
    %v2796 = vld [vmem:[#allocation11 + $0x510] sm:$0xff]
    %v2797 = vld [vmem:[#allocation11 + $0x518] sm:$0xff]
    %v2798 = vld [vmem:[#allocation11 + $0x520] sm:$0xff]
    %v2799 = vld [vmem:[#allocation11 + $0x528] sm:$0xff]
    %v2800 = vld [vmem:[#allocation11 + $0x530] sm:$0xff]
    %v2801 = vld [vmem:[#allocation11 + $0x538] sm:$0xff]
    %v2802 = vld [vmem:[#allocation11 + $0x540] sm:$0xff]
    %v2803 = vld [vmem:[#allocation11 + $0x548] sm:$0xff]
    %v2804 = vld [vmem:[#allocation11 + $0x550] sm:$0xff]
    %v2805 = vld [vmem:[#allocation11 + $0x558] sm:$0xff]
    %v2806 = vld [vmem:[#allocation11 + $0x560] sm:$0xff]
    %v2807 = vld [vmem:[#allocation11 + $0x568] sm:$0xff]
    %v2808 = vld [vmem:[#allocation11 + $0x570] sm:$0xff]
    %v2809 = vld [vmem:[#allocation11 + $0x578] sm:$0xff]
    %v2810 = vld [vmem:[#allocation11 + $0x580] sm:$0xff]
    %v2811 = vld [vmem:[#allocation11 + $0x588] sm:$0xff]
    %v2812 = vld [vmem:[#allocation11 + $0x590] sm:$0xff]
    %v2813 = vld [vmem:[#allocation11 + $0x598] sm:$0xff]
    %v2814 = vld [vmem:[#allocation11 + $0x5a0] sm:$0xff]
    %v2815 = vld [vmem:[#allocation11 + $0x5a8] sm:$0xff]
    %v2816 = vld [vmem:[#allocation11 + $0x5b0] sm:$0xff]
    %v2817 = vld [vmem:[#allocation11 + $0x5b8] sm:$0xff]
    %v2818 = vld [vmem:[#allocation11 + $0x5c0] sm:$0xff]
    %v2819 = vld [vmem:[#allocation11 + $0x5c8] sm:$0xff]
    %v2820 = vld [vmem:[#allocation11 + $0x5d0] sm:$0xff]
    %v2821 = vld [vmem:[#allocation11 + $0x5d8] sm:$0xff]
    %v2822 = vld [vmem:[#allocation11 + $0x5e0] sm:$0xff]
    %v2823 = vld [vmem:[#allocation11 + $0x5e8] sm:$0xff]
    %v2824 = vld [vmem:[#allocation11 + $0x5f0] sm:$0xff]
    %v2825 = vld [vmem:[#allocation11 + $0x5f8] sm:$0xff]
    %v2826 = vld [vmem:[#allocation11 + $0x600] sm:$0xff]
    %v2827 = vld [vmem:[#allocation11 + $0x608] sm:$0xff]
    %v2828 = vld [vmem:[#allocation11 + $0x610] sm:$0xff]
    %v2829 = vld [vmem:[#allocation11 + $0x618] sm:$0xff]
    %v2830 = vld [vmem:[#allocation11 + $0x620] sm:$0xff]
    %v2831 = vld [vmem:[#allocation11 + $0x628] sm:$0xff]
    %v2832 = vld [vmem:[#allocation11 + $0x630] sm:$0xff]
    %v2833 = vld [vmem:[#allocation11 + $0x638] sm:$0xff]
    %v2834 = vld [vmem:[#allocation11 + $0x640] sm:$0xff]
    %v2835 = vld [vmem:[#allocation11 + $0x648] sm:$0xff]
    %v2836 = vld [vmem:[#allocation11 + $0x650] sm:$0xff]
    %v2837 = vld [vmem:[#allocation11 + $0x658] sm:$0xff]
    %v2838 = vld [vmem:[#allocation11 + $0x660] sm:$0xff]
    %v2839 = vld [vmem:[#allocation11 + $0x668] sm:$0xff]
    %v2840 = vld [vmem:[#allocation11 + $0x670] sm:$0xff]
    %v2841 = vld [vmem:[#allocation11 + $0x678] sm:$0xff]
    %v2842 = vld [vmem:[#allocation11 + $0x680] sm:$0xff]
    %v2843 = vld [vmem:[#allocation11 + $0x688] sm:$0xff]
    %v2844 = vld [vmem:[#allocation11 + $0x690] sm:$0xff]
    %v2845 = vld [vmem:[#allocation11 + $0x698] sm:$0xff]
    %v2846 = vld [vmem:[#allocation11 + $0x6a0] sm:$0xff]
    %v2847 = vld [vmem:[#allocation11 + $0x6a8] sm:$0xff]
    %v2848 = vld [vmem:[#allocation11 + $0x6b0] sm:$0xff]
    %v2849 = vld [vmem:[#allocation11 + $0x6b8] sm:$0xff]
    %v2850 = vld [vmem:[#allocation11 + $0x6c0] sm:$0xff]
    %v2851 = vld [vmem:[#allocation11 + $0x6c8] sm:$0xff]
    %v2852 = vld [vmem:[#allocation11 + $0x6d0] sm:$0xff]
    %v2853 = vld [vmem:[#allocation11 + $0x6d8] sm:$0xff]
    %v2854 = vld [vmem:[#allocation11 + $0x6e0] sm:$0xff]
    %v2855 = vld [vmem:[#allocation11 + $0x6e8] sm:$0xff]
    %v2856 = vld [vmem:[#allocation11 + $0x6f0] sm:$0xff]
    %v2857 = vld [vmem:[#allocation11 + $0x6f8] sm:$0xff]
    %v2858 = vld [vmem:[#allocation11 + $0x700] sm:$0xff]
    %v2859 = vld [vmem:[#allocation11 + $0x708] sm:$0xff]
    %v2860 = vld [vmem:[#allocation11 + $0x710] sm:$0xff]
    %v2861 = vld [vmem:[#allocation11 + $0x718] sm:$0xff]
    %v2862 = vld [vmem:[#allocation11 + $0x720] sm:$0xff]
    %v2863 = vld [vmem:[#allocation11 + $0x728] sm:$0xff]
    %v2864 = vld [vmem:[#allocation11 + $0x730] sm:$0xff]
    %v2865 = vld [vmem:[#allocation11 + $0x738] sm:$0xff]
    %v2866 = vld [vmem:[#allocation11 + $0x740] sm:$0xff]
    %v2867 = vld [vmem:[#allocation11 + $0x748] sm:$0xff]
    %v2868 = vld [vmem:[#allocation11 + $0x750] sm:$0xff]
    %v2869 = vld [vmem:[#allocation11 + $0x758] sm:$0xff]
    %v2870 = vld [vmem:[#allocation11 + $0x760] sm:$0xff]
    %v2871 = vld [vmem:[#allocation11 + $0x768] sm:$0xff]
    %v2872 = vld [vmem:[#allocation11 + $0x770] sm:$0xff]
    %v2873 = vld [vmem:[#allocation11 + $0x778] sm:$0xff]
    %v2874 = vld [vmem:[#allocation11 + $0x780] sm:$0xff]
    %v2875 = vld [vmem:[#allocation11 + $0x788] sm:$0xff]
    %v2876 = vld [vmem:[#allocation11 + $0x790] sm:$0xff]
    %v2877 = vld [vmem:[#allocation11 + $0x798] sm:$0xff]
    %v2878 = vld [vmem:[#allocation11 + $0x7a0] sm:$0xff]
    %v2879 = vld [vmem:[#allocation11 + $0x7a8] sm:$0xff]
    %v2880 = vld [vmem:[#allocation11 + $0x7b0] sm:$0xff]
    %v2881 = vld [vmem:[#allocation11 + $0x7b8] sm:$0xff]
    %v2882 = vld [vmem:[#allocation11 + $0x7c0] sm:$0xff]
    %v2883 = vld [vmem:[#allocation11 + $0x7c8] sm:$0xff]
    %v2884 = vld [vmem:[#allocation11 + $0x7d0] sm:$0xff]
    %v2885 = vld [vmem:[#allocation11 + $0x7d8] sm:$0xff]
    %v2886 = vld [vmem:[#allocation11 + $0x7e0] sm:$0xff]
    %v2887 = vld [vmem:[#allocation11 + $0x7e8] sm:$0xff]
    %v2888 = vld [vmem:[#allocation11 + $0x7f0] sm:$0xff]
    %v2889 = vld [vmem:[#allocation11 + $0x7f8] sm:$0xff]
    %v2890 = vld [vmem:[#allocation11 + $0x800] sm:$0xff]
    %v2891 = vld [vmem:[#allocation11 + $0x808] sm:$0xff]
    %v2892 = vld [vmem:[#allocation11 + $0x810] sm:$0xff]
    %v2893 = vld [vmem:[#allocation11 + $0x818] sm:$0xff]
    %v2894 = vld [vmem:[#allocation11 + $0x820] sm:$0xff]
    %v2895 = vld [vmem:[#allocation11 + $0x828] sm:$0xff]
    %v2896 = vld [vmem:[#allocation11 + $0x830] sm:$0xff]
    %v2897 = vld [vmem:[#allocation11 + $0x838] sm:$0xff]
    %v2898 = vld [vmem:[#allocation11 + $0x840] sm:$0xff]
    %v2899 = vld [vmem:[#allocation11 + $0x848] sm:$0xff]
    %v2900 = vld [vmem:[#allocation11 + $0x850] sm:$0xff]
    %v2901 = vld [vmem:[#allocation11 + $0x858] sm:$0xff]
    %v2902 = vld [vmem:[#allocation11 + $0x860] sm:$0xff]
    %v2903 = vld [vmem:[#allocation11 + $0x868] sm:$0xff]
    %v2904 = vld [vmem:[#allocation11 + $0x870] sm:$0xff]
    %v2905 = vld [vmem:[#allocation11 + $0x878] sm:$0xff]
    %v2906 = vld [vmem:[#allocation11 + $0x880] sm:$0xff]
    %v2907 = vld [vmem:[#allocation11 + $0x888] sm:$0xff]
    %v2908 = vld [vmem:[#allocation11 + $0x890] sm:$0xff]
    %v2909 = vld [vmem:[#allocation11 + $0x898] sm:$0xff]
    %v2910 = vld [vmem:[#allocation11 + $0x8a0] sm:$0xff]
    %v2911 = vld [vmem:[#allocation11 + $0x8a8] sm:$0xff]
    %v2912 = vld [vmem:[#allocation11 + $0x8b0] sm:$0xff]
    %v2913 = vld [vmem:[#allocation11 + $0x8b8] sm:$0xff]
    %v2914 = vld [vmem:[#allocation11 + $0x8c0] sm:$0xff]
    %v2915 = vld [vmem:[#allocation11 + $0x8c8] sm:$0xff]
    %v2916 = vld [vmem:[#allocation11 + $0x8d0] sm:$0xff]
    %v2917 = vld [vmem:[#allocation11 + $0x8d8] sm:$0xff]
    %v2918 = vld [vmem:[#allocation11 + $0x8e0] sm:$0xff]
    %v2919 = vld [vmem:[#allocation11 + $0x8e8] sm:$0xff]
    %v2920 = vld [vmem:[#allocation11 + $0x8f0] sm:$0xff]
    %v2921 = vld [vmem:[#allocation11 + $0x8f8] sm:$0xff]
    %v2922 = vld [vmem:[#allocation11 + $0x900] sm:$0xff]
    %v2923 = vld [vmem:[#allocation11 + $0x908] sm:$0xff]
    %v2924 = vld [vmem:[#allocation11 + $0x910] sm:$0xff]
    %v2925 = vld [vmem:[#allocation11 + $0x918] sm:$0xff]
    %v2926 = vld [vmem:[#allocation11 + $0x920] sm:$0xff]
    %v2927 = vld [vmem:[#allocation11 + $0x928] sm:$0xff]
    %v2928 = vld [vmem:[#allocation11 + $0x930] sm:$0xff]
    %v2929 = vld [vmem:[#allocation11 + $0x938] sm:$0xff]
    %v2930 = vld [vmem:[#allocation11 + $0x940] sm:$0xff]
    %v2931 = vld [vmem:[#allocation11 + $0x948] sm:$0xff]
    %v2932 = vld [vmem:[#allocation11 + $0x950] sm:$0xff]
    %v2933 = vld [vmem:[#allocation11 + $0x958] sm:$0xff]
    %v2934 = vld [vmem:[#allocation11 + $0x960] sm:$0xff]
    %v2935 = vld [vmem:[#allocation11 + $0x968] sm:$0xff]
    %v2936 = vld [vmem:[#allocation11 + $0x970] sm:$0xff]
    %v2937 = vld [vmem:[#allocation11 + $0x978] sm:$0xff]
    %v2938 = vld [vmem:[#allocation11 + $0x980] sm:$0xff]
    %v2939 = vld [vmem:[#allocation11 + $0x988] sm:$0xff]
    %v2940 = vld [vmem:[#allocation11 + $0x990] sm:$0xff]
    %v2941 = vld [vmem:[#allocation11 + $0x998] sm:$0xff]
    %v2942 = vld [vmem:[#allocation11 + $0x9a0] sm:$0xff]
    %v2943 = vld [vmem:[#allocation11 + $0x9a8] sm:$0xff]
    %v2944 = vld [vmem:[#allocation11 + $0x9b0] sm:$0xff]
    %v2945 = vld [vmem:[#allocation11 + $0x9b8] sm:$0xff]
    %v2946 = vld [vmem:[#allocation11 + $0x9c0] sm:$0xff]
    %v2947 = vld [vmem:[#allocation11 + $0x9c8] sm:$0xff]
    %v2948 = vld [vmem:[#allocation11 + $0x9d0] sm:$0xff]
    %v2949 = vld [vmem:[#allocation11 + $0x9d8] sm:$0xff]
    %v2950 = vld [vmem:[#allocation11 + $0x9e0] sm:$0xff]
    %v2951 = vld [vmem:[#allocation11 + $0x9e8] sm:$0xff]
    %v2952 = vld [vmem:[#allocation11 + $0x9f0] sm:$0xff]
    %v2953 = vld [vmem:[#allocation11 + $0x9f8] sm:$0xff]
    %v2954 = vld [vmem:[#allocation11 + $0xa00] sm:$0xff]
    %v2955 = vld [vmem:[#allocation11 + $0xa08] sm:$0xff]
    %v2956 = vld [vmem:[#allocation11 + $0xa10] sm:$0xff]
    %v2957 = vld [vmem:[#allocation11 + $0xa18] sm:$0xff]
    %v2958 = vld [vmem:[#allocation11 + $0xa20] sm:$0xff]
    %v2959 = vld [vmem:[#allocation11 + $0xa28] sm:$0xff]
    %v2960 = vld [vmem:[#allocation11 + $0xa30] sm:$0xff]
    %v2961 = vld [vmem:[#allocation11 + $0xa38] sm:$0xff]
    %v2962 = vld [vmem:[#allocation11 + $0xa40] sm:$0xff]
    %v2963 = vld [vmem:[#allocation11 + $0xa48] sm:$0xff]
    %v2964 = vld [vmem:[#allocation11 + $0xa50] sm:$0xff]
    %v2965 = vld [vmem:[#allocation11 + $0xa58] sm:$0xff]
    %v2966 = vld [vmem:[#allocation11 + $0xa60] sm:$0xff]
    %v2967 = vld [vmem:[#allocation11 + $0xa68] sm:$0xff]
    %v2968 = vld [vmem:[#allocation11 + $0xa70] sm:$0xff]
    %v2969 = vld [vmem:[#allocation11 + $0xa78] sm:$0xff]
    %v2970 = vld [vmem:[#allocation11 + $0xa80] sm:$0xff]
    %v2971 = vld [vmem:[#allocation11 + $0xa88] sm:$0xff]
    %v2972 = vld [vmem:[#allocation11 + $0xa90] sm:$0xff]
    %v2973 = vld [vmem:[#allocation11 + $0xa98] sm:$0xff]
    %v2974 = vld [vmem:[#allocation11 + $0xaa0] sm:$0xff]
    %v2975 = vld [vmem:[#allocation11 + $0xaa8] sm:$0xff]
    %v2976 = vld [vmem:[#allocation11 + $0xab0] sm:$0xff]
    %v2977 = vld [vmem:[#allocation11 + $0xab8] sm:$0xff]
    %v2978 = vld [vmem:[#allocation11 + $0xac0] sm:$0xff]
    %v2979 = vld [vmem:[#allocation11 + $0xac8] sm:$0xff]
    %v2980 = vld [vmem:[#allocation11 + $0xad0] sm:$0xff]
    %v2981 = vld [vmem:[#allocation11 + $0xad8] sm:$0xff]
    %v2982 = vld [vmem:[#allocation11 + $0xae0] sm:$0xff]
    %v2983 = vld [vmem:[#allocation11 + $0xae8] sm:$0xff]
    %v2984 = vld [vmem:[#allocation11 + $0xaf0] sm:$0xff]
    %v2985 = vld [vmem:[#allocation11 + $0xaf8] sm:$0xff]
    %v2986 = vld [vmem:[#allocation11 + $0xb00] sm:$0xff]
    %v2987 = vld [vmem:[#allocation11 + $0xb08] sm:$0xff]
    %v2988 = vld [vmem:[#allocation11 + $0xb10] sm:$0xff]
    %v2989 = vld [vmem:[#allocation11 + $0xb18] sm:$0xff]
    %v2990 = vld [vmem:[#allocation11 + $0xb20] sm:$0xff]
    %v2991 = vld [vmem:[#allocation11 + $0xb28] sm:$0xff]
    %v2992 = vld [vmem:[#allocation11 + $0xb30] sm:$0xff]
    %v2993 = vld [vmem:[#allocation11 + $0xb38] sm:$0xff]
    %v2994 = vld [vmem:[#allocation11 + $0xb40] sm:$0xff]
    %v2995 = vld [vmem:[#allocation11 + $0xb48] sm:$0xff]
    %v2996 = vld [vmem:[#allocation11 + $0xb50] sm:$0xff]
    %v2997 = vld [vmem:[#allocation11 + $0xb58] sm:$0xff]
    %v2998 = vld [vmem:[#allocation11 + $0xb60] sm:$0xff]
    %v2999 = vld [vmem:[#allocation11 + $0xb68] sm:$0xff]
    %v3000 = vld [vmem:[#allocation11 + $0xb70] sm:$0xff]
    %v3001 = vld [vmem:[#allocation11 + $0xb78] sm:$0xff]
    %v3002 = vld [vmem:[#allocation11 + $0xb80] sm:$0xff]
    %v3003 = vld [vmem:[#allocation11 + $0xb88] sm:$0xff]
    %v3004 = vld [vmem:[#allocation11 + $0xb90] sm:$0xff]
    %v3005 = vld [vmem:[#allocation11 + $0xb98] sm:$0xff]
    %v3006 = vld [vmem:[#allocation11 + $0xba0] sm:$0xff]
    %v3007 = vld [vmem:[#allocation11 + $0xba8] sm:$0xff]
    %v3008 = vld [vmem:[#allocation11 + $0xbb0] sm:$0xff]
    %v3009 = vld [vmem:[#allocation11 + $0xbb8] sm:$0xff]
    %v3010 = vld [vmem:[#allocation11 + $0xbc0] sm:$0xff]
    %v3011 = vld [vmem:[#allocation11 + $0xbc8] sm:$0xff]
    %v3012 = vld [vmem:[#allocation11 + $0xbd0] sm:$0xff]
    %v3013 = vld [vmem:[#allocation11 + $0xbd8] sm:$0xff]
    %v3014 = vld [vmem:[#allocation11 + $0xbe0] sm:$0xff]
    %v3015 = vld [vmem:[#allocation11 + $0xbe8] sm:$0xff]
    %v3016 = vld [vmem:[#allocation11 + $0xbf0] sm:$0xff]
    %v3017 = vld [vmem:[#allocation11 + $0xbf8] sm:$0xff]
    %v3018 = vld [vmem:[#allocation13] sm:$0x3f]
    %v3020 = vlaneseq
    %v3021 = vshrl.u32 %v3020, 7
    %v3022 = vsub.s32 0, %v3021
    %v3023 = vrot.slane %v3018, %v3022
    %v3024 = vlaneseq
    %v3025 = vshrl.u32 %v3024, 7
    %v3026 = vsub.s32 1, %v3025
    %v3027 = vrot.slane %v3018, %v3026
    %v3028 = vlaneseq
    %v3029 = vshrl.u32 %v3028, 7
    %v3030 = vsub.s32 2, %v3029
    %v3031 = vrot.slane %v3018, %v3030
    %v3032 = vlaneseq
    %v3033 = vshrl.u32 %v3032, 7
    %v3034 = vsub.s32 3, %v3033
    %v3035 = vrot.slane %v3018, %v3034
    %v3036 = vlaneseq
    %v3037 = vshrl.u32 %v3036, 7
    %v3038 = vsub.s32 4, %v3037
    %v3039 = vrot.slane %v3018, %v3038
    %v3040 = vlaneseq
    %v3041 = vshrl.u32 %v3040, 7
    %v3042 = vsub.s32 5, %v3041
    %v3043 = vrot.slane %v3018, %v3042
    %v3434 = vunpack.c.l.b16 %v2634
    %v3435 = vunpack.c.h.b16 %v2634
    %v3436 = vunpack.c.l.b16 %v2635
    %v3437 = vunpack.c.h.b16 %v2635
    %v3438 = vunpack.c.l.b16 %v2636
    %v3439 = vunpack.c.h.b16 %v2636
    %v3440 = vunpack.c.l.b16 %v2637
    %v3441 = vunpack.c.h.b16 %v2637
    %v3442 = vunpack.c.l.b16 %v2638
    %v3443 = vunpack.c.h.b16 %v2638
    %v3444 = vunpack.c.l.b16 %v2639
    %v3445 = vunpack.c.h.b16 %v2639
    %v3446 = vunpack.c.l.b16 %v2640
    %v3447 = vunpack.c.h.b16 %v2640
    %v3448 = vunpack.c.l.b16 %v2641
    %v3449 = vunpack.c.h.b16 %v2641
    %v3450 = vunpack.c.l.b16 %v2642
    %v3451 = vunpack.c.h.b16 %v2642
    %v3452 = vunpack.c.l.b16 %v2643
    %v3453 = vunpack.c.h.b16 %v2643
    %v3454 = vunpack.c.l.b16 %v2644
    %v3455 = vunpack.c.h.b16 %v2644
    %v3456 = vunpack.c.l.b16 %v2645
    %v3457 = vunpack.c.h.b16 %v2645
    %v3458 = vunpack.c.l.b16 %v2646
    %v3459 = vunpack.c.h.b16 %v2646
    %v3460 = vunpack.c.l.b16 %v2647
    %v3461 = vunpack.c.h.b16 %v2647
    %v3462 = vunpack.c.l.b16 %v2648
    %v3463 = vunpack.c.h.b16 %v2648
    %v3464 = vunpack.c.l.b16 %v2649
    %v3465 = vunpack.c.h.b16 %v2649
    %v3466 = vunpack.c.l.b16 %v2650
    %v3467 = vunpack.c.h.b16 %v2650
    %v3468 = vunpack.c.l.b16 %v2651
    %v3469 = vunpack.c.h.b16 %v2651
    %v3470 = vunpack.c.l.b16 %v2652
    %v3471 = vunpack.c.h.b16 %v2652
    %v3472 = vunpack.c.l.b16 %v2653
    %v3473 = vunpack.c.h.b16 %v2653
    %v3474 = vunpack.c.l.b16 %v2654
    %v3475 = vunpack.c.h.b16 %v2654
    %v3476 = vunpack.c.l.b16 %v2655
    %v3477 = vunpack.c.h.b16 %v2655
    %v3478 = vunpack.c.l.b16 %v2656
    %v3479 = vunpack.c.h.b16 %v2656
    %v3480 = vunpack.c.l.b16 %v2657
    %v3481 = vunpack.c.h.b16 %v2657
    %v3482 = vunpack.c.l.b16 %v2658
    %v3483 = vunpack.c.h.b16 %v2658
    %v3484 = vunpack.c.l.b16 %v2659
    %v3485 = vunpack.c.h.b16 %v2659
    %v3486 = vunpack.c.l.b16 %v2660
    %v3487 = vunpack.c.h.b16 %v2660
    %v3488 = vunpack.c.l.b16 %v2661
    %v3489 = vunpack.c.h.b16 %v2661
    %v3490 = vunpack.c.l.b16 %v2662
    %v3491 = vunpack.c.h.b16 %v2662
    %v3492 = vunpack.c.l.b16 %v2663
    %v3493 = vunpack.c.h.b16 %v2663
    %v3494 = vunpack.c.l.b16 %v2664
    %v3495 = vunpack.c.h.b16 %v2664
    %v3496 = vunpack.c.l.b16 %v2665
    %v3497 = vunpack.c.h.b16 %v2665
    %v3498 = vunpack.c.l.b16 %v2666
    %v3499 = vunpack.c.h.b16 %v2666
    %v3500 = vunpack.c.l.b16 %v2667
    %v3501 = vunpack.c.h.b16 %v2667
    %v3502 = vunpack.c.l.b16 %v2668
    %v3503 = vunpack.c.h.b16 %v2668
    %v3504 = vunpack.c.l.b16 %v2669
    %v3505 = vunpack.c.h.b16 %v2669
    %v3506 = vunpack.c.l.b16 %v2670
    %v3507 = vunpack.c.h.b16 %v2670
    %v3508 = vunpack.c.l.b16 %v2671
    %v3509 = vunpack.c.h.b16 %v2671
    %v3510 = vunpack.c.l.b16 %v2672
    %v3511 = vunpack.c.h.b16 %v2672
    %v3512 = vunpack.c.l.b16 %v2673
    %v3513 = vunpack.c.h.b16 %v2673
    %v3514 = vunpack.c.l.b16 %v2674
    %v3515 = vunpack.c.h.b16 %v2674
    %v3516 = vunpack.c.l.b16 %v2675
    %v3517 = vunpack.c.h.b16 %v2675
    %v3518 = vunpack.c.l.b16 %v2676
    %v3519 = vunpack.c.h.b16 %v2676
    %v3520 = vunpack.c.l.b16 %v2677
    %v3521 = vunpack.c.h.b16 %v2677
    %v3522 = vunpack.c.l.b16 %v2678
    %v3523 = vunpack.c.h.b16 %v2678
    %v3524 = vunpack.c.l.b16 %v2679
    %v3525 = vunpack.c.h.b16 %v2679
    %v3526 = vunpack.c.l.b16 %v2680
    %v3527 = vunpack.c.h.b16 %v2680
    %v3528 = vunpack.c.l.b16 %v2681
    %v3529 = vunpack.c.h.b16 %v2681
    %v3530 = vunpack.c.l.b16 %v2682
    %v3531 = vunpack.c.h.b16 %v2682
    %v3532 = vunpack.c.l.b16 %v2683
    %v3533 = vunpack.c.h.b16 %v2683
    %v3534 = vunpack.c.l.b16 %v2684
    %v3535 = vunpack.c.h.b16 %v2684
    %v3536 = vunpack.c.l.b16 %v2685
    %v3537 = vunpack.c.h.b16 %v2685
    %v3538 = vunpack.c.l.b16 %v2686
    %v3539 = vunpack.c.h.b16 %v2686
    %v3540 = vunpack.c.l.b16 %v2687
    %v3541 = vunpack.c.h.b16 %v2687
    %v3542 = vunpack.c.l.b16 %v2688
    %v3543 = vunpack.c.h.b16 %v2688
    %v3544 = vunpack.c.l.b16 %v2689
    %v3545 = vunpack.c.h.b16 %v2689
    %v3546 = vunpack.c.l.b16 %v2690
    %v3547 = vunpack.c.h.b16 %v2690
    %v3548 = vunpack.c.l.b16 %v2691
    %v3549 = vunpack.c.h.b16 %v2691
    %v3550 = vunpack.c.l.b16 %v2692
    %v3551 = vunpack.c.h.b16 %v2692
    %v3552 = vunpack.c.l.b16 %v2693
    %v3553 = vunpack.c.h.b16 %v2693
    %v3554 = vunpack.c.l.b16 %v2694
    %v3555 = vunpack.c.h.b16 %v2694
    %v3556 = vunpack.c.l.b16 %v2695
    %v3557 = vunpack.c.h.b16 %v2695
    %v3558 = vunpack.c.l.b16 %v2696
    %v3559 = vunpack.c.h.b16 %v2696
    %v3560 = vunpack.c.l.b16 %v2697
    %v3561 = vunpack.c.h.b16 %v2697
    %v3562 = vunpack.c.l.b16 %v2698
    %v3563 = vunpack.c.h.b16 %v2698
    %v3564 = vunpack.c.l.b16 %v2699
    %v3565 = vunpack.c.h.b16 %v2699
    %v3566 = vunpack.c.l.b16 %v2700
    %v3567 = vunpack.c.h.b16 %v2700
    %v3568 = vunpack.c.l.b16 %v2701
    %v3569 = vunpack.c.h.b16 %v2701
    %v3570 = vunpack.c.l.b16 %v2702
    %v3571 = vunpack.c.h.b16 %v2702
    %v3572 = vunpack.c.l.b16 %v2703
    %v3573 = vunpack.c.h.b16 %v2703
    %v3574 = vunpack.c.l.b16 %v2704
    %v3575 = vunpack.c.h.b16 %v2704
    %v3576 = vunpack.c.l.b16 %v2705
    %v3577 = vunpack.c.h.b16 %v2705
    %v3578 = vunpack.c.l.b16 %v2706
    %v3579 = vunpack.c.h.b16 %v2706
    %v3580 = vunpack.c.l.b16 %v2707
    %v3581 = vunpack.c.h.b16 %v2707
    %v3582 = vunpack.c.l.b16 %v2708
    %v3583 = vunpack.c.h.b16 %v2708
    %v3584 = vunpack.c.l.b16 %v2709
    %v3585 = vunpack.c.h.b16 %v2709
    %v3586 = vunpack.c.l.b16 %v2710
    %v3587 = vunpack.c.h.b16 %v2710
    %v3588 = vunpack.c.l.b16 %v2711
    %v3589 = vunpack.c.h.b16 %v2711
    %v3590 = vunpack.c.l.b16 %v2712
    %v3591 = vunpack.c.h.b16 %v2712
    %v3592 = vunpack.c.l.b16 %v2713
    %v3593 = vunpack.c.h.b16 %v2713
    %v3594 = vunpack.c.l.b16 %v2714
    %v3595 = vunpack.c.h.b16 %v2714
    %v3596 = vunpack.c.l.b16 %v2715
    %v3597 = vunpack.c.h.b16 %v2715
    %v3598 = vunpack.c.l.b16 %v2716
    %v3599 = vunpack.c.h.b16 %v2716
    %v3600 = vunpack.c.l.b16 %v2717
    %v3601 = vunpack.c.h.b16 %v2717
    %v3602 = vunpack.c.l.b16 %v2718
    %v3603 = vunpack.c.h.b16 %v2718
    %v3604 = vunpack.c.l.b16 %v2719
    %v3605 = vunpack.c.h.b16 %v2719
    %v3606 = vunpack.c.l.b16 %v2720
    %v3607 = vunpack.c.h.b16 %v2720
    %v3608 = vunpack.c.l.b16 %v2721
    %v3609 = vunpack.c.h.b16 %v2721
    %v3610 = vunpack.c.l.b16 %v2722
    %v3611 = vunpack.c.h.b16 %v2722
    %v3612 = vunpack.c.l.b16 %v2723
    %v3613 = vunpack.c.h.b16 %v2723
    %v3614 = vunpack.c.l.b16 %v2724
    %v3615 = vunpack.c.h.b16 %v2724
    %v3616 = vunpack.c.l.b16 %v2725
    %v3617 = vunpack.c.h.b16 %v2725
    %v3618 = vunpack.c.l.b16 %v2726
    %v3619 = vunpack.c.h.b16 %v2726
    %v3620 = vunpack.c.l.b16 %v2727
    %v3621 = vunpack.c.h.b16 %v2727
    %v3622 = vunpack.c.l.b16 %v2728
    %v3623 = vunpack.c.h.b16 %v2728
    %v3624 = vunpack.c.l.b16 %v2729
    %v3625 = vunpack.c.h.b16 %v2729
    %v3626 = vunpack.c.l.b16 %v2730
    %v3627 = vunpack.c.h.b16 %v2730
    %v3628 = vunpack.c.l.b16 %v2731
    %v3629 = vunpack.c.h.b16 %v2731
    %v3630 = vunpack.c.l.b16 %v2732
    %v3631 = vunpack.c.h.b16 %v2732
    %v3632 = vunpack.c.l.b16 %v2733
    %v3633 = vunpack.c.h.b16 %v2733
    %v3634 = vunpack.c.l.b16 %v2734
    %v3635 = vunpack.c.h.b16 %v2734
    %v3636 = vunpack.c.l.b16 %v2735
    %v3637 = vunpack.c.h.b16 %v2735
    %v3638 = vunpack.c.l.b16 %v2736
    %v3639 = vunpack.c.h.b16 %v2736
    %v3640 = vunpack.c.l.b16 %v2737
    %v3641 = vunpack.c.h.b16 %v2737
    %v3642 = vunpack.c.l.b16 %v2738
    %v3643 = vunpack.c.h.b16 %v2738
    %v3644 = vunpack.c.l.b16 %v2739
    %v3645 = vunpack.c.h.b16 %v2739
    %v3646 = vunpack.c.l.b16 %v2740
    %v3647 = vunpack.c.h.b16 %v2740
    %v3648 = vunpack.c.l.b16 %v2741
    %v3649 = vunpack.c.h.b16 %v2741
    %v3650 = vunpack.c.l.b16 %v2742
    %v3651 = vunpack.c.h.b16 %v2742
    %v3652 = vunpack.c.l.b16 %v2743
    %v3653 = vunpack.c.h.b16 %v2743
    %v3654 = vunpack.c.l.b16 %v2744
    %v3655 = vunpack.c.h.b16 %v2744
    %v3656 = vunpack.c.l.b16 %v2745
    %v3657 = vunpack.c.h.b16 %v2745
    %v3658 = vunpack.c.l.b16 %v2746
    %v3659 = vunpack.c.h.b16 %v2746
    %v3660 = vunpack.c.l.b16 %v2747
    %v3661 = vunpack.c.h.b16 %v2747
    %v3662 = vunpack.c.l.b16 %v2748
    %v3663 = vunpack.c.h.b16 %v2748
    %v3664 = vunpack.c.l.b16 %v2749
    %v3665 = vunpack.c.h.b16 %v2749
    %v3666 = vunpack.c.l.b16 %v2750
    %v3667 = vunpack.c.h.b16 %v2750
    %v3668 = vunpack.c.l.b16 %v2751
    %v3669 = vunpack.c.h.b16 %v2751
    %v3670 = vunpack.c.l.b16 %v2752
    %v3671 = vunpack.c.h.b16 %v2752
    %v3672 = vunpack.c.l.b16 %v2753
    %v3673 = vunpack.c.h.b16 %v2753
    %v3674 = vunpack.c.l.b16 %v2754
    %v3675 = vunpack.c.h.b16 %v2754
    %v3676 = vunpack.c.l.b16 %v2755
    %v3677 = vunpack.c.h.b16 %v2755
    %v3678 = vunpack.c.l.b16 %v2756
    %v3679 = vunpack.c.h.b16 %v2756
    %v3680 = vunpack.c.l.b16 %v2757
    %v3681 = vunpack.c.h.b16 %v2757
    %v3682 = vunpack.c.l.b16 %v2758
    %v3683 = vunpack.c.h.b16 %v2758
    %v3684 = vunpack.c.l.b16 %v2759
    %v3685 = vunpack.c.h.b16 %v2759
    %v3686 = vunpack.c.l.b16 %v2760
    %v3687 = vunpack.c.h.b16 %v2760
    %v3688 = vunpack.c.l.b16 %v2761
    %v3689 = vunpack.c.h.b16 %v2761
    %v3690 = vunpack.c.l.b16 %v2762
    %v3691 = vunpack.c.h.b16 %v2762
    %v3692 = vunpack.c.l.b16 %v2763
    %v3693 = vunpack.c.h.b16 %v2763
    %v3694 = vunpack.c.l.b16 %v2764
    %v3695 = vunpack.c.h.b16 %v2764
    %v3696 = vunpack.c.l.b16 %v2765
    %v3697 = vunpack.c.h.b16 %v2765
    %v3698 = vunpack.c.l.b16 %v2766
    %v3699 = vunpack.c.h.b16 %v2766
    %v3700 = vunpack.c.l.b16 %v2767
    %v3701 = vunpack.c.h.b16 %v2767
    %v3702 = vunpack.c.l.b16 %v2768
    %v3703 = vunpack.c.h.b16 %v2768
    %v3704 = vunpack.c.l.b16 %v2769
    %v3705 = vunpack.c.h.b16 %v2769
    %v3706 = vunpack.c.l.b16 %v2770
    %v3707 = vunpack.c.h.b16 %v2770
    %v3708 = vunpack.c.l.b16 %v2771
    %v3709 = vunpack.c.h.b16 %v2771
    %v3710 = vunpack.c.l.b16 %v2772
    %v3711 = vunpack.c.h.b16 %v2772
    %v3712 = vunpack.c.l.b16 %v2773
    %v3713 = vunpack.c.h.b16 %v2773
    %v3714 = vunpack.c.l.b16 %v2774
    %v3715 = vunpack.c.h.b16 %v2774
    %v3716 = vunpack.c.l.b16 %v2775
    %v3717 = vunpack.c.h.b16 %v2775
    %v3718 = vunpack.c.l.b16 %v2776
    %v3719 = vunpack.c.h.b16 %v2776
    %v3720 = vunpack.c.l.b16 %v2777
    %v3721 = vunpack.c.h.b16 %v2777
    %v3722 = vunpack.c.l.b16 %v2778
    %v3723 = vunpack.c.h.b16 %v2778
    %v3724 = vunpack.c.l.b16 %v2779
    %v3725 = vunpack.c.h.b16 %v2779
    %v3726 = vunpack.c.l.b16 %v2780
    %v3727 = vunpack.c.h.b16 %v2780
    %v3728 = vunpack.c.l.b16 %v2781
    %v3729 = vunpack.c.h.b16 %v2781
    %v3730 = vunpack.c.l.b16 %v2782
    %v3731 = vunpack.c.h.b16 %v2782
    %v3732 = vunpack.c.l.b16 %v2783
    %v3733 = vunpack.c.h.b16 %v2783
    %v3734 = vunpack.c.l.b16 %v2784
    %v3735 = vunpack.c.h.b16 %v2784
    %v3736 = vunpack.c.l.b16 %v2785
    %v3737 = vunpack.c.h.b16 %v2785
    %v3738 = vunpack.c.l.b16 %v2786
    %v3739 = vunpack.c.h.b16 %v2786
    %v3740 = vunpack.c.l.b16 %v2787
    %v3741 = vunpack.c.h.b16 %v2787
    %v3742 = vunpack.c.l.b16 %v2788
    %v3743 = vunpack.c.h.b16 %v2788
    %v3744 = vunpack.c.l.b16 %v2789
    %v3745 = vunpack.c.h.b16 %v2789
    %v3746 = vunpack.c.l.b16 %v2790
    %v3747 = vunpack.c.h.b16 %v2790
    %v3748 = vunpack.c.l.b16 %v2791
    %v3749 = vunpack.c.h.b16 %v2791
    %v3750 = vunpack.c.l.b16 %v2792
    %v3751 = vunpack.c.h.b16 %v2792
    %v3752 = vunpack.c.l.b16 %v2793
    %v3753 = vunpack.c.h.b16 %v2793
    %v3754 = vunpack.c.l.b16 %v2794
    %v3755 = vunpack.c.h.b16 %v2794
    %v3756 = vunpack.c.l.b16 %v2795
    %v3757 = vunpack.c.h.b16 %v2795
    %v3758 = vunpack.c.l.b16 %v2796
    %v3759 = vunpack.c.h.b16 %v2796
    %v3760 = vunpack.c.l.b16 %v2797
    %v3761 = vunpack.c.h.b16 %v2797
    %v3762 = vunpack.c.l.b16 %v2798
    %v3763 = vunpack.c.h.b16 %v2798
    %v3764 = vunpack.c.l.b16 %v2799
    %v3765 = vunpack.c.h.b16 %v2799
    %v3766 = vunpack.c.l.b16 %v2800
    %v3767 = vunpack.c.h.b16 %v2800
    %v3768 = vunpack.c.l.b16 %v2801
    %v3769 = vunpack.c.h.b16 %v2801
    %v3770 = vunpack.c.l.b16 %v2802
    %v3771 = vunpack.c.h.b16 %v2802
    %v3772 = vunpack.c.l.b16 %v2803
    %v3773 = vunpack.c.h.b16 %v2803
    %v3774 = vunpack.c.l.b16 %v2804
    %v3775 = vunpack.c.h.b16 %v2804
    %v3776 = vunpack.c.l.b16 %v2805
    %v3777 = vunpack.c.h.b16 %v2805
    %v3778 = vunpack.c.l.b16 %v2806
    %v3779 = vunpack.c.h.b16 %v2806
    %v3780 = vunpack.c.l.b16 %v2807
    %v3781 = vunpack.c.h.b16 %v2807
    %v3782 = vunpack.c.l.b16 %v2808
    %v3783 = vunpack.c.h.b16 %v2808
    %v3784 = vunpack.c.l.b16 %v2809
    %v3785 = vunpack.c.h.b16 %v2809
    %v3786 = vunpack.c.l.b16 %v2810
    %v3787 = vunpack.c.h.b16 %v2810
    %v3788 = vunpack.c.l.b16 %v2811
    %v3789 = vunpack.c.h.b16 %v2811
    %v3790 = vunpack.c.l.b16 %v2812
    %v3791 = vunpack.c.h.b16 %v2812
    %v3792 = vunpack.c.l.b16 %v2813
    %v3793 = vunpack.c.h.b16 %v2813
    %v3794 = vunpack.c.l.b16 %v2814
    %v3795 = vunpack.c.h.b16 %v2814
    %v3796 = vunpack.c.l.b16 %v2815
    %v3797 = vunpack.c.h.b16 %v2815
    %v3798 = vunpack.c.l.b16 %v2816
    %v3799 = vunpack.c.h.b16 %v2816
    %v3800 = vunpack.c.l.b16 %v2817
    %v3801 = vunpack.c.h.b16 %v2817
    %v3802 = vunpack.c.l.b16 %v2818
    %v3803 = vunpack.c.h.b16 %v2818
    %v3804 = vunpack.c.l.b16 %v2819
    %v3805 = vunpack.c.h.b16 %v2819
    %v3806 = vunpack.c.l.b16 %v2820
    %v3807 = vunpack.c.h.b16 %v2820
    %v3808 = vunpack.c.l.b16 %v2821
    %v3809 = vunpack.c.h.b16 %v2821
    %v3810 = vunpack.c.l.b16 %v2822
    %v3811 = vunpack.c.h.b16 %v2822
    %v3812 = vunpack.c.l.b16 %v2823
    %v3813 = vunpack.c.h.b16 %v2823
    %v3814 = vunpack.c.l.b16 %v2824
    %v3815 = vunpack.c.h.b16 %v2824
    %v3816 = vunpack.c.l.b16 %v2825
    %v3817 = vunpack.c.h.b16 %v2825
    %v3818 = vunpack.c.l.b16 %v2826
    %v3819 = vunpack.c.h.b16 %v2826
    %v3820 = vunpack.c.l.b16 %v2827
    %v3821 = vunpack.c.h.b16 %v2827
    %v3822 = vunpack.c.l.b16 %v2828
    %v3823 = vunpack.c.h.b16 %v2828
    %v3824 = vunpack.c.l.b16 %v2829
    %v3825 = vunpack.c.h.b16 %v2829
    %v3826 = vunpack.c.l.b16 %v2830
    %v3827 = vunpack.c.h.b16 %v2830
    %v3828 = vunpack.c.l.b16 %v2831
    %v3829 = vunpack.c.h.b16 %v2831
    %v3830 = vunpack.c.l.b16 %v2832
    %v3831 = vunpack.c.h.b16 %v2832
    %v3832 = vunpack.c.l.b16 %v2833
    %v3833 = vunpack.c.h.b16 %v2833
    %v3834 = vunpack.c.l.b16 %v2834
    %v3835 = vunpack.c.h.b16 %v2834
    %v3836 = vunpack.c.l.b16 %v2835
    %v3837 = vunpack.c.h.b16 %v2835
    %v3838 = vunpack.c.l.b16 %v2836
    %v3839 = vunpack.c.h.b16 %v2836
    %v3840 = vunpack.c.l.b16 %v2837
    %v3841 = vunpack.c.h.b16 %v2837
    %v3842 = vunpack.c.l.b16 %v2838
    %v3843 = vunpack.c.h.b16 %v2838
    %v3844 = vunpack.c.l.b16 %v2839
    %v3845 = vunpack.c.h.b16 %v2839
    %v3846 = vunpack.c.l.b16 %v2840
    %v3847 = vunpack.c.h.b16 %v2840
    %v3848 = vunpack.c.l.b16 %v2841
    %v3849 = vunpack.c.h.b16 %v2841
    %v3850 = vunpack.c.l.b16 %v2842
    %v3851 = vunpack.c.h.b16 %v2842
    %v3852 = vunpack.c.l.b16 %v2843
    %v3853 = vunpack.c.h.b16 %v2843
    %v3854 = vunpack.c.l.b16 %v2844
    %v3855 = vunpack.c.h.b16 %v2844
    %v3856 = vunpack.c.l.b16 %v2845
    %v3857 = vunpack.c.h.b16 %v2845
    %v3858 = vunpack.c.l.b16 %v2846
    %v3859 = vunpack.c.h.b16 %v2846
    %v3860 = vunpack.c.l.b16 %v2847
    %v3861 = vunpack.c.h.b16 %v2847
    %v3862 = vunpack.c.l.b16 %v2848
    %v3863 = vunpack.c.h.b16 %v2848
    %v3864 = vunpack.c.l.b16 %v2849
    %v3865 = vunpack.c.h.b16 %v2849
    %v3866 = vunpack.c.l.b16 %v2850
    %v3867 = vunpack.c.h.b16 %v2850
    %v3868 = vunpack.c.l.b16 %v2851
    %v3869 = vunpack.c.h.b16 %v2851
    %v3870 = vunpack.c.l.b16 %v2852
    %v3871 = vunpack.c.h.b16 %v2852
    %v3872 = vunpack.c.l.b16 %v2853
    %v3873 = vunpack.c.h.b16 %v2853
    %v3874 = vunpack.c.l.b16 %v2854
    %v3875 = vunpack.c.h.b16 %v2854
    %v3876 = vunpack.c.l.b16 %v2855
    %v3877 = vunpack.c.h.b16 %v2855
    %v3878 = vunpack.c.l.b16 %v2856
    %v3879 = vunpack.c.h.b16 %v2856
    %v3880 = vunpack.c.l.b16 %v2857
    %v3881 = vunpack.c.h.b16 %v2857
    %v3882 = vunpack.c.l.b16 %v2858
    %v3883 = vunpack.c.h.b16 %v2858
    %v3884 = vunpack.c.l.b16 %v2859
    %v3885 = vunpack.c.h.b16 %v2859
    %v3886 = vunpack.c.l.b16 %v2860
    %v3887 = vunpack.c.h.b16 %v2860
    %v3888 = vunpack.c.l.b16 %v2861
    %v3889 = vunpack.c.h.b16 %v2861
    %v3890 = vunpack.c.l.b16 %v2862
    %v3891 = vunpack.c.h.b16 %v2862
    %v3892 = vunpack.c.l.b16 %v2863
    %v3893 = vunpack.c.h.b16 %v2863
    %v3894 = vunpack.c.l.b16 %v2864
    %v3895 = vunpack.c.h.b16 %v2864
    %v3896 = vunpack.c.l.b16 %v2865
    %v3897 = vunpack.c.h.b16 %v2865
    %v3898 = vunpack.c.l.b16 %v2866
    %v3899 = vunpack.c.h.b16 %v2866
    %v3900 = vunpack.c.l.b16 %v2867
    %v3901 = vunpack.c.h.b16 %v2867
    %v3902 = vunpack.c.l.b16 %v2868
    %v3903 = vunpack.c.h.b16 %v2868
    %v3904 = vunpack.c.l.b16 %v2869
    %v3905 = vunpack.c.h.b16 %v2869
    %v3906 = vunpack.c.l.b16 %v2870
    %v3907 = vunpack.c.h.b16 %v2870
    %v3908 = vunpack.c.l.b16 %v2871
    %v3909 = vunpack.c.h.b16 %v2871
    %v3910 = vunpack.c.l.b16 %v2872
    %v3911 = vunpack.c.h.b16 %v2872
    %v3912 = vunpack.c.l.b16 %v2873
    %v3913 = vunpack.c.h.b16 %v2873
    %v3914 = vunpack.c.l.b16 %v2874
    %v3915 = vunpack.c.h.b16 %v2874
    %v3916 = vunpack.c.l.b16 %v2875
    %v3917 = vunpack.c.h.b16 %v2875
    %v3918 = vunpack.c.l.b16 %v2876
    %v3919 = vunpack.c.h.b16 %v2876
    %v3920 = vunpack.c.l.b16 %v2877
    %v3921 = vunpack.c.h.b16 %v2877
    %v3922 = vunpack.c.l.b16 %v2878
    %v3923 = vunpack.c.h.b16 %v2878
    %v3924 = vunpack.c.l.b16 %v2879
    %v3925 = vunpack.c.h.b16 %v2879
    %v3926 = vunpack.c.l.b16 %v2880
    %v3927 = vunpack.c.h.b16 %v2880
    %v3928 = vunpack.c.l.b16 %v2881
    %v3929 = vunpack.c.h.b16 %v2881
    %v3930 = vunpack.c.l.b16 %v2882
    %v3931 = vunpack.c.h.b16 %v2882
    %v3932 = vunpack.c.l.b16 %v2883
    %v3933 = vunpack.c.h.b16 %v2883
    %v3934 = vunpack.c.l.b16 %v2884
    %v3935 = vunpack.c.h.b16 %v2884
    %v3936 = vunpack.c.l.b16 %v2885
    %v3937 = vunpack.c.h.b16 %v2885
    %v3938 = vunpack.c.l.b16 %v2886
    %v3939 = vunpack.c.h.b16 %v2886
    %v3940 = vunpack.c.l.b16 %v2887
    %v3941 = vunpack.c.h.b16 %v2887
    %v3942 = vunpack.c.l.b16 %v2888
    %v3943 = vunpack.c.h.b16 %v2888
    %v3944 = vunpack.c.l.b16 %v2889
    %v3945 = vunpack.c.h.b16 %v2889
    %v3946 = vunpack.c.l.b16 %v2890
    %v3947 = vunpack.c.h.b16 %v2890
    %v3948 = vunpack.c.l.b16 %v2891
    %v3949 = vunpack.c.h.b16 %v2891
    %v3950 = vunpack.c.l.b16 %v2892
    %v3951 = vunpack.c.h.b16 %v2892
    %v3952 = vunpack.c.l.b16 %v2893
    %v3953 = vunpack.c.h.b16 %v2893
    %v3954 = vunpack.c.l.b16 %v2894
    %v3955 = vunpack.c.h.b16 %v2894
    %v3956 = vunpack.c.l.b16 %v2895
    %v3957 = vunpack.c.h.b16 %v2895
    %v3958 = vunpack.c.l.b16 %v2896
    %v3959 = vunpack.c.h.b16 %v2896
    %v3960 = vunpack.c.l.b16 %v2897
    %v3961 = vunpack.c.h.b16 %v2897
    %v3962 = vunpack.c.l.b16 %v2898
    %v3963 = vunpack.c.h.b16 %v2898
    %v3964 = vunpack.c.l.b16 %v2899
    %v3965 = vunpack.c.h.b16 %v2899
    %v3966 = vunpack.c.l.b16 %v2900
    %v3967 = vunpack.c.h.b16 %v2900
    %v3968 = vunpack.c.l.b16 %v2901
    %v3969 = vunpack.c.h.b16 %v2901
    %v3970 = vunpack.c.l.b16 %v2902
    %v3971 = vunpack.c.h.b16 %v2902
    %v3972 = vunpack.c.l.b16 %v2903
    %v3973 = vunpack.c.h.b16 %v2903
    %v3974 = vunpack.c.l.b16 %v2904
    %v3975 = vunpack.c.h.b16 %v2904
    %v3976 = vunpack.c.l.b16 %v2905
    %v3977 = vunpack.c.h.b16 %v2905
    %v3978 = vunpack.c.l.b16 %v2906
    %v3979 = vunpack.c.h.b16 %v2906
    %v3980 = vunpack.c.l.b16 %v2907
    %v3981 = vunpack.c.h.b16 %v2907
    %v3982 = vunpack.c.l.b16 %v2908
    %v3983 = vunpack.c.h.b16 %v2908
    %v3984 = vunpack.c.l.b16 %v2909
    %v3985 = vunpack.c.h.b16 %v2909
    %v3986 = vunpack.c.l.b16 %v2910
    %v3987 = vunpack.c.h.b16 %v2910
    %v3988 = vunpack.c.l.b16 %v2911
    %v3989 = vunpack.c.h.b16 %v2911
    %v3990 = vunpack.c.l.b16 %v2912
    %v3991 = vunpack.c.h.b16 %v2912
    %v3992 = vunpack.c.l.b16 %v2913
    %v3993 = vunpack.c.h.b16 %v2913
    %v3994 = vunpack.c.l.b16 %v2914
    %v3995 = vunpack.c.h.b16 %v2914
    %v3996 = vunpack.c.l.b16 %v2915
    %v3997 = vunpack.c.h.b16 %v2915
    %v3998 = vunpack.c.l.b16 %v2916
    %v3999 = vunpack.c.h.b16 %v2916
    %v4000 = vunpack.c.l.b16 %v2917
    %v4001 = vunpack.c.h.b16 %v2917
    %v4002 = vunpack.c.l.b16 %v2918
    %v4003 = vunpack.c.h.b16 %v2918
    %v4004 = vunpack.c.l.b16 %v2919
    %v4005 = vunpack.c.h.b16 %v2919
    %v4006 = vunpack.c.l.b16 %v2920
    %v4007 = vunpack.c.h.b16 %v2920
    %v4008 = vunpack.c.l.b16 %v2921
    %v4009 = vunpack.c.h.b16 %v2921
    %v4010 = vunpack.c.l.b16 %v2922
    %v4011 = vunpack.c.h.b16 %v2922
    %v4012 = vunpack.c.l.b16 %v2923
    %v4013 = vunpack.c.h.b16 %v2923
    %v4014 = vunpack.c.l.b16 %v2924
    %v4015 = vunpack.c.h.b16 %v2924
    %v4016 = vunpack.c.l.b16 %v2925
    %v4017 = vunpack.c.h.b16 %v2925
    %v4018 = vunpack.c.l.b16 %v2926
    %v4019 = vunpack.c.h.b16 %v2926
    %v4020 = vunpack.c.l.b16 %v2927
    %v4021 = vunpack.c.h.b16 %v2927
    %v4022 = vunpack.c.l.b16 %v2928
    %v4023 = vunpack.c.h.b16 %v2928
    %v4024 = vunpack.c.l.b16 %v2929
    %v4025 = vunpack.c.h.b16 %v2929
    %v4026 = vunpack.c.l.b16 %v2930
    %v4027 = vunpack.c.h.b16 %v2930
    %v4028 = vunpack.c.l.b16 %v2931
    %v4029 = vunpack.c.h.b16 %v2931
    %v4030 = vunpack.c.l.b16 %v2932
    %v4031 = vunpack.c.h.b16 %v2932
    %v4032 = vunpack.c.l.b16 %v2933
    %v4033 = vunpack.c.h.b16 %v2933
    %v4034 = vunpack.c.l.b16 %v2934
    %v4035 = vunpack.c.h.b16 %v2934
    %v4036 = vunpack.c.l.b16 %v2935
    %v4037 = vunpack.c.h.b16 %v2935
    %v4038 = vunpack.c.l.b16 %v2936
    %v4039 = vunpack.c.h.b16 %v2936
    %v4040 = vunpack.c.l.b16 %v2937
    %v4041 = vunpack.c.h.b16 %v2937
    %v4042 = vunpack.c.l.b16 %v2938
    %v4043 = vunpack.c.h.b16 %v2938
    %v4044 = vunpack.c.l.b16 %v2939
    %v4045 = vunpack.c.h.b16 %v2939
    %v4046 = vunpack.c.l.b16 %v2940
    %v4047 = vunpack.c.h.b16 %v2940
    %v4048 = vunpack.c.l.b16 %v2941
    %v4049 = vunpack.c.h.b16 %v2941
    %v4050 = vunpack.c.l.b16 %v2942
    %v4051 = vunpack.c.h.b16 %v2942
    %v4052 = vunpack.c.l.b16 %v2943
    %v4053 = vunpack.c.h.b16 %v2943
    %v4054 = vunpack.c.l.b16 %v2944
    %v4055 = vunpack.c.h.b16 %v2944
    %v4056 = vunpack.c.l.b16 %v2945
    %v4057 = vunpack.c.h.b16 %v2945
    %v4058 = vunpack.c.l.b16 %v2946
    %v4059 = vunpack.c.h.b16 %v2946
    %v4060 = vunpack.c.l.b16 %v2947
    %v4061 = vunpack.c.h.b16 %v2947
    %v4062 = vunpack.c.l.b16 %v2948
    %v4063 = vunpack.c.h.b16 %v2948
    %v4064 = vunpack.c.l.b16 %v2949
    %v4065 = vunpack.c.h.b16 %v2949
    %v4066 = vunpack.c.l.b16 %v2950
    %v4067 = vunpack.c.h.b16 %v2950
    %v4068 = vunpack.c.l.b16 %v2951
    %v4069 = vunpack.c.h.b16 %v2951
    %v4070 = vunpack.c.l.b16 %v2952
    %v4071 = vunpack.c.h.b16 %v2952
    %v4072 = vunpack.c.l.b16 %v2953
    %v4073 = vunpack.c.h.b16 %v2953
    %v4074 = vunpack.c.l.b16 %v2954
    %v4075 = vunpack.c.h.b16 %v2954
    %v4076 = vunpack.c.l.b16 %v2955
    %v4077 = vunpack.c.h.b16 %v2955
    %v4078 = vunpack.c.l.b16 %v2956
    %v4079 = vunpack.c.h.b16 %v2956
    %v4080 = vunpack.c.l.b16 %v2957
    %v4081 = vunpack.c.h.b16 %v2957
    %v4082 = vunpack.c.l.b16 %v2958
    %v4083 = vunpack.c.h.b16 %v2958
    %v4084 = vunpack.c.l.b16 %v2959
    %v4085 = vunpack.c.h.b16 %v2959
    %v4086 = vunpack.c.l.b16 %v2960
    %v4087 = vunpack.c.h.b16 %v2960
    %v4088 = vunpack.c.l.b16 %v2961
    %v4089 = vunpack.c.h.b16 %v2961
    %v4090 = vunpack.c.l.b16 %v2962
    %v4091 = vunpack.c.h.b16 %v2962
    %v4092 = vunpack.c.l.b16 %v2963
    %v4093 = vunpack.c.h.b16 %v2963
    %v4094 = vunpack.c.l.b16 %v2964
    %v4095 = vunpack.c.h.b16 %v2964
    %v4096 = vunpack.c.l.b16 %v2965
    %v4097 = vunpack.c.h.b16 %v2965
    %v4098 = vunpack.c.l.b16 %v2966
    %v4099 = vunpack.c.h.b16 %v2966
    %v4100 = vunpack.c.l.b16 %v2967
    %v4101 = vunpack.c.h.b16 %v2967
    %v4102 = vunpack.c.l.b16 %v2968
    %v4103 = vunpack.c.h.b16 %v2968
    %v4104 = vunpack.c.l.b16 %v2969
    %v4105 = vunpack.c.h.b16 %v2969
    %v4106 = vunpack.c.l.b16 %v2970
    %v4107 = vunpack.c.h.b16 %v2970
    %v4108 = vunpack.c.l.b16 %v2971
    %v4109 = vunpack.c.h.b16 %v2971
    %v4110 = vunpack.c.l.b16 %v2972
    %v4111 = vunpack.c.h.b16 %v2972
    %v4112 = vunpack.c.l.b16 %v2973
    %v4113 = vunpack.c.h.b16 %v2973
    %v4114 = vunpack.c.l.b16 %v2974
    %v4115 = vunpack.c.h.b16 %v2974
    %v4116 = vunpack.c.l.b16 %v2975
    %v4117 = vunpack.c.h.b16 %v2975
    %v4118 = vunpack.c.l.b16 %v2976
    %v4119 = vunpack.c.h.b16 %v2976
    %v4120 = vunpack.c.l.b16 %v2977
    %v4121 = vunpack.c.h.b16 %v2977
    %v4122 = vunpack.c.l.b16 %v2978
    %v4123 = vunpack.c.h.b16 %v2978
    %v4124 = vunpack.c.l.b16 %v2979
    %v4125 = vunpack.c.h.b16 %v2979
    %v4126 = vunpack.c.l.b16 %v2980
    %v4127 = vunpack.c.h.b16 %v2980
    %v4128 = vunpack.c.l.b16 %v2981
    %v4129 = vunpack.c.h.b16 %v2981
    %v4130 = vunpack.c.l.b16 %v2982
    %v4131 = vunpack.c.h.b16 %v2982
    %v4132 = vunpack.c.l.b16 %v2983
    %v4133 = vunpack.c.h.b16 %v2983
    %v4134 = vunpack.c.l.b16 %v2984
    %v4135 = vunpack.c.h.b16 %v2984
    %v4136 = vunpack.c.l.b16 %v2985
    %v4137 = vunpack.c.h.b16 %v2985
    %v4138 = vunpack.c.l.b16 %v2986
    %v4139 = vunpack.c.h.b16 %v2986
    %v4140 = vunpack.c.l.b16 %v2987
    %v4141 = vunpack.c.h.b16 %v2987
    %v4142 = vunpack.c.l.b16 %v2988
    %v4143 = vunpack.c.h.b16 %v2988
    %v4144 = vunpack.c.l.b16 %v2989
    %v4145 = vunpack.c.h.b16 %v2989
    %v4146 = vunpack.c.l.b16 %v2990
    %v4147 = vunpack.c.h.b16 %v2990
    %v4148 = vunpack.c.l.b16 %v2991
    %v4149 = vunpack.c.h.b16 %v2991
    %v4150 = vunpack.c.l.b16 %v2992
    %v4151 = vunpack.c.h.b16 %v2992
    %v4152 = vunpack.c.l.b16 %v2993
    %v4153 = vunpack.c.h.b16 %v2993
    %v4154 = vunpack.c.l.b16 %v2994
    %v4155 = vunpack.c.h.b16 %v2994
    %v4156 = vunpack.c.l.b16 %v2995
    %v4157 = vunpack.c.h.b16 %v2995
    %v4158 = vunpack.c.l.b16 %v2996
    %v4159 = vunpack.c.h.b16 %v2996
    %v4160 = vunpack.c.l.b16 %v2997
    %v4161 = vunpack.c.h.b16 %v2997
    %v4162 = vunpack.c.l.b16 %v2998
    %v4163 = vunpack.c.h.b16 %v2998
    %v4164 = vunpack.c.l.b16 %v2999
    %v4165 = vunpack.c.h.b16 %v2999
    %v4166 = vunpack.c.l.b16 %v3000
    %v4167 = vunpack.c.h.b16 %v3000
    %v4168 = vunpack.c.l.b16 %v3001
    %v4169 = vunpack.c.h.b16 %v3001
    %v4170 = vunpack.c.l.b16 %v3002
    %v4171 = vunpack.c.h.b16 %v3002
    %v4172 = vunpack.c.l.b16 %v3003
    %v4173 = vunpack.c.h.b16 %v3003
    %v4174 = vunpack.c.l.b16 %v3004
    %v4175 = vunpack.c.h.b16 %v3004
    %v4176 = vunpack.c.l.b16 %v3005
    %v4177 = vunpack.c.h.b16 %v3005
    %v4178 = vunpack.c.l.b16 %v3006
    %v4179 = vunpack.c.h.b16 %v3006
    %v4180 = vunpack.c.l.b16 %v3007
    %v4181 = vunpack.c.h.b16 %v3007
    %v4182 = vunpack.c.l.b16 %v3008
    %v4183 = vunpack.c.h.b16 %v3008
    %v4184 = vunpack.c.l.b16 %v3009
    %v4185 = vunpack.c.h.b16 %v3009
    %v4186 = vunpack.c.l.b16 %v3010
    %v4187 = vunpack.c.h.b16 %v3010
    %v4188 = vunpack.c.l.b16 %v3011
    %v4189 = vunpack.c.h.b16 %v3011
    %v4190 = vunpack.c.l.b16 %v3012
    %v4191 = vunpack.c.h.b16 %v3012
    %v4192 = vunpack.c.l.b16 %v3013
    %v4193 = vunpack.c.h.b16 %v3013
    %v4194 = vunpack.c.l.b16 %v3014
    %v4195 = vunpack.c.h.b16 %v3014
    %v4196 = vunpack.c.l.b16 %v3015
    %v4197 = vunpack.c.h.b16 %v3015
    %v4198 = vunpack.c.l.b16 %v3016
    %v4199 = vunpack.c.h.b16 %v3016
    %v4200 = vunpack.c.l.b16 %v3017
    %v4201 = vunpack.c.h.b16 %v3017
    %v4202 = vpack.c.b16 %v3440, %v3434
    %v4203 = vpack.c.b16 %v3441, %v3435
    %v4204 = vpack.c.b16 %v3442, %v3436
    %v4205 = vpack.c.b16 %v3443, %v3437
    %v4206 = vpack.c.b16 %v3444, %v3438
    %v4207 = vpack.c.b16 %v3445, %v3439
    %v4208 = vpack.c.b16 %v3452, %v3446
    %v4209 = vpack.c.b16 %v3453, %v3447
    %v4210 = vpack.c.b16 %v3454, %v3448
    %v4211 = vpack.c.b16 %v3455, %v3449
    %v4212 = vpack.c.b16 %v3456, %v3450
    %v4213 = vpack.c.b16 %v3457, %v3451
    %v4214 = vpack.c.b16 %v3464, %v3458
    %v4215 = vpack.c.b16 %v3465, %v3459
    %v4216 = vpack.c.b16 %v3466, %v3460
    %v4217 = vpack.c.b16 %v3467, %v3461
    %v4218 = vpack.c.b16 %v3468, %v3462
    %v4219 = vpack.c.b16 %v3469, %v3463
    %v4220 = vpack.c.b16 %v3476, %v3470
    %v4221 = vpack.c.b16 %v3477, %v3471
    %v4222 = vpack.c.b16 %v3478, %v3472
    %v4223 = vpack.c.b16 %v3479, %v3473
    %v4224 = vpack.c.b16 %v3480, %v3474
    %v4225 = vpack.c.b16 %v3481, %v3475
    %v4226 = vpack.c.b16 %v3488, %v3482
    %v4227 = vpack.c.b16 %v3489, %v3483
    %v4228 = vpack.c.b16 %v3490, %v3484
    %v4229 = vpack.c.b16 %v3491, %v3485
    %v4230 = vpack.c.b16 %v3492, %v3486
    %v4231 = vpack.c.b16 %v3493, %v3487
    %v4232 = vpack.c.b16 %v3500, %v3494
    %v4233 = vpack.c.b16 %v3501, %v3495
    %v4234 = vpack.c.b16 %v3502, %v3496
    %v4235 = vpack.c.b16 %v3503, %v3497
    %v4236 = vpack.c.b16 %v3504, %v3498
    %v4237 = vpack.c.b16 %v3505, %v3499
    %v4238 = vpack.c.b16 %v3512, %v3506
    %v4239 = vpack.c.b16 %v3513, %v3507
    %v4240 = vpack.c.b16 %v3514, %v3508
    %v4241 = vpack.c.b16 %v3515, %v3509
    %v4242 = vpack.c.b16 %v3516, %v3510
    %v4243 = vpack.c.b16 %v3517, %v3511
    %v4244 = vpack.c.b16 %v3524, %v3518
    %v4245 = vpack.c.b16 %v3525, %v3519
    %v4246 = vpack.c.b16 %v3526, %v3520
    %v4247 = vpack.c.b16 %v3527, %v3521
    %v4248 = vpack.c.b16 %v3528, %v3522
    %v4249 = vpack.c.b16 %v3529, %v3523
    %v4250 = vpack.c.b16 %v3536, %v3530
    %v4251 = vpack.c.b16 %v3537, %v3531
    %v4252 = vpack.c.b16 %v3538, %v3532
    %v4253 = vpack.c.b16 %v3539, %v3533
    %v4254 = vpack.c.b16 %v3540, %v3534
    %v4255 = vpack.c.b16 %v3541, %v3535
    %v4256 = vpack.c.b16 %v3548, %v3542
    %v4257 = vpack.c.b16 %v3549, %v3543
    %v4258 = vpack.c.b16 %v3550, %v3544
    %v4259 = vpack.c.b16 %v3551, %v3545
    %v4260 = vpack.c.b16 %v3552, %v3546
    %v4261 = vpack.c.b16 %v3553, %v3547
    %v4262 = vpack.c.b16 %v3560, %v3554
    %v4263 = vpack.c.b16 %v3561, %v3555
    %v4264 = vpack.c.b16 %v3562, %v3556
    %v4265 = vpack.c.b16 %v3563, %v3557
    %v4266 = vpack.c.b16 %v3564, %v3558
    %v4267 = vpack.c.b16 %v3565, %v3559
    %v4268 = vpack.c.b16 %v3572, %v3566
    %v4269 = vpack.c.b16 %v3573, %v3567
    %v4270 = vpack.c.b16 %v3574, %v3568
    %v4271 = vpack.c.b16 %v3575, %v3569
    %v4272 = vpack.c.b16 %v3576, %v3570
    %v4273 = vpack.c.b16 %v3577, %v3571
    %v4274 = vpack.c.b16 %v3584, %v3578
    %v4275 = vpack.c.b16 %v3585, %v3579
    %v4276 = vpack.c.b16 %v3586, %v3580
    %v4277 = vpack.c.b16 %v3587, %v3581
    %v4278 = vpack.c.b16 %v3588, %v3582
    %v4279 = vpack.c.b16 %v3589, %v3583
    %v4280 = vpack.c.b16 %v3596, %v3590
    %v4281 = vpack.c.b16 %v3597, %v3591
    %v4282 = vpack.c.b16 %v3598, %v3592
    %v4283 = vpack.c.b16 %v3599, %v3593
    %v4284 = vpack.c.b16 %v3600, %v3594
    %v4285 = vpack.c.b16 %v3601, %v3595
    %v4286 = vpack.c.b16 %v3608, %v3602
    %v4287 = vpack.c.b16 %v3609, %v3603
    %v4288 = vpack.c.b16 %v3610, %v3604
    %v4289 = vpack.c.b16 %v3611, %v3605
    %v4290 = vpack.c.b16 %v3612, %v3606
    %v4291 = vpack.c.b16 %v3613, %v3607
    %v4292 = vpack.c.b16 %v3620, %v3614
    %v4293 = vpack.c.b16 %v3621, %v3615
    %v4294 = vpack.c.b16 %v3622, %v3616
    %v4295 = vpack.c.b16 %v3623, %v3617
    %v4296 = vpack.c.b16 %v3624, %v3618
    %v4297 = vpack.c.b16 %v3625, %v3619
    %v4298 = vpack.c.b16 %v3632, %v3626
    %v4299 = vpack.c.b16 %v3633, %v3627
    %v4300 = vpack.c.b16 %v3634, %v3628
    %v4301 = vpack.c.b16 %v3635, %v3629
    %v4302 = vpack.c.b16 %v3636, %v3630
    %v4303 = vpack.c.b16 %v3637, %v3631
    %v4304 = vpack.c.b16 %v3644, %v3638
    %v4305 = vpack.c.b16 %v3645, %v3639
    %v4306 = vpack.c.b16 %v3646, %v3640
    %v4307 = vpack.c.b16 %v3647, %v3641
    %v4308 = vpack.c.b16 %v3648, %v3642
    %v4309 = vpack.c.b16 %v3649, %v3643
    %v4310 = vpack.c.b16 %v3656, %v3650
    %v4311 = vpack.c.b16 %v3657, %v3651
    %v4312 = vpack.c.b16 %v3658, %v3652
    %v4313 = vpack.c.b16 %v3659, %v3653
    %v4314 = vpack.c.b16 %v3660, %v3654
    %v4315 = vpack.c.b16 %v3661, %v3655
    %v4316 = vpack.c.b16 %v3668, %v3662
    %v4317 = vpack.c.b16 %v3669, %v3663
    %v4318 = vpack.c.b16 %v3670, %v3664
    %v4319 = vpack.c.b16 %v3671, %v3665
    %v4320 = vpack.c.b16 %v3672, %v3666
    %v4321 = vpack.c.b16 %v3673, %v3667
    %v4322 = vpack.c.b16 %v3680, %v3674
    %v4323 = vpack.c.b16 %v3681, %v3675
    %v4324 = vpack.c.b16 %v3682, %v3676
    %v4325 = vpack.c.b16 %v3683, %v3677
    %v4326 = vpack.c.b16 %v3684, %v3678
    %v4327 = vpack.c.b16 %v3685, %v3679
    %v4328 = vpack.c.b16 %v3692, %v3686
    %v4329 = vpack.c.b16 %v3693, %v3687
    %v4330 = vpack.c.b16 %v3694, %v3688
    %v4331 = vpack.c.b16 %v3695, %v3689
    %v4332 = vpack.c.b16 %v3696, %v3690
    %v4333 = vpack.c.b16 %v3697, %v3691
    %v4334 = vpack.c.b16 %v3704, %v3698
    %v4335 = vpack.c.b16 %v3705, %v3699
    %v4336 = vpack.c.b16 %v3706, %v3700
    %v4337 = vpack.c.b16 %v3707, %v3701
    %v4338 = vpack.c.b16 %v3708, %v3702
    %v4339 = vpack.c.b16 %v3709, %v3703
    %v4340 = vpack.c.b16 %v3716, %v3710
    %v4341 = vpack.c.b16 %v3717, %v3711
    %v4342 = vpack.c.b16 %v3718, %v3712
    %v4343 = vpack.c.b16 %v3719, %v3713
    %v4344 = vpack.c.b16 %v3720, %v3714
    %v4345 = vpack.c.b16 %v3721, %v3715
    %v4346 = vpack.c.b16 %v3728, %v3722
    %v4347 = vpack.c.b16 %v3729, %v3723
    %v4348 = vpack.c.b16 %v3730, %v3724
    %v4349 = vpack.c.b16 %v3731, %v3725
    %v4350 = vpack.c.b16 %v3732, %v3726
    %v4351 = vpack.c.b16 %v3733, %v3727
    %v4352 = vpack.c.b16 %v3740, %v3734
    %v4353 = vpack.c.b16 %v3741, %v3735
    %v4354 = vpack.c.b16 %v3742, %v3736
    %v4355 = vpack.c.b16 %v3743, %v3737
    %v4356 = vpack.c.b16 %v3744, %v3738
    %v4357 = vpack.c.b16 %v3745, %v3739
    %v4358 = vpack.c.b16 %v3752, %v3746
    %v4359 = vpack.c.b16 %v3753, %v3747
    %v4360 = vpack.c.b16 %v3754, %v3748
    %v4361 = vpack.c.b16 %v3755, %v3749
    %v4362 = vpack.c.b16 %v3756, %v3750
    %v4363 = vpack.c.b16 %v3757, %v3751
    %v4364 = vpack.c.b16 %v3764, %v3758
    %v4365 = vpack.c.b16 %v3765, %v3759
    %v4366 = vpack.c.b16 %v3766, %v3760
    %v4367 = vpack.c.b16 %v3767, %v3761
    %v4368 = vpack.c.b16 %v3768, %v3762
    %v4369 = vpack.c.b16 %v3769, %v3763
    %v4370 = vpack.c.b16 %v3776, %v3770
    %v4371 = vpack.c.b16 %v3777, %v3771
    %v4372 = vpack.c.b16 %v3778, %v3772
    %v4373 = vpack.c.b16 %v3779, %v3773
    %v4374 = vpack.c.b16 %v3780, %v3774
    %v4375 = vpack.c.b16 %v3781, %v3775
    %v4376 = vpack.c.b16 %v3788, %v3782
    %v4377 = vpack.c.b16 %v3789, %v3783
    %v4378 = vpack.c.b16 %v3790, %v3784
    %v4379 = vpack.c.b16 %v3791, %v3785
    %v4380 = vpack.c.b16 %v3792, %v3786
    %v4381 = vpack.c.b16 %v3793, %v3787
    %v4382 = vpack.c.b16 %v3800, %v3794
    %v4383 = vpack.c.b16 %v3801, %v3795
    %v4384 = vpack.c.b16 %v3802, %v3796
    %v4385 = vpack.c.b16 %v3803, %v3797
    %v4386 = vpack.c.b16 %v3804, %v3798
    %v4387 = vpack.c.b16 %v3805, %v3799
    %v4388 = vpack.c.b16 %v3812, %v3806
    %v4389 = vpack.c.b16 %v3813, %v3807
    %v4390 = vpack.c.b16 %v3814, %v3808
    %v4391 = vpack.c.b16 %v3815, %v3809
    %v4392 = vpack.c.b16 %v3816, %v3810
    %v4393 = vpack.c.b16 %v3817, %v3811
    %v4394 = vpack.c.b16 %v3824, %v3818
    %v4395 = vpack.c.b16 %v3825, %v3819
    %v4396 = vpack.c.b16 %v3826, %v3820
    %v4397 = vpack.c.b16 %v3827, %v3821
    %v4398 = vpack.c.b16 %v3828, %v3822
    %v4399 = vpack.c.b16 %v3829, %v3823
    %v4400 = vpack.c.b16 %v3836, %v3830
    %v4401 = vpack.c.b16 %v3837, %v3831
    %v4402 = vpack.c.b16 %v3838, %v3832
    %v4403 = vpack.c.b16 %v3839, %v3833
    %v4404 = vpack.c.b16 %v3840, %v3834
    %v4405 = vpack.c.b16 %v3841, %v3835
    %v4406 = vpack.c.b16 %v3848, %v3842
    %v4407 = vpack.c.b16 %v3849, %v3843
    %v4408 = vpack.c.b16 %v3850, %v3844
    %v4409 = vpack.c.b16 %v3851, %v3845
    %v4410 = vpack.c.b16 %v3852, %v3846
    %v4411 = vpack.c.b16 %v3853, %v3847
    %v4412 = vpack.c.b16 %v3860, %v3854
    %v4413 = vpack.c.b16 %v3861, %v3855
    %v4414 = vpack.c.b16 %v3862, %v3856
    %v4415 = vpack.c.b16 %v3863, %v3857
    %v4416 = vpack.c.b16 %v3864, %v3858
    %v4417 = vpack.c.b16 %v3865, %v3859
    %v4418 = vpack.c.b16 %v3872, %v3866
    %v4419 = vpack.c.b16 %v3873, %v3867
    %v4420 = vpack.c.b16 %v3874, %v3868
    %v4421 = vpack.c.b16 %v3875, %v3869
    %v4422 = vpack.c.b16 %v3876, %v3870
    %v4423 = vpack.c.b16 %v3877, %v3871
    %v4424 = vpack.c.b16 %v3884, %v3878
    %v4425 = vpack.c.b16 %v3885, %v3879
    %v4426 = vpack.c.b16 %v3886, %v3880
    %v4427 = vpack.c.b16 %v3887, %v3881
    %v4428 = vpack.c.b16 %v3888, %v3882
    %v4429 = vpack.c.b16 %v3889, %v3883
    %v4430 = vpack.c.b16 %v3896, %v3890
    %v4431 = vpack.c.b16 %v3897, %v3891
    %v4432 = vpack.c.b16 %v3898, %v3892
    %v4433 = vpack.c.b16 %v3899, %v3893
    %v4434 = vpack.c.b16 %v3900, %v3894
    %v4435 = vpack.c.b16 %v3901, %v3895
    %v4436 = vpack.c.b16 %v3908, %v3902
    %v4437 = vpack.c.b16 %v3909, %v3903
    %v4438 = vpack.c.b16 %v3910, %v3904
    %v4439 = vpack.c.b16 %v3911, %v3905
    %v4440 = vpack.c.b16 %v3912, %v3906
    %v4441 = vpack.c.b16 %v3913, %v3907
    %v4442 = vpack.c.b16 %v3920, %v3914
    %v4443 = vpack.c.b16 %v3921, %v3915
    %v4444 = vpack.c.b16 %v3922, %v3916
    %v4445 = vpack.c.b16 %v3923, %v3917
    %v4446 = vpack.c.b16 %v3924, %v3918
    %v4447 = vpack.c.b16 %v3925, %v3919
    %v4448 = vpack.c.b16 %v3932, %v3926
    %v4449 = vpack.c.b16 %v3933, %v3927
    %v4450 = vpack.c.b16 %v3934, %v3928
    %v4451 = vpack.c.b16 %v3935, %v3929
    %v4452 = vpack.c.b16 %v3936, %v3930
    %v4453 = vpack.c.b16 %v3937, %v3931
    %v4454 = vpack.c.b16 %v3944, %v3938
    %v4455 = vpack.c.b16 %v3945, %v3939
    %v4456 = vpack.c.b16 %v3946, %v3940
    %v4457 = vpack.c.b16 %v3947, %v3941
    %v4458 = vpack.c.b16 %v3948, %v3942
    %v4459 = vpack.c.b16 %v3949, %v3943
    %v4460 = vpack.c.b16 %v3956, %v3950
    %v4461 = vpack.c.b16 %v3957, %v3951
    %v4462 = vpack.c.b16 %v3958, %v3952
    %v4463 = vpack.c.b16 %v3959, %v3953
    %v4464 = vpack.c.b16 %v3960, %v3954
    %v4465 = vpack.c.b16 %v3961, %v3955
    %v4466 = vpack.c.b16 %v3968, %v3962
    %v4467 = vpack.c.b16 %v3969, %v3963
    %v4468 = vpack.c.b16 %v3970, %v3964
    %v4469 = vpack.c.b16 %v3971, %v3965
    %v4470 = vpack.c.b16 %v3972, %v3966
    %v4471 = vpack.c.b16 %v3973, %v3967
    %v4472 = vpack.c.b16 %v3980, %v3974
    %v4473 = vpack.c.b16 %v3981, %v3975
    %v4474 = vpack.c.b16 %v3982, %v3976
    %v4475 = vpack.c.b16 %v3983, %v3977
    %v4476 = vpack.c.b16 %v3984, %v3978
    %v4477 = vpack.c.b16 %v3985, %v3979
    %v4478 = vpack.c.b16 %v3992, %v3986
    %v4479 = vpack.c.b16 %v3993, %v3987
    %v4480 = vpack.c.b16 %v3994, %v3988
    %v4481 = vpack.c.b16 %v3995, %v3989
    %v4482 = vpack.c.b16 %v3996, %v3990
    %v4483 = vpack.c.b16 %v3997, %v3991
    %v4484 = vpack.c.b16 %v4004, %v3998
    %v4485 = vpack.c.b16 %v4005, %v3999
    %v4486 = vpack.c.b16 %v4006, %v4000
    %v4487 = vpack.c.b16 %v4007, %v4001
    %v4488 = vpack.c.b16 %v4008, %v4002
    %v4489 = vpack.c.b16 %v4009, %v4003
    %v4490 = vpack.c.b16 %v4016, %v4010
    %v4491 = vpack.c.b16 %v4017, %v4011
    %v4492 = vpack.c.b16 %v4018, %v4012
    %v4493 = vpack.c.b16 %v4019, %v4013
    %v4494 = vpack.c.b16 %v4020, %v4014
    %v4495 = vpack.c.b16 %v4021, %v4015
    %v4496 = vpack.c.b16 %v4028, %v4022
    %v4497 = vpack.c.b16 %v4029, %v4023
    %v4498 = vpack.c.b16 %v4030, %v4024
    %v4499 = vpack.c.b16 %v4031, %v4025
    %v4500 = vpack.c.b16 %v4032, %v4026
    %v4501 = vpack.c.b16 %v4033, %v4027
    %v4502 = vpack.c.b16 %v4040, %v4034
    %v4503 = vpack.c.b16 %v4041, %v4035
    %v4504 = vpack.c.b16 %v4042, %v4036
    %v4505 = vpack.c.b16 %v4043, %v4037
    %v4506 = vpack.c.b16 %v4044, %v4038
    %v4507 = vpack.c.b16 %v4045, %v4039
    %v4508 = vpack.c.b16 %v4052, %v4046
    %v4509 = vpack.c.b16 %v4053, %v4047
    %v4510 = vpack.c.b16 %v4054, %v4048
    %v4511 = vpack.c.b16 %v4055, %v4049
    %v4512 = vpack.c.b16 %v4056, %v4050
    %v4513 = vpack.c.b16 %v4057, %v4051
    %v4514 = vpack.c.b16 %v4064, %v4058
    %v4515 = vpack.c.b16 %v4065, %v4059
    %v4516 = vpack.c.b16 %v4066, %v4060
    %v4517 = vpack.c.b16 %v4067, %v4061
    %v4518 = vpack.c.b16 %v4068, %v4062
    %v4519 = vpack.c.b16 %v4069, %v4063
    %v4520 = vpack.c.b16 %v4076, %v4070
    %v4521 = vpack.c.b16 %v4077, %v4071
    %v4522 = vpack.c.b16 %v4078, %v4072
    %v4523 = vpack.c.b16 %v4079, %v4073
    %v4524 = vpack.c.b16 %v4080, %v4074
    %v4525 = vpack.c.b16 %v4081, %v4075
    %v4526 = vpack.c.b16 %v4088, %v4082
    %v4527 = vpack.c.b16 %v4089, %v4083
    %v4528 = vpack.c.b16 %v4090, %v4084
    %v4529 = vpack.c.b16 %v4091, %v4085
    %v4530 = vpack.c.b16 %v4092, %v4086
    %v4531 = vpack.c.b16 %v4093, %v4087
    %v4532 = vpack.c.b16 %v4100, %v4094
    %v4533 = vpack.c.b16 %v4101, %v4095
    %v4534 = vpack.c.b16 %v4102, %v4096
    %v4535 = vpack.c.b16 %v4103, %v4097
    %v4536 = vpack.c.b16 %v4104, %v4098
    %v4537 = vpack.c.b16 %v4105, %v4099
    %v4538 = vpack.c.b16 %v4112, %v4106
    %v4539 = vpack.c.b16 %v4113, %v4107
    %v4540 = vpack.c.b16 %v4114, %v4108
    %v4541 = vpack.c.b16 %v4115, %v4109
    %v4542 = vpack.c.b16 %v4116, %v4110
    %v4543 = vpack.c.b16 %v4117, %v4111
    %v4544 = vpack.c.b16 %v4124, %v4118
    %v4545 = vpack.c.b16 %v4125, %v4119
    %v4546 = vpack.c.b16 %v4126, %v4120
    %v4547 = vpack.c.b16 %v4127, %v4121
    %v4548 = vpack.c.b16 %v4128, %v4122
    %v4549 = vpack.c.b16 %v4129, %v4123
    %v4550 = vpack.c.b16 %v4136, %v4130
    %v4551 = vpack.c.b16 %v4137, %v4131
    %v4552 = vpack.c.b16 %v4138, %v4132
    %v4553 = vpack.c.b16 %v4139, %v4133
    %v4554 = vpack.c.b16 %v4140, %v4134
    %v4555 = vpack.c.b16 %v4141, %v4135
    %v4556 = vpack.c.b16 %v4148, %v4142
    %v4557 = vpack.c.b16 %v4149, %v4143
    %v4558 = vpack.c.b16 %v4150, %v4144
    %v4559 = vpack.c.b16 %v4151, %v4145
    %v4560 = vpack.c.b16 %v4152, %v4146
    %v4561 = vpack.c.b16 %v4153, %v4147
    %v4562 = vpack.c.b16 %v4160, %v4154
    %v4563 = vpack.c.b16 %v4161, %v4155
    %v4564 = vpack.c.b16 %v4162, %v4156
    %v4565 = vpack.c.b16 %v4163, %v4157
    %v4566 = vpack.c.b16 %v4164, %v4158
    %v4567 = vpack.c.b16 %v4165, %v4159
    %v4568 = vpack.c.b16 %v4172, %v4166
    %v4569 = vpack.c.b16 %v4173, %v4167
    %v4570 = vpack.c.b16 %v4174, %v4168
    %v4571 = vpack.c.b16 %v4175, %v4169
    %v4572 = vpack.c.b16 %v4176, %v4170
    %v4573 = vpack.c.b16 %v4177, %v4171
    %v4574 = vpack.c.b16 %v4184, %v4178
    %v4575 = vpack.c.b16 %v4185, %v4179
    %v4576 = vpack.c.b16 %v4186, %v4180
    %v4577 = vpack.c.b16 %v4187, %v4181
    %v4578 = vpack.c.b16 %v4188, %v4182
    %v4579 = vpack.c.b16 %v4189, %v4183
    %v4580 = vpack.c.b16 %v4196, %v4190
    %v4581 = vpack.c.b16 %v4197, %v4191
    %v4582 = vpack.c.b16 %v4198, %v4192
    %v4583 = vpack.c.b16 %v4199, %v4193
    %v4584 = vpack.c.b16 %v4200, %v4194
    %v4585 = vpack.c.b16 %v4201, %v4195
    %4970 = vmatprep.subr.bf16.mxu0 %v4203
    %4971 = vmatpush1.bf16.msra.mxu0 %v4202
    %4972 = vmatprep.subr.bf16.mxu0 %v4209
    %4973 = vmatpush1.bf16.msra.mxu0 %v4208
    %4974 = vmatprep.subr.bf16.mxu0 %v4215
    %4975 = vmatpush1.bf16.msra.mxu0 %v4214
    %4976 = vmatprep.subr.bf16.mxu0 %v4221
    %4977 = vmatpush1.bf16.msra.mxu0 %v4220
    %4978 = vmatprep.subr.bf16.mxu0 %v4227
    %4979 = vmatpush1.bf16.msra.mxu0 %v4226
    %4980 = vmatprep.subr.bf16.mxu0 %v4233
    %4981 = vmatpush1.bf16.msra.mxu0 %v4232
    %4982 = vmatprep.subr.bf16.mxu0 %v4239
    %4983 = vmatpush1.bf16.msra.mxu0 %v4238
    %4984 = vmatprep.subr.bf16.mxu0 %v4245
    %4985 = vmatpush1.bf16.msra.mxu0 %v4244
    %4986 = vmatprep.subr.bf16.mxu0 %v4251
    %4987 = vmatpush1.bf16.msra.mxu0 %v4250
    %4988 = vmatprep.subr.bf16.mxu0 %v4257
    %4989 = vmatpush1.bf16.msra.mxu0 %v4256
    %4990 = vmatprep.subr.bf16.mxu0 %v4263
    %4991 = vmatpush1.bf16.msra.mxu0 %v4262
    %4992 = vmatprep.subr.bf16.mxu0 %v4269
    %4993 = vmatpush1.bf16.msra.mxu0 %v4268
    %4994 = vmatprep.subr.bf16.mxu0 %v4275
    %4995 = vmatpush1.bf16.msra.mxu0 %v4274
    %4996 = vmatprep.subr.bf16.mxu0 %v4281
    %4997 = vmatpush1.bf16.msra.mxu0 %v4280
    %4998 = vmatprep.subr.bf16.mxu0 %v4287
    %4999 = vmatpush1.bf16.msra.mxu0 %v4286
    %5000 = vmatprep.subr.bf16.mxu0 %v4293
    %5001 = vmatpush1.bf16.msra.mxu0 %v4292
    %5002 = vmatprep.mubr.bf16.mxu0 %v2627
    %5003 = vmatmul.mubr.bf16.gmra.mrb[0].mxu0 %v2626
    %v5004 = vpop.f32.mrb[0].mxu0
    %v5005 = vadd.f32 %v3023, %v5004
    %v5006 = vpop.f32.mrb[0].mxu0
    %v5007 = vadd.f32 %v3027, %v5006
    %v5008 = vpop.f32.mrb[0].mxu0
    %v5009 = vadd.f32 %v3023, %v5008
    %v5010 = vpop.f32.mrb[0].mxu0
    %v5011 = vadd.f32 %v3027, %v5010
    %5012 = vdwg.mxu0
    %5013 = vmatprep.subr.bf16.mxu0 %v4299
    %5014 = vmatpush1.bf16.msra.mxu0 %v4298
    %5015 = vmatprep.subr.bf16.mxu0 %v4305
    %5016 = vmatpush1.bf16.msra.mxu0 %v4304
    %5017 = vmatprep.subr.bf16.mxu0 %v4311
    %5018 = vmatpush1.bf16.msra.mxu0 %v4310
    %5019 = vmatprep.subr.bf16.mxu0 %v4317
    %5020 = vmatpush1.bf16.msra.mxu0 %v4316
    %5021 = vmatprep.subr.bf16.mxu0 %v4323
    %5022 = vmatpush1.bf16.msra.mxu0 %v4322
    %5023 = vmatprep.subr.bf16.mxu0 %v4329
    %5024 = vmatpush1.bf16.msra.mxu0 %v4328
    %5025 = vmatprep.subr.bf16.mxu0 %v4335
    %5026 = vmatpush1.bf16.msra.mxu0 %v4334
    %5027 = vmatprep.subr.bf16.mxu0 %v4341
    %5028 = vmatpush1.bf16.msra.mxu0 %v4340
    %5029 = vmatprep.subr.bf16.mxu0 %v4347
    %5030 = vmatpush1.bf16.msra.mxu0 %v4346
    %5031 = vmatprep.subr.bf16.mxu0 %v4353
    %5032 = vmatpush1.bf16.msra.mxu0 %v4352
    %5033 = vmatprep.subr.bf16.mxu0 %v4359
    %5034 = vmatpush1.bf16.msra.mxu0 %v4358
    %5035 = vmatprep.subr.bf16.mxu0 %v4365
    %5036 = vmatpush1.bf16.msra.mxu0 %v4364
    %5037 = vmatprep.subr.bf16.mxu0 %v4371
    %5038 = vmatpush1.bf16.msra.mxu0 %v4370
    %5039 = vmatprep.subr.bf16.mxu0 %v4377
    %5040 = vmatpush1.bf16.msra.mxu0 %v4376
    %5041 = vmatprep.subr.bf16.mxu0 %v4383
    %5042 = vmatpush1.bf16.msra.mxu0 %v4382
    %5043 = vmatprep.subr.bf16.mxu0 %v4389
    %5044 = vmatpush1.bf16.msra.mxu0 %v4388
    %5045 = vmatprep.mubr.bf16.mxu0 %v2629
    %5046 = vmatmul.mubr.bf16.gmra.mrb[0].mxu0 %v2628
    %v5047 = vpop.f32.mrb[0].mxu0
    %v5048 = vadd.f32 %v5005, %v5047
    %v5049 = vpop.f32.mrb[0].mxu0
    %v5050 = vadd.f32 %v5007, %v5049
    %v5051 = vpop.f32.mrb[0].mxu0
    %v5052 = vadd.f32 %v5009, %v5051
    %v5053 = vpop.f32.mrb[0].mxu0
    %v5054 = vadd.f32 %v5011, %v5053
    %5055 = vdwg.mxu0
    %5056 = vmatprep.subr.bf16.mxu0 %v4395
    %5057 = vmatpush1.bf16.msra.mxu0 %v4394
    %5058 = vmatprep.subr.bf16.mxu0 %v4401
    %5059 = vmatpush1.bf16.msra.mxu0 %v4400
    %5060 = vmatprep.subr.bf16.mxu0 %v4407
    %5061 = vmatpush1.bf16.msra.mxu0 %v4406
    %5062 = vmatprep.subr.bf16.mxu0 %v4413
    %5063 = vmatpush1.bf16.msra.mxu0 %v4412
    %5064 = vmatprep.subr.bf16.mxu0 %v4419
    %5065 = vmatpush1.bf16.msra.mxu0 %v4418
    %5066 = vmatprep.subr.bf16.mxu0 %v4425
    %5067 = vmatpush1.bf16.msra.mxu0 %v4424
    %5068 = vmatprep.subr.bf16.mxu0 %v4431
    %5069 = vmatpush1.bf16.msra.mxu0 %v4430
    %5070 = vmatprep.subr.bf16.mxu0 %v4437
    %5071 = vmatpush1.bf16.msra.mxu0 %v4436
    %5072 = vmatprep.subr.bf16.mxu0 %v4443
    %5073 = vmatpush1.bf16.msra.mxu0 %v4442
    %5074 = vmatprep.subr.bf16.mxu0 %v4449
    %5075 = vmatpush1.bf16.msra.mxu0 %v4448
    %5076 = vmatprep.subr.bf16.mxu0 %v4455
    %5077 = vmatpush1.bf16.msra.mxu0 %v4454
    %5078 = vmatprep.subr.bf16.mxu0 %v4461
    %5079 = vmatpush1.bf16.msra.mxu0 %v4460
    %5080 = vmatprep.subr.bf16.mxu0 %v4467
    %5081 = vmatpush1.bf16.msra.mxu0 %v4466
    %5082 = vmatprep.subr.bf16.mxu0 %v4473
    %5083 = vmatpush1.bf16.msra.mxu0 %v4472
    %5084 = vmatprep.subr.bf16.mxu0 %v4479
    %5085 = vmatpush1.bf16.msra.mxu0 %v4478
    %5086 = vmatprep.subr.bf16.mxu0 %v4485
    %5087 = vmatpush1.bf16.msra.mxu0 %v4484
    %5088 = vmatprep.mubr.bf16.mxu0 %v2631
    %5089 = vmatmul.mubr.bf16.gmra.mrb[0].mxu0 %v2630
    %v5090 = vpop.f32.mrb[0].mxu0
    %v5091 = vadd.f32 %v5048, %v5090
    %v5092 = vpop.f32.mrb[0].mxu0
    %v5093 = vadd.f32 %v5050, %v5092
    %v5094 = vpop.f32.mrb[0].mxu0
    %v5095 = vadd.f32 %v5052, %v5094
    %v5096 = vpop.f32.mrb[0].mxu0
    %v5097 = vadd.f32 %v5054, %v5096
    %5098 = vdwg.mxu0
    %5099 = vmatprep.subr.bf16.mxu0 %v4491
    %5100 = vmatpush1.bf16.msra.mxu0 %v4490
    %5101 = vmatprep.subr.bf16.mxu0 %v4497
    %5102 = vmatpush1.bf16.msra.mxu0 %v4496
    %5103 = vmatprep.subr.bf16.mxu0 %v4503
    %5104 = vmatpush1.bf16.msra.mxu0 %v4502
    %5105 = vmatprep.subr.bf16.mxu0 %v4509
    %5106 = vmatpush1.bf16.msra.mxu0 %v4508
    %5107 = vmatprep.subr.bf16.mxu0 %v4515
    %5108 = vmatpush1.bf16.msra.mxu0 %v4514
    %5109 = vmatprep.subr.bf16.mxu0 %v4521
    %5110 = vmatpush1.bf16.msra.mxu0 %v4520
    %5111 = vmatprep.subr.bf16.mxu0 %v4527
    %5112 = vmatpush1.bf16.msra.mxu0 %v4526
    %5113 = vmatprep.subr.bf16.mxu0 %v4533
    %5114 = vmatpush1.bf16.msra.mxu0 %v4532
    %5115 = vmatprep.subr.bf16.mxu0 %v4539
    %5116 = vmatpush1.bf16.msra.mxu0 %v4538
    %5117 = vmatprep.subr.bf16.mxu0 %v4545
    %5118 = vmatpush1.bf16.msra.mxu0 %v4544
    %5119 = vmatprep.subr.bf16.mxu0 %v4551
    %5120 = vmatpush1.bf16.msra.mxu0 %v4550
    %5121 = vmatprep.subr.bf16.mxu0 %v4557
    %5122 = vmatpush1.bf16.msra.mxu0 %v4556
    %5123 = vmatprep.subr.bf16.mxu0 %v4563
    %5124 = vmatpush1.bf16.msra.mxu0 %v4562
    %5125 = vmatprep.subr.bf16.mxu0 %v4569
    %5126 = vmatpush1.bf16.msra.mxu0 %v4568
    %5127 = vmatprep.subr.bf16.mxu0 %v4575
    %5128 = vmatpush1.bf16.msra.mxu0 %v4574
    %5129 = vmatprep.subr.bf16.mxu0 %v4581
    %5130 = vmatpush1.bf16.msra.mxu0 %v4580
    %5131 = vmatprep.mubr.bf16.mxu0 %v2633
    %5132 = vmatmul.mubr.bf16.gmra.mrb[0].mxu0 %v2632
    %v5133 = vpop.f32.mrb[0].mxu0
    %v5134 = vadd.f32 %v5091, %v5133
    %v5135 = vpop.f32.mrb[0].mxu0
    %v5136 = vadd.f32 %v5093, %v5135
    %v5137 = vpop.f32.mrb[0].mxu0
    %v5138 = vadd.f32 %v5095, %v5137
    %v5139 = vpop.f32.mrb[0].mxu0
    %v5140 = vadd.f32 %v5097, %v5139
    %5141 = vdwg.mxu0
    %5142 = vmatprep.subr.bf16.mxu0 %v4205
    %5143 = vmatpush1.bf16.msra.mxu0 %v4204
    %5144 = vmatprep.subr.bf16.mxu0 %v4211
    %5145 = vmatpush1.bf16.msra.mxu0 %v4210
    %5146 = vmatprep.subr.bf16.mxu0 %v4217
    %5147 = vmatpush1.bf16.msra.mxu0 %v4216
    %5148 = vmatprep.subr.bf16.mxu0 %v4223
    %5149 = vmatpush1.bf16.msra.mxu0 %v4222
    %5150 = vmatprep.subr.bf16.mxu0 %v4229
    %5151 = vmatpush1.bf16.msra.mxu0 %v4228
    %5152 = vmatprep.subr.bf16.mxu0 %v4235
    %5153 = vmatpush1.bf16.msra.mxu0 %v4234
    %5154 = vmatprep.subr.bf16.mxu0 %v4241
    %5155 = vmatpush1.bf16.msra.mxu0 %v4240
    %5156 = vmatprep.subr.bf16.mxu0 %v4247
    %5157 = vmatpush1.bf16.msra.mxu0 %v4246
    %5158 = vmatprep.subr.bf16.mxu0 %v4253
    %5159 = vmatpush1.bf16.msra.mxu0 %v4252
    %5160 = vmatprep.subr.bf16.mxu0 %v4259
    %5161 = vmatpush1.bf16.msra.mxu0 %v4258
    %5162 = vmatprep.subr.bf16.mxu0 %v4265
    %5163 = vmatpush1.bf16.msra.mxu0 %v4264
    %5164 = vmatprep.subr.bf16.mxu0 %v4271
    %5165 = vmatpush1.bf16.msra.mxu0 %v4270
    %5166 = vmatprep.subr.bf16.mxu0 %v4277
    %5167 = vmatpush1.bf16.msra.mxu0 %v4276
    %5168 = vmatprep.subr.bf16.mxu0 %v4283
    %5169 = vmatpush1.bf16.msra.mxu0 %v4282
    %5170 = vmatprep.subr.bf16.mxu0 %v4289
    %5171 = vmatpush1.bf16.msra.mxu0 %v4288
    %5172 = vmatprep.subr.bf16.mxu0 %v4295
    %5173 = vmatpush1.bf16.msra.mxu0 %v4294
    %5174 = vmatprep.mubr.bf16.mxu0 %v2627
    %5175 = vmatmul.mubr.bf16.gmra.mrb[0].mxu0 %v2626
    %v5176 = vpop.f32.mrb[0].mxu0
    %v5177 = vadd.f32 %v3031, %v5176
    %v5178 = vpop.f32.mrb[0].mxu0
    %v5179 = vadd.f32 %v3035, %v5178
    %v5180 = vpop.f32.mrb[0].mxu0
    %v5181 = vadd.f32 %v3031, %v5180
    %v5182 = vpop.f32.mrb[0].mxu0
    %v5183 = vadd.f32 %v3035, %v5182
    %5184 = vdwg.mxu0
    %5185 = vmatprep.subr.bf16.mxu0 %v4301
    %5186 = vmatpush1.bf16.msra.mxu0 %v4300
    %5187 = vmatprep.subr.bf16.mxu0 %v4307
    %5188 = vmatpush1.bf16.msra.mxu0 %v4306
    %5189 = vmatprep.subr.bf16.mxu0 %v4313
    %5190 = vmatpush1.bf16.msra.mxu0 %v4312
    %5191 = vmatprep.subr.bf16.mxu0 %v4319
    %5192 = vmatpush1.bf16.msra.mxu0 %v4318
    %5193 = vmatprep.subr.bf16.mxu0 %v4325
    %5194 = vmatpush1.bf16.msra.mxu0 %v4324
    %5195 = vmatprep.subr.bf16.mxu0 %v4331
    %5196 = vmatpush1.bf16.msra.mxu0 %v4330
    %5197 = vmatprep.subr.bf16.mxu0 %v4337
    %5198 = vmatpush1.bf16.msra.mxu0 %v4336
    %5199 = vmatprep.subr.bf16.mxu0 %v4343
    %5200 = vmatpush1.bf16.msra.mxu0 %v4342
    %5201 = vmatprep.subr.bf16.mxu0 %v4349
    %5202 = vmatpush1.bf16.msra.mxu0 %v4348
    %5203 = vmatprep.subr.bf16.mxu0 %v4355
    %5204 = vmatpush1.bf16.msra.mxu0 %v4354
    %5205 = vmatprep.subr.bf16.mxu0 %v4361
    %5206 = vmatpush1.bf16.msra.mxu0 %v4360
    %5207 = vmatprep.subr.bf16.mxu0 %v4367
    %5208 = vmatpush1.bf16.msra.mxu0 %v4366
    %5209 = vmatprep.subr.bf16.mxu0 %v4373
    %5210 = vmatpush1.bf16.msra.mxu0 %v4372
    %5211 = vmatprep.subr.bf16.mxu0 %v4379
    %5212 = vmatpush1.bf16.msra.mxu0 %v4378
    %5213 = vmatprep.subr.bf16.mxu0 %v4385
    %5214 = vmatpush1.bf16.msra.mxu0 %v4384
    %5215 = vmatprep.subr.bf16.mxu0 %v4391
    %5216 = vmatpush1.bf16.msra.mxu0 %v4390
    %5217 = vmatprep.mubr.bf16.mxu0 %v2629
    %5218 = vmatmul.mubr.bf16.gmra.mrb[0].mxu0 %v2628
    %v5219 = vpop.f32.mrb[0].mxu0
    %v5220 = vadd.f32 %v5177, %v5219
    %v5221 = vpop.f32.mrb[0].mxu0
    %v5222 = vadd.f32 %v5179, %v5221
    %v5223 = vpop.f32.mrb[0].mxu0
    %v5224 = vadd.f32 %v5181, %v5223
    %v5225 = vpop.f32.mrb[0].mxu0
    %v5226 = vadd.f32 %v5183, %v5225
    %5227 = vdwg.mxu0
    %5228 = vmatprep.subr.bf16.mxu0 %v4397
    %5229 = vmatpush1.bf16.msra.mxu0 %v4396
    %5230 = vmatprep.subr.bf16.mxu0 %v4403
    %5231 = vmatpush1.bf16.msra.mxu0 %v4402
    %5232 = vmatprep.subr.bf16.mxu0 %v4409
    %5233 = vmatpush1.bf16.msra.mxu0 %v4408
    %5234 = vmatprep.subr.bf16.mxu0 %v4415
    %5235 = vmatpush1.bf16.msra.mxu0 %v4414
    %5236 = vmatprep.subr.bf16.mxu0 %v4421
    %5237 = vmatpush1.bf16.msra.mxu0 %v4420
    %5238 = vmatprep.subr.bf16.mxu0 %v4427
    %5239 = vmatpush1.bf16.msra.mxu0 %v4426
    %5240 = vmatprep.subr.bf16.mxu0 %v4433
    %5241 = vmatpush1.bf16.msra.mxu0 %v4432
    %5242 = vmatprep.subr.bf16.mxu0 %v4439
    %5243 = vmatpush1.bf16.msra.mxu0 %v4438
    %5244 = vmatprep.subr.bf16.mxu0 %v4445
    %5245 = vmatpush1.bf16.msra.mxu0 %v4444
    %5246 = vmatprep.subr.bf16.mxu0 %v4451
    %5247 = vmatpush1.bf16.msra.mxu0 %v4450
    %5248 = vmatprep.subr.bf16.mxu0 %v4457
    %5249 = vmatpush1.bf16.msra.mxu0 %v4456
    %5250 = vmatprep.subr.bf16.mxu0 %v4463
    %5251 = vmatpush1.bf16.msra.mxu0 %v4462
    %5252 = vmatprep.subr.bf16.mxu0 %v4469
    %5253 = vmatpush1.bf16.msra.mxu0 %v4468
    %5254 = vmatprep.subr.bf16.mxu0 %v4475
    %5255 = vmatpush1.bf16.msra.mxu0 %v4474
    %5256 = vmatprep.subr.bf16.mxu0 %v4481
    %5257 = vmatpush1.bf16.msra.mxu0 %v4480
    %5258 = vmatprep.subr.bf16.mxu0 %v4487
    %5259 = vmatpush1.bf16.msra.mxu0 %v4486
    %5260 = vmatprep.mubr.bf16.mxu0 %v2631
    %5261 = vmatmul.mubr.bf16.gmra.mrb[0].mxu0 %v2630
    %v5262 = vpop.f32.mrb[0].mxu0
    %v5263 = vadd.f32 %v5220, %v5262
    %v5264 = vpop.f32.mrb[0].mxu0
    %v5265 = vadd.f32 %v5222, %v5264
    %v5266 = vpop.f32.mrb[0].mxu0
    %v5267 = vadd.f32 %v5224, %v5266
    %v5268 = vpop.f32.mrb[0].mxu0
    %v5269 = vadd.f32 %v5226, %v5268
    %5270 = vdwg.mxu0
    %5271 = vmatprep.subr.bf16.mxu0 %v4493
    %5272 = vmatpush1.bf16.msra.mxu0 %v4492
    %5273 = vmatprep.subr.bf16.mxu0 %v4499
    %5274 = vmatpush1.bf16.msra.mxu0 %v4498
    %5275 = vmatprep.subr.bf16.mxu0 %v4505
    %5276 = vmatpush1.bf16.msra.mxu0 %v4504
    %5277 = vmatprep.subr.bf16.mxu0 %v4511
    %5278 = vmatpush1.bf16.msra.mxu0 %v4510
    %5279 = vmatprep.subr.bf16.mxu0 %v4517
    %5280 = vmatpush1.bf16.msra.mxu0 %v4516
    %5281 = vmatprep.subr.bf16.mxu0 %v4523
    %5282 = vmatpush1.bf16.msra.mxu0 %v4522
    %5283 = vmatprep.subr.bf16.mxu0 %v4529
    %5284 = vmatpush1.bf16.msra.mxu0 %v4528
    %5285 = vmatprep.subr.bf16.mxu0 %v4535
    %5286 = vmatpush1.bf16.msra.mxu0 %v4534
    %5287 = vmatprep.subr.bf16.mxu0 %v4541
    %5288 = vmatpush1.bf16.msra.mxu0 %v4540
    %5289 = vmatprep.subr.bf16.mxu0 %v4547
    %5290 = vmatpush1.bf16.msra.mxu0 %v4546
    %5291 = vmatprep.subr.bf16.mxu0 %v4553
    %5292 = vmatpush1.bf16.msra.mxu0 %v4552
    %5293 = vmatprep.subr.bf16.mxu0 %v4559
    %5294 = vmatpush1.bf16.msra.mxu0 %v4558
    %5295 = vmatprep.subr.bf16.mxu0 %v4565
    %5296 = vmatpush1.bf16.msra.mxu0 %v4564
    %5297 = vmatprep.subr.bf16.mxu0 %v4571
    %5298 = vmatpush1.bf16.msra.mxu0 %v4570
    %5299 = vmatprep.subr.bf16.mxu0 %v4577
    %5300 = vmatpush1.bf16.msra.mxu0 %v4576
    %5301 = vmatprep.subr.bf16.mxu0 %v4583
    %5302 = vmatpush1.bf16.msra.mxu0 %v4582
    %5303 = vmatprep.mubr.bf16.mxu0 %v2633
    %5304 = vmatmul.mubr.bf16.gmra.mrb[0].mxu0 %v2632
    %v5305 = vpop.f32.mrb[0].mxu0
    %v5306 = vadd.f32 %v5263, %v5305
    %v5307 = vpop.f32.mrb[0].mxu0
    %v5308 = vadd.f32 %v5265, %v5307
    %v5309 = vpop.f32.mrb[0].mxu0
    %v5310 = vadd.f32 %v5267, %v5309
    %v5311 = vpop.f32.mrb[0].mxu0
    %v5312 = vadd.f32 %v5269, %v5311
    %5313 = vdwg.mxu0
    %5314 = vmatprep.subr.bf16.mxu0 %v4207
    %5315 = vmatpush1.bf16.msra.mxu0 %v4206
    %5316 = vmatprep.subr.bf16.mxu0 %v4213
    %5317 = vmatpush1.bf16.msra.mxu0 %v4212
    %5318 = vmatprep.subr.bf16.mxu0 %v4219
    %5319 = vmatpush1.bf16.msra.mxu0 %v4218
    %5320 = vmatprep.subr.bf16.mxu0 %v4225
    %5321 = vmatpush1.bf16.msra.mxu0 %v4224
    %5322 = vmatprep.subr.bf16.mxu0 %v4231
    %5323 = vmatpush1.bf16.msra.mxu0 %v4230
    %5324 = vmatprep.subr.bf16.mxu0 %v4237
    %5325 = vmatpush1.bf16.msra.mxu0 %v4236
    %5326 = vmatprep.subr.bf16.mxu0 %v4243
    %5327 = vmatpush1.bf16.msra.mxu0 %v4242
    %5328 = vmatprep.subr.bf16.mxu0 %v4249
    %5329 = vmatpush1.bf16.msra.mxu0 %v4248
    %5330 = vmatprep.subr.bf16.mxu0 %v4255
    %5331 = vmatpush1.bf16.msra.mxu0 %v4254
    %5332 = vmatprep.subr.bf16.mxu0 %v4261
    %5333 = vmatpush1.bf16.msra.mxu0 %v4260
    %5334 = vmatprep.subr.bf16.mxu0 %v4267
    %5335 = vmatpush1.bf16.msra.mxu0 %v4266
    %5336 = vmatprep.subr.bf16.mxu0 %v4273
    %5337 = vmatpush1.bf16.msra.mxu0 %v4272
    %5338 = vmatprep.subr.bf16.mxu0 %v4279
    %5339 = vmatpush1.bf16.msra.mxu0 %v4278
    %5340 = vmatprep.subr.bf16.mxu0 %v4285
    %5341 = vmatpush1.bf16.msra.mxu0 %v4284
    %5342 = vmatprep.subr.bf16.mxu0 %v4291
    %5343 = vmatpush1.bf16.msra.mxu0 %v4290
    %5344 = vmatprep.subr.bf16.mxu0 %v4297
    %5345 = vmatpush1.bf16.msra.mxu0 %v4296
    %5346 = vmatprep.mubr.bf16.mxu0 %v2627
    %5347 = vmatmul.mubr.bf16.gmra.mrb[0].mxu0 %v2626
    %v5348 = vpop.f32.mrb[0].mxu0
    %v5349 = vadd.f32 %v3039, %v5348
    %v5350 = vpop.f32.mrb[0].mxu0
    %v5351 = vadd.f32 %v3043, %v5350
    %v5352 = vpop.f32.mrb[0].mxu0
    %v5353 = vadd.f32 %v3039, %v5352
    %v5354 = vpop.f32.mrb[0].mxu0
    %v5355 = vadd.f32 %v3043, %v5354
    %5356 = vdwg.mxu0
    %5357 = vmatprep.subr.bf16.mxu0 %v4303
    %5358 = vmatpush1.bf16.msra.mxu0 %v4302
    %5359 = vmatprep.subr.bf16.mxu0 %v4309
    %5360 = vmatpush1.bf16.msra.mxu0 %v4308
    %5361 = vmatprep.subr.bf16.mxu0 %v4315
    %5362 = vmatpush1.bf16.msra.mxu0 %v4314
    %5363 = vmatprep.subr.bf16.mxu0 %v4321
    %5364 = vmatpush1.bf16.msra.mxu0 %v4320
    %5365 = vmatprep.subr.bf16.mxu0 %v4327
    %5366 = vmatpush1.bf16.msra.mxu0 %v4326
    %5367 = vmatprep.subr.bf16.mxu0 %v4333
    %5368 = vmatpush1.bf16.msra.mxu0 %v4332
    %5369 = vmatprep.subr.bf16.mxu0 %v4339
    %5370 = vmatpush1.bf16.msra.mxu0 %v4338
    %5371 = vmatprep.subr.bf16.mxu0 %v4345
    %5372 = vmatpush1.bf16.msra.mxu0 %v4344
    %5373 = vmatprep.subr.bf16.mxu0 %v4351
    %5374 = vmatpush1.bf16.msra.mxu0 %v4350
    %5375 = vmatprep.subr.bf16.mxu0 %v4357
    %5376 = vmatpush1.bf16.msra.mxu0 %v4356
    %5377 = vmatprep.subr.bf16.mxu0 %v4363
    %5378 = vmatpush1.bf16.msra.mxu0 %v4362
    %5379 = vmatprep.subr.bf16.mxu0 %v4369
    %5380 = vmatpush1.bf16.msra.mxu0 %v4368
    %5381 = vmatprep.subr.bf16.mxu0 %v4375
    %5382 = vmatpush1.bf16.msra.mxu0 %v4374
    %5383 = vmatprep.subr.bf16.mxu0 %v4381
    %5384 = vmatpush1.bf16.msra.mxu0 %v4380
    %5385 = vmatprep.subr.bf16.mxu0 %v4387
    %5386 = vmatpush1.bf16.msra.mxu0 %v4386
    %5387 = vmatprep.subr.bf16.mxu0 %v4393
    %5388 = vmatpush1.bf16.msra.mxu0 %v4392
    %5389 = vmatprep.mubr.bf16.mxu0 %v2629
    %5390 = vmatmul.mubr.bf16.gmra.mrb[0].mxu0 %v2628
    %v5391 = vpop.f32.mrb[0].mxu0
    %v5392 = vadd.f32 %v5349, %v5391
    %v5393 = vpop.f32.mrb[0].mxu0
    %v5394 = vadd.f32 %v5351, %v5393
    %v5395 = vpop.f32.mrb[0].mxu0
    %v5396 = vadd.f32 %v5353, %v5395
    %v5397 = vpop.f32.mrb[0].mxu0
    %v5398 = vadd.f32 %v5355, %v5397
    %5399 = vdwg.mxu0
    %5400 = vmatprep.subr.bf16.mxu0 %v4399
    %5401 = vmatpush1.bf16.msra.mxu0 %v4398
    %5402 = vmatprep.subr.bf16.mxu0 %v4405
    %5403 = vmatpush1.bf16.msra.mxu0 %v4404
    %5404 = vmatprep.subr.bf16.mxu0 %v4411
    %5405 = vmatpush1.bf16.msra.mxu0 %v4410
    %5406 = vmatprep.subr.bf16.mxu0 %v4417
    %5407 = vmatpush1.bf16.msra.mxu0 %v4416
    %5408 = vmatprep.subr.bf16.mxu0 %v4423
    %5409 = vmatpush1.bf16.msra.mxu0 %v4422
    %5410 = vmatprep.subr.bf16.mxu0 %v4429
    %5411 = vmatpush1.bf16.msra.mxu0 %v4428
    %5412 = vmatprep.subr.bf16.mxu0 %v4435
    %5413 = vmatpush1.bf16.msra.mxu0 %v4434
    %5414 = vmatprep.subr.bf16.mxu0 %v4441
    %5415 = vmatpush1.bf16.msra.mxu0 %v4440
    %5416 = vmatprep.subr.bf16.mxu0 %v4447
    %5417 = vmatpush1.bf16.msra.mxu0 %v4446
    %5418 = vmatprep.subr.bf16.mxu0 %v4453
    %5419 = vmatpush1.bf16.msra.mxu0 %v4452
    %5420 = vmatprep.subr.bf16.mxu0 %v4459
    %5421 = vmatpush1.bf16.msra.mxu0 %v4458
    %5422 = vmatprep.subr.bf16.mxu0 %v4465
    %5423 = vmatpush1.bf16.msra.mxu0 %v4464
    %5424 = vmatprep.subr.bf16.mxu0 %v4471
    %5425 = vmatpush1.bf16.msra.mxu0 %v4470
    %5426 = vmatprep.subr.bf16.mxu0 %v4477
    %5427 = vmatpush1.bf16.msra.mxu0 %v4476
    %5428 = vmatprep.subr.bf16.mxu0 %v4483
    %5429 = vmatpush1.bf16.msra.mxu0 %v4482
    %5430 = vmatprep.subr.bf16.mxu0 %v4489
    %5431 = vmatpush1.bf16.msra.mxu0 %v4488
    %5432 = vmatprep.mubr.bf16.mxu0 %v2631
    %5433 = vmatmul.mubr.bf16.gmra.mrb[0].mxu0 %v2630
    %v5434 = vpop.f32.mrb[0].mxu0
    %v5435 = vadd.f32 %v5392, %v5434
    %v5436 = vpop.f32.mrb[0].mxu0
    %v5437 = vadd.f32 %v5394, %v5436
    %v5438 = vpop.f32.mrb[0].mxu0
    %v5439 = vadd.f32 %v5396, %v5438
    %v5440 = vpop.f32.mrb[0].mxu0
    %v5441 = vadd.f32 %v5398, %v5440
    %5442 = vdwg.mxu0
    %5443 = vmatprep.subr.bf16.mxu0 %v4495
    %5444 = vmatpush1.bf16.msra.mxu0 %v4494
    %5445 = vmatprep.subr.bf16.mxu0 %v4501
    %5446 = vmatpush1.bf16.msra.mxu0 %v4500
    %5447 = vmatprep.subr.bf16.mxu0 %v4507
    %5448 = vmatpush1.bf16.msra.mxu0 %v4506
    %5449 = vmatprep.subr.bf16.mxu0 %v4513
    %5450 = vmatpush1.bf16.msra.mxu0 %v4512
    %5451 = vmatprep.subr.bf16.mxu0 %v4519
    %5452 = vmatpush1.bf16.msra.mxu0 %v4518
    %5453 = vmatprep.subr.bf16.mxu0 %v4525
    %5454 = vmatpush1.bf16.msra.mxu0 %v4524
    %5455 = vmatprep.subr.bf16.mxu0 %v4531
    %5456 = vmatpush1.bf16.msra.mxu0 %v4530
    %5457 = vmatprep.subr.bf16.mxu0 %v4537
    %5458 = vmatpush1.bf16.msra.mxu0 %v4536
    %5459 = vmatprep.subr.bf16.mxu0 %v4543
    %5460 = vmatpush1.bf16.msra.mxu0 %v4542
    %5461 = vmatprep.subr.bf16.mxu0 %v4549
    %5462 = vmatpush1.bf16.msra.mxu0 %v4548
    %5463 = vmatprep.subr.bf16.mxu0 %v4555
    %5464 = vmatpush1.bf16.msra.mxu0 %v4554
    %5465 = vmatprep.subr.bf16.mxu0 %v4561
    %5466 = vmatpush1.bf16.msra.mxu0 %v4560
    %5467 = vmatprep.subr.bf16.mxu0 %v4567
    %5468 = vmatpush1.bf16.msra.mxu0 %v4566
    %5469 = vmatprep.subr.bf16.mxu0 %v4573
    %5470 = vmatpush1.bf16.msra.mxu0 %v4572
    %5471 = vmatprep.subr.bf16.mxu0 %v4579
    %5472 = vmatpush1.bf16.msra.mxu0 %v4578
    %5473 = vmatprep.subr.bf16.mxu0 %v4585
    %5474 = vmatpush1.bf16.msra.mxu0 %v4584
    %5475 = vmatprep.mubr.bf16.mxu0 %v2633
    %5476 = vmatmul.mubr.bf16.gmra.mrb[0].mxu0 %v2632
    %v5477 = vpop.f32.mrb[0].mxu0
    %v5478 = vadd.f32 %v5435, %v5477
    %v5479 = vpop.f32.mrb[0].mxu0
    %v5480 = vadd.f32 %v5437, %v5479
    %v5481 = vpop.f32.mrb[0].mxu0
    %v5482 = vadd.f32 %v5439, %v5481
    %v5483 = vpop.f32.mrb[0].mxu0
    %v5484 = vadd.f32 %v5441, %v5483
    %5485 = vdwg.mxu0
    %v5486 = vmax.f32 %v5134, 0.0
    %v5487 = vmax.f32 %v5136, 0.0
    %v5488 = vmax.f32 %v5306, 0.0
    %v5489 = vmax.f32 %v5308, 0.0
    %v5490 = vmax.f32 %v5478, 0.0
    %v5491 = vmax.f32 %v5480, 0.0
    %v5492 = vmax.f32 %v5138, 0.0
    %v5493 = vmax.f32 %v5140, 0.0
    %v5494 = vmax.f32 %v5310, 0.0
    %v5495 = vmax.f32 %v5312, 0.0
    %v5496 = vmax.f32 %v5482, 0.0
    %v5497 = vmax.f32 %v5484, 0.0
    %v5498 = vld [vmem:[#allocation14] sm:$0xff]
    %v5499 = vld [vmem:[#allocation14 + $0x8] sm:$0xff]
    %v5500 = vld [vmem:[#allocation14 + $0x10] sm:$0xff]
    %v5501 = vld [vmem:[#allocation14 + $0x18] sm:$0xff]
    %v5502 = vld [vmem:[#allocation14 + $0x20] sm:$0xff]
    %v5503 = vld [vmem:[#allocation14 + $0x28] sm:$0xff]
    %v5504 = vld [vmem:[#allocation14 + $0x30] sm:$0xff]
    %v5505 = vld [vmem:[#allocation14 + $0x38] sm:$0xff]
    %v5506 = vld [vmem:[#allocation14 + $0x40] sm:$0xff]
    %v5507 = vld [vmem:[#allocation14 + $0x48] sm:$0xff]
    %v5508 = vld [vmem:[#allocation14 + $0x50] sm:$0xff]
    %v5509 = vld [vmem:[#allocation14 + $0x58] sm:$0xff]
    %v5510 = vadd.f32 %v5486, %v5498
    %v5511 = vadd.f32 %v5487, %v5499
    %v5512 = vadd.f32 %v5488, %v5500
    %v5513 = vadd.f32 %v5489, %v5501
    %v5514 = vadd.f32 %v5490, %v5502
    %v5515 = vadd.f32 %v5491, %v5503
    %v5516 = vadd.f32 %v5492, %v5504
    %v5517 = vadd.f32 %v5493, %v5505
    %v5518 = vadd.f32 %v5494, %v5506
    %v5519 = vadd.f32 %v5495, %v5507
    %v5520 = vadd.f32 %v5496, %v5508
    %v5521 = vadd.f32 %v5497, %v5509
    %v5522 = vld [vmem:[#allocation16] sm:$0xff]
    %v5523 = vld [vmem:[#allocation16 + $0x8] sm:$0xff]
    %v5524 = vld [vmem:[#allocation16 + $0x10] sm:$0xff]
    %v5525 = vld [vmem:[#allocation16 + $0x18] sm:$0xff]
    %v5526 = vld [vmem:[#allocation16 + $0x20] sm:$0xff]
    %v5527 = vld [vmem:[#allocation16 + $0x28] sm:$0xff]
    %v5528 = vld [vmem:[#allocation16 + $0x30] sm:$0xff]
    %v5529 = vld [vmem:[#allocation16 + $0x38] sm:$0xff]
    %v5530 = vld [vmem:[#allocation16 + $0x40] sm:$0xff]
    %v5531 = vld [vmem:[#allocation16 + $0x48] sm:$0xff]
    %v5532 = vld [vmem:[#allocation16 + $0x50] sm:$0xff]
    %v5533 = vld [vmem:[#allocation16 + $0x58] sm:$0xff]
    %v5534 = vadd.f32 %v5510, %v5522
    %v5535 = vadd.f32 %v5511, %v5523
    %v5536 = vadd.f32 %v5512, %v5524
    %v5537 = vadd.f32 %v5513, %v5525
    %v5538 = vadd.f32 %v5514, %v5526
    %v5539 = vadd.f32 %v5515, %v5527
    %v5540 = vadd.f32 %v5516, %v5528
    %v5541 = vadd.f32 %v5517, %v5529
    %v5542 = vadd.f32 %v5518, %v5530
    %v5543 = vadd.f32 %v5519, %v5531
    %v5544 = vadd.f32 %v5520, %v5532
    %v5545 = vadd.f32 %v5521, %v5533
    %v5546 = vld [vmem:[#allocation17] sm:$0x3f]
    %v5547 = vld [vmem:[#allocation19] sm:$0x3f]
    %v5548 = vadd.f32 %v5534, %v5535
    %v5549 = vadd.f32 %v5548, %v5536
    %v5550 = vadd.f32 %v5549, %v5537
    %v5551 = vadd.f32 %v5550, %v5538
    %v5552 = vadd.f32 %v5551, %v5539
    %5553 = vadd.xlane.f32.xlu0 %v5552
    %v5554 = vpop.xlane.xlu0 %5553
    %v5555 = vadd.f32 %v5540, %v5541
    %v5556 = vadd.f32 %v5555, %v5542
    %v5557 = vadd.f32 %v5556, %v5543
    %v5558 = vadd.f32 %v5557, %v5544
    %v5559 = vadd.f32 %v5558, %v5545
    %5560 = vadd.xlane.f32.xlu0 %v5559
    %v5561 = vpop.xlane.xlu0 %5560
    %v5562 = vrcp.pop 768.0
    %v5563 = vmul.f32 %v5554, %v5562
    %v5564 = vmul.f32 %v5561, %v5562
    %v5565 = vsub.f32 %v5534, %v5563
    %v5566 = vsub.f32 %v5535, %v5563
    %v5567 = vsub.f32 %v5536, %v5563
    %v5568 = vsub.f32 %v5537, %v5563
    %v5569 = vsub.f32 %v5538, %v5563
    %v5570 = vsub.f32 %v5539, %v5563
    %v5571 = vsub.f32 %v5540, %v5564
    %v5572 = vsub.f32 %v5541, %v5564
    %v5573 = vsub.f32 %v5542, %v5564
    %v5574 = vsub.f32 %v5543, %v5564
    %v5575 = vsub.f32 %v5544, %v5564
    %v5576 = vsub.f32 %v5545, %v5564
    %v5577 = vmul.f32 %v5565, %v5565
    %v5578 = vmul.f32 %v5566, %v5566
    %v5579 = vmul.f32 %v5567, %v5567
    %v5580 = vmul.f32 %v5568, %v5568
    %v5581 = vmul.f32 %v5569, %v5569
    %v5582 = vmul.f32 %v5570, %v5570
    %v5583 = vmul.f32 %v5571, %v5571
    %v5584 = vmul.f32 %v5572, %v5572
    %v5585 = vmul.f32 %v5573, %v5573
    %v5586 = vmul.f32 %v5574, %v5574
    %v5587 = vmul.f32 %v5575, %v5575
    %v5588 = vmul.f32 %v5576, %v5576
    %v5589 = vadd.f32 %v5577, %v5578
    %v5590 = vadd.f32 %v5589, %v5579
    %v5591 = vadd.f32 %v5590, %v5580
    %v5592 = vadd.f32 %v5591, %v5581
    %v5593 = vadd.f32 %v5592, %v5582
    %5594 = vadd.xlane.f32.xlu0 %v5593
    %v5595 = vpop.xlane.xlu0 %5594
    %v5596 = vadd.f32 %v5583, %v5584
    %v5597 = vadd.f32 %v5596, %v5585
    %v5598 = vadd.f32 %v5597, %v5586
    %v5599 = vadd.f32 %v5598, %v5587
    %v5600 = vadd.f32 %v5599, %v5588
    %5601 = vadd.xlane.f32.xlu0 %v5600
    %v5602 = vpop.xlane.xlu0 %5601
    %v5603 = vmul.f32 %v5595, %v5562
    %v5604 = vmul.f32 %v5602, %v5562
    %v5605 = vadd.f32 %v5603, 1e-12
    %v5606 = vadd.f32 %v5604, 1e-12
    %v5607 = vrsqrt.pop %v5605
    %v5608 = vrsqrt.pop %v5606
    %v5609 = vmul.f32 %v5565, %v5607
    %v5610 = vmul.f32 %v5566, %v5607
    %v5611 = vmul.f32 %v5567, %v5607
    %v5612 = vmul.f32 %v5568, %v5607
    %v5613 = vmul.f32 %v5569, %v5607
    %v5614 = vmul.f32 %v5570, %v5607
    %v5615 = vmul.f32 %v5571, %v5608
    %v5616 = vmul.f32 %v5572, %v5608
    %v5617 = vmul.f32 %v5573, %v5608
    %v5618 = vmul.f32 %v5574, %v5608
    %v5619 = vmul.f32 %v5575, %v5608
    %v5620 = vmul.f32 %v5576, %v5608
    %v5622 = vlaneseq
    %v5623 = vshrl.u32 %v5622, 7
    %v5624 = vsub.s32 0, %v5623
    %v5625 = vrot.slane %v5546, %v5624
    %v5626 = vlaneseq
    %v5627 = vshrl.u32 %v5626, 7
    %v5628 = vsub.s32 1, %v5627
    %v5629 = vrot.slane %v5546, %v5628
    %v5630 = vlaneseq
    %v5631 = vshrl.u32 %v5630, 7
    %v5632 = vsub.s32 2, %v5631
    %v5633 = vrot.slane %v5546, %v5632
    %v5634 = vlaneseq
    %v5635 = vshrl.u32 %v5634, 7
    %v5636 = vsub.s32 3, %v5635
    %v5637 = vrot.slane %v5546, %v5636
    %v5638 = vlaneseq
    %v5639 = vshrl.u32 %v5638, 7
    %v5640 = vsub.s32 4, %v5639
    %v5641 = vrot.slane %v5546, %v5640
    %v5642 = vlaneseq
    %v5643 = vshrl.u32 %v5642, 7
    %v5644 = vsub.s32 5, %v5643
    %v5645 = vrot.slane %v5546, %v5644
    %v5652 = vmul.f32 %v5609, %v5625
    %v5653 = vmul.f32 %v5610, %v5629
    %v5654 = vmul.f32 %v5611, %v5633
    %v5655 = vmul.f32 %v5612, %v5637
    %v5656 = vmul.f32 %v5613, %v5641
    %v5657 = vmul.f32 %v5614, %v5645
    %v5658 = vmul.f32 %v5615, %v5625
    %v5659 = vmul.f32 %v5616, %v5629
    %v5660 = vmul.f32 %v5617, %v5633
    %v5661 = vmul.f32 %v5618, %v5637
    %v5662 = vmul.f32 %v5619, %v5641
    %v5663 = vmul.f32 %v5620, %v5645
    %v5665 = vlaneseq
    %v5666 = vshrl.u32 %v5665, 7
    %v5667 = vsub.s32 0, %v5666
    %v5668 = vrot.slane %v5547, %v5667
    %v5669 = vlaneseq
    %v5670 = vshrl.u32 %v5669, 7
    %v5671 = vsub.s32 1, %v5670
    %v5672 = vrot.slane %v5547, %v5671
    %v5673 = vlaneseq
    %v5674 = vshrl.u32 %v5673, 7
    %v5675 = vsub.s32 2, %v5674
    %v5676 = vrot.slane %v5547, %v5675
    %v5677 = vlaneseq
    %v5678 = vshrl.u32 %v5677, 7
    %v5679 = vsub.s32 3, %v5678
    %v5680 = vrot.slane %v5547, %v5679
    %v5681 = vlaneseq
    %v5682 = vshrl.u32 %v5681, 7
    %v5683 = vsub.s32 4, %v5682
    %v5684 = vrot.slane %v5547, %v5683
    %v5685 = vlaneseq
    %v5686 = vshrl.u32 %v5685, 7
    %v5687 = vsub.s32 5, %v5686
    %v5688 = vrot.slane %v5547, %v5687
    %v5695 = vadd.f32 %v5652, %v5668
    %v5696 = vadd.f32 %v5653, %v5672
    %v5697 = vadd.f32 %v5654, %v5676
    %v5698 = vadd.f32 %v5655, %v5680
    %v5699 = vadd.f32 %v5656, %v5684
    %v5700 = vadd.f32 %v5657, %v5688
    %v5701 = vadd.f32 %v5658, %v5668
    %v5702 = vadd.f32 %v5659, %v5672
    %v5703 = vadd.f32 %v5660, %v5676
    %v5704 = vadd.f32 %v5661, %v5680
    %v5705 = vadd.f32 %v5662, %v5684
    %v5706 = vadd.f32 %v5663, %v5688
    %5707 = vst [vmem:[#allocation20] sm:$0xff] %v5695
    %5708 = vst [vmem:[#allocation20 + $0x8] sm:$0xff] %v5696
    %5709 = vst [vmem:[#allocation20 + $0x10] sm:$0xff] %v5697
    %5710 = vst [vmem:[#allocation20 + $0x18] sm:$0xff] %v5698
    %5711 = vst [vmem:[#allocation20 + $0x20] sm:$0xff] %v5699
    %5712 = vst [vmem:[#allocation20 + $0x28] sm:$0xff] %v5700
    %5713 = vst [vmem:[#allocation20 + $0x30] sm:$0xff] %v5701
    %5714 = vst [vmem:[#allocation20 + $0x38] sm:$0xff] %v5702
    %5715 = vst [vmem:[#allocation20 + $0x40] sm:$0xff] %v5703
    %5716 = vst [vmem:[#allocation20 + $0x48] sm:$0xff] %v5704
    %5717 = vst [vmem:[#allocation20 + $0x50] sm:$0xff] %v5705
    %5718 = vst [vmem:[#allocation20 + $0x58] sm:$0xff] %v5706
    // Predicated region
    $region90: #{tpu_custom_call.1} parent=1 // pred_check
      _
    $region91: #{tpu_custom_call.1} parent=1 // pred_check_branch
      %5720 = sbr.rel (0) target = $region93
    $region92: #{tpu_custom_call.1} parent=1 // pred_region
      %s5722 = ssub.s32 1536, 1536
      %5723 = vsyncadd [#allocation4], %s5722
      %s5724 = sshll.u32 [#allocation20], 4
      %s5725 = int_to_ptr.vmem [resolvable:$true] %s5724
      %5730 = dma.vmem_to_hbm [thread:$0]  %s5725, 1536, %s11, [#allocation4], 768, 768, 48
    $region93: #{tpu_custom_call.1} parent=1 // pred_fallthru
      _
    // Predicated region
    $region94: #{tpu_custom_call.1} parent=1 // pred_check
      _
    $region95: #{tpu_custom_call.1} parent=1 // pred_check_branch
      %5732 = sbr.rel (0) target = $region97
    $region96: #{tpu_custom_call.1} parent=1 // pred_region
      %5733 = dma.done [#allocation4], 1536
    $region97: #{tpu_custom_call.1} parent=1 // pred_fallthru
      _
    %5734 = vsyncpa [#allocation3], 1
    %5735 = vsyncpa [#allocation6], 1
    %5736 = vsyncpa [#allocation9], 1
    %5737 = vsyncpa [#allocation12], 1
    %5738 = vsyncpa [#allocation15], 1
    %5739 = vsyncpa [#allocation18], 1
    %5740 = vsyncpa [#allocation4], 1

</llo_original>
